<compile_context>
chip_gen: v7x
topology: tpu7x:2x2x1
jax: 0.10.0
libtpu: 0.0.40
codegen_flags: <defaults>
</compile_context>

<pallas_src>
import jax
import jax.numpy as jnp
from jax import lax
from jax.experimental import pallas as pl
from jax.experimental.pallas import tpu as pltpu

T = 8                  # rollout length (batched over, not a grid axis)
B = 16                 # batch per timestep
C, IMG = 4, 16         # NCHW observation: [B, 4, 16, 16]
D_IN = C * IMG * IMG   # 1024
HID = 128              # width of the 3 hidden tanh layers
LSTM_H = 128           # LSTM cell size
N_ACT = 6              # Categorical action dim
HEAD_W = 128           # fused head width: col 0 = value, cols 1..6 = logits
N_GATES = 4 * LSTM_H   # 512 (PyTorch gate order i, f, g, o)
TB = T * B             # 128 rows for the batched GEMMs

# Packed bias slab layout, shape (1, 1024): [b1 | b2 | b3 | b_head | b_gates]
_B1, _B2, _B3 = 0, HID, 2 * HID
_BH = 3 * HID
_BG = 3 * HID + HEAD_W
BIAS_W = _BG + N_GATES  # 1024


def _policy_rollout_kernel(x_ref, h0_ref, c0_ref,
                           w1_ref, w2_ref, w3_ref,
                           wih_ref, whh_ref, whead_ref, bias_ref,
                           head_ref, h_out_ref, c_out_ref,
                           gx_sc, hbuf_sc):
    f32, bf16 = jnp.float32, jnp.bfloat16

    b1 = bias_ref[:, _B1:_B1 + HID]
    b2 = bias_ref[:, _B2:_B2 + HID]
    b3 = bias_ref[:, _B3:_B3 + HID]
    b_head = bias_ref[:, _BH:_BH + HEAD_W]
    b_gates = bias_ref[:, _BG:_BG + N_GATES]

    # ---- batched feed-forward trunk over all T timesteps (M = T*B = 128) ----
    x = x_ref[...].astype(bf16)                                       # (TB, D_IN)
    h1 = jnp.tanh(jnp.dot(x, w1_ref[...], preferred_element_type=f32) + b1)
    h2 = jnp.tanh(jnp.dot(h1.astype(bf16), w2_ref[...],
                          preferred_element_type=f32) + b2)
    h3 = jnp.tanh(jnp.dot(h2.astype(bf16), w3_ref[...],
                          preferred_element_type=f32) + b3)

    # ---- batched input-side LSTM gate projection (bias folded in once) ----
    gx_sc[...] = jnp.dot(h3.astype(bf16), wih_ref[...],
                         preferred_element_type=f32) + b_gates        # (TB, 4H)

    # ---- sequential recurrence: only gates_h GEMM (K=128) + gate math ----
    def step(t, carry):
        h_prev, c_prev = carry
        gates = gx_sc[pl.ds(t * B, B), :] + jnp.dot(
            h_prev.astype(bf16), whh_ref[...], preferred_element_type=f32)
        i_g = jax.nn.sigmoid(gates[:, 0 * LSTM_H:1 * LSTM_H])
        f_g = jax.nn.sigmoid(gates[:, 1 * LSTM_H:2 * LSTM_H])
        g_g = jnp.tanh(gates[:, 2 * LSTM_H:3 * LSTM_H])
        o_g = jax.nn.sigmoid(gates[:, 3 * LSTM_H:4 * LSTM_H])
        c_new = f_g * c_prev + i_g * g_g
        h_new = o_g * jnp.tanh(c_new)
        hbuf_sc[pl.ds(t * B, B), :] = h_new
        return (h_new, c_new)

    h_fin, c_fin = lax.fori_loop(0, T, step, (h0_ref[...], c0_ref[...]),
                                 unroll=True)

    # ---- batched fused value+actor head: one (TB,128)@(128,128) GEMM ----
    head_ref[...] = jnp.dot(hbuf_sc[...].astype(bf16), whead_ref[...],
                            preferred_element_type=f32) + b_head
    h_out_ref[...] = h_fin
    c_out_ref[...] = c_fin


def init_params(key):
    ks = jax.random.split(key, 7)

    def lin(k, fan_in, fan_out):
        kw, kb = jax.random.split(k)
        scale = 1.0 / jnp.sqrt(jnp.float32(fan_in))
        w = jax.random.uniform(kw, (fan_in, fan_out), jnp.float32, -scale, scale)
        b = jax.random.uniform(kb, (1, fan_out), jnp.float32, -scale, scale)
        return w, b

    w1, b1 = lin(ks[0], D_IN, HID)
    w2, b2 = lin(ks[1], HID, HID)
    w3, b3 = lin(ks[2], HID, HID)
    wih, bih = lin(ks[3], HID, N_GATES)
    whh, bhh = lin(ks[4], LSTM_H, N_GATES)
    wv, bv = lin(ks[5], LSTM_H, 1)
    wa, ba = lin(ks[6], LSTM_H, N_ACT)

    # b_gates = b_ih + b_hh (torch.nn.LSTMCell semantics, gate order i,f,g,o).
    b_gates = bih + bhh
    # Fuse value + actor heads into one lane-dense [LSTM_H, 128] weight.
    w_head = jnp.zeros((LSTM_H, HEAD_W), jnp.float32)
    w_head = w_head.at[:, 0:1].set(wv)
    w_head = w_head.at[:, 1:1 + N_ACT].set(wa)
    b_head = jnp.zeros((1, HEAD_W), jnp.float32)
    b_head = b_head.at[:, 0:1].set(bv)
    b_head = b_head.at[:, 1:1 + N_ACT].set(ba)

    # Pack all biases into one (1, 1024) f32 slab (single input ref).
    bias = jnp.concatenate([b1, b2, b3, b_head, b_gates], axis=-1)
    assert bias.shape == (1, BIAS_W)

    bf16 = jnp.bfloat16
    return dict(
        w1=w1.astype(bf16), w2=w2.astype(bf16), w3=w3.astype(bf16),
        w_ih=wih.astype(bf16), w_hh=whh.astype(bf16),
        w_head=w_head.astype(bf16), bias=bias)


@jax.jit
def policy_rollout(x_tbchw, h0, c0, params):
    # Glue: flatten (T, B, C, H, W) -> (T*B, C*H*W) like x.view(B, -1).
    # Native f32 dtype here; the bf16 cast happens inside the kernel.
    x = x_tbchw.reshape(TB, D_IN)

    flops = 2 * TB * (D_IN * HID + 2 * HID * HID + HID * N_GATES
                      + LSTM_H * N_GATES + LSTM_H * HEAD_W)
    transc = TB * (3 * HID + 5 * LSTM_H)
    bytes_accessed = (
        4 * TB * D_IN                                           # f32 obs
        + 2 * (D_IN * HID + 2 * HID * HID + HID * N_GATES       # bf16 weights
               + LSTM_H * N_GATES + LSTM_H * HEAD_W)
        + 4 * BIAS_W                                            # bias slab
        + 4 * TB * HEAD_W                                       # head output
        + 4 * 4 * B * LSTM_H)                                   # h/c in + out

    head, h_fin, c_fin = pl.pallas_call(
        _policy_rollout_kernel,
        out_shape=(
            jax.ShapeDtypeStruct((TB, HEAD_W), jnp.float32),    # value+logits
            jax.ShapeDtypeStruct((B, LSTM_H), jnp.float32),     # final h
            jax.ShapeDtypeStruct((B, LSTM_H), jnp.float32),     # final c
        ),
        scratch_shapes=[
            pltpu.VMEM((TB, N_GATES), jnp.float32),             # precomputed gates_x
            pltpu.VMEM((TB, LSTM_H), jnp.float32),              # collected h states
        ],
        cost_estimate=pl.CostEstimate(
            flops=flops, transcendentals=transc, bytes_accessed=bytes_accessed),
    )(x, h0, c0,
      params["w1"], params["w2"], params["w3"],
      params["w_ih"], params["w_hh"], params["w_head"], params["bias"])

    head = head.reshape(T, B, HEAD_W)
    value = head[:, :, 0:1]            # (T, B, 1)
    logits = head[:, :, 1:1 + N_ACT]   # (T, B, N_ACT)
    return value, logits, h_fin, c_fin


def act(x_tbchw, h0, c0, params, deterministic=True):
    value, logits, h_fin, c_fin = policy_rollout(x_tbchw, h0, c0, params)
    # Deterministic Categorical sample = argmax over logits (glue, outside kernel).
    action = jnp.argmax(logits, axis=-1)   # (T, B)
    return value, action, (h_fin, c_fin)


def _reference_rollout(x_tbchw, h0, c0, params):
    """Pure-JAX mirror of the kernel math (bf16 operands, f32 accumulation)."""
    bf16, f32 = jnp.bfloat16, jnp.float32
    x_all = x_tbchw.reshape(T, B, D_IN)
    bias = params["bias"]
    b1 = bias[:, _B1:_B1 + HID]
    b2 = bias[:, _B2:_B2 + HID]
    b3 = bias[:, _B3:_B3 + HID]
    b_head = bias[:, _BH:_BH + HEAD_W]
    b_gates = bias[:, _BG:_BG + N_GATES]

    def dot(a, w):
        return jnp.dot(a.astype(bf16), w, preferred_element_type=f32)

    def step(carry, x):
        h, c = carry
        h1 = jnp.tanh(dot(x, params["w1"]) + b1)
        h2 = jnp.tanh(dot(h1, params["w2"]) + b2)
        h3 = jnp.tanh(dot(h2, params["w3"]) + b3)
        gates = dot(h3, params["w_ih"]) + b_gates + dot(h, params["w_hh"])
        i_g = jax.nn.sigmoid(gates[:, :LSTM_H])
        f_g = jax.nn.sigmoid(gates[:, LSTM_H:2 * LSTM_H])
        g_g = jnp.tanh(gates[:, 2 * LSTM_H:3 * LSTM_H])
        o_g = jax.nn.sigmoid(gates[:, 3 * LSTM_H:])
        c_new = f_g * c + i_g * g_g
        h_new = o_g * jnp.tanh(c_new)
        head = dot(h_new, params["w_head"]) + b_head
        return (h_new, c_new), head

    (h_fin, c_fin), heads = lax.scan(step, (h0, c0), x_all)
    return heads[:, :, 0:1], heads[:, :, 1:1 + N_ACT], h_fin, c_fin


if __name__ == "__main__":
    key = jax.random.PRNGKey(0)
    k_x, k_h, k_c, k_p = jax.random.split(key, 4)
    x = jax.random.normal(k_x, (T, B, C, IMG, IMG), jnp.float32)
    h0 = 0.5 * jax.random.normal(k_h, (B, LSTM_H), jnp.float32)
    c0 = 0.5 * jax.random.normal(k_c, (B, LSTM_H), jnp.float32)
    params = init_params(k_p)

    value, logits, h_fin, c_fin = policy_rollout(x, h0, c0, params)
    action = jnp.argmax(logits, axis=-1)
    jax.block_until_ready((value, logits, action, h_fin, c_fin))

    assert value.shape == (T, B, 1)
    assert logits.shape == (T, B, N_ACT)
    assert action.shape == (T, B)
    assert h_fin.shape == (B, LSTM_H) and c_fin.shape == (B, LSTM_H)

    v_ref, l_ref, h_ref, c_ref = _reference_rollout(x, h0, c0, params)
    max_err = max(
        float(jnp.max(jnp.abs(value - v_ref))),
        float(jnp.max(jnp.abs(logits - l_ref))),
        float(jnp.max(jnp.abs(h_fin - h_ref))),
        float(jnp.max(jnp.abs(c_fin - c_ref))),
    )
    assert max_err < 5e-2, f"mismatch vs reference: {max_err}"
    print("KERNEL_OK")
</pallas_src>

<mosaic_0001>
module attributes {stable_mosaic.version = 11 : i64} {
  func.func @_policy_rollout_kernel(%arg0: memref<128x1024xf32, #tpu.memory_space<vmem>>, %arg1: memref<16x128xf32, #tpu.memory_space<vmem>>, %arg2: memref<16x128xf32, #tpu.memory_space<vmem>>, %arg3: memref<1024x128xbf16, #tpu.memory_space<vmem>>, %arg4: memref<128x128xbf16, #tpu.memory_space<vmem>>, %arg5: memref<128x128xbf16, #tpu.memory_space<vmem>>, %arg6: memref<128x512xbf16, #tpu.memory_space<vmem>>, %arg7: memref<128x512xbf16, #tpu.memory_space<vmem>>, %arg8: memref<128x128xbf16, #tpu.memory_space<vmem>>, %arg9: memref<1x1024xf32, #tpu.memory_space<vmem>>, %arg10: memref<128x128xf32, #tpu.memory_space<vmem>>, %arg11: memref<16x128xf32, #tpu.memory_space<vmem>>, %arg12: memref<16x128xf32, #tpu.memory_space<vmem>>, %arg13: memref<128x512xf32, #tpu.memory_space<vmem>>, %arg14: memref<128x128xf32, #tpu.memory_space<vmem>>) attributes {dimension_semantics = [], scalar_prefetch = 0 : i64, scratch_operands = 2 : i64, tpu.core_type = #tpu.core_type<tc>} {
    %c0 = arith.constant 0 : index
    %c0_0 = arith.constant 0 : index
    %0 = vector.load %arg9[%c0, %c0_0] : memref<1x1024xf32, #tpu.memory_space<vmem>>, vector<1x128xf32>
    %c0_1 = arith.constant 0 : index
    %c128 = arith.constant 128 : index
    %1 = vector.load %arg9[%c0_1, %c128] : memref<1x1024xf32, #tpu.memory_space<vmem>>, vector<1x128xf32>
    %c0_2 = arith.constant 0 : index
    %c256 = arith.constant 256 : index
    %2 = vector.load %arg9[%c0_2, %c256] : memref<1x1024xf32, #tpu.memory_space<vmem>>, vector<1x128xf32>
    %c0_3 = arith.constant 0 : index
    %c384 = arith.constant 384 : index
    %3 = vector.load %arg9[%c0_3, %c384] : memref<1x1024xf32, #tpu.memory_space<vmem>>, vector<1x128xf32>
    %c0_4 = arith.constant 0 : index
    %c512 = arith.constant 512 : index
    %4 = vector.load %arg9[%c0_4, %c512] : memref<1x1024xf32, #tpu.memory_space<vmem>>, vector<1x512xf32>
    %c0_5 = arith.constant 0 : index
    %c0_6 = arith.constant 0 : index
    %5 = vector.load %arg0[%c0_5, %c0_6] : memref<128x1024xf32, #tpu.memory_space<vmem>>, vector<128x1024xf32>
    %6 = arith.truncf %5 : vector<128x1024xf32> to vector<128x1024xbf16>
    %c0_7 = arith.constant 0 : index
    %c0_8 = arith.constant 0 : index
    %7 = vector.load %arg3[%c0_7, %c0_8] : memref<1024x128xbf16, #tpu.memory_space<vmem>>, vector<1024x128xbf16>
    %cst = arith.constant dense<0.000000e+00> : vector<128x128xf32>
    %8 = tpu.matmul %6, %7, %cst {dimension_numbers = #tpu.dot_dimension_numbers<[1], [0], [0], [1], [0, 0, 1, 1], [], []>} : vector<128x1024xbf16>, vector<1024x128xbf16>, vector<128x128xf32> -> vector<128x128xf32>
    %9 = vector.broadcast %0 : vector<1x128xf32> to vector<128x128xf32>
    %10 = arith.addf %8, %9 : vector<128x128xf32>
    %11 = math.tanh %10 : vector<128x128xf32>
    %12 = arith.truncf %11 : vector<128x128xf32> to vector<128x128xbf16>
    %c0_9 = arith.constant 0 : index
    %c0_10 = arith.constant 0 : index
    %13 = vector.load %arg4[%c0_9, %c0_10] : memref<128x128xbf16, #tpu.memory_space<vmem>>, vector<128x128xbf16>
    %cst_11 = arith.constant dense<0.000000e+00> : vector<128x128xf32>
    %14 = tpu.matmul %12, %13, %cst_11 {dimension_numbers = #tpu.dot_dimension_numbers<[1], [0], [0], [1], [0, 0, 1, 1], [], []>} : vector<128x128xbf16>, vector<128x128xbf16>, vector<128x128xf32> -> vector<128x128xf32>
    %15 = vector.broadcast %1 : vector<1x128xf32> to vector<128x128xf32>
    %16 = arith.addf %14, %15 : vector<128x128xf32>
    %17 = math.tanh %16 : vector<128x128xf32>
    %18 = arith.truncf %17 : vector<128x128xf32> to vector<128x128xbf16>
    %c0_12 = arith.constant 0 : index
    %c0_13 = arith.constant 0 : index
    %19 = vector.load %arg5[%c0_12, %c0_13] : memref<128x128xbf16, #tpu.memory_space<vmem>>, vector<128x128xbf16>
    %cst_14 = arith.constant dense<0.000000e+00> : vector<128x128xf32>
    %20 = tpu.matmul %18, %19, %cst_14 {dimension_numbers = #tpu.dot_dimension_numbers<[1], [0], [0], [1], [0, 0, 1, 1], [], []>} : vector<128x128xbf16>, vector<128x128xbf16>, vector<128x128xf32> -> vector<128x128xf32>
    %21 = vector.broadcast %2 : vector<1x128xf32> to vector<128x128xf32>
    %22 = arith.addf %20, %21 : vector<128x128xf32>
    %23 = math.tanh %22 : vector<128x128xf32>
    %24 = arith.truncf %23 : vector<128x128xf32> to vector<128x128xbf16>
    %c0_15 = arith.constant 0 : index
    %c0_16 = arith.constant 0 : index
    %25 = vector.load %arg6[%c0_15, %c0_16] : memref<128x512xbf16, #tpu.memory_space<vmem>>, vector<128x512xbf16>
    %cst_17 = arith.constant dense<0.000000e+00> : vector<128x512xf32>
    %26 = tpu.matmul %24, %25, %cst_17 {dimension_numbers = #tpu.dot_dimension_numbers<[1], [0], [0], [1], [0, 0, 1, 1], [], []>} : vector<128x128xbf16>, vector<128x512xbf16>, vector<128x512xf32> -> vector<128x512xf32>
    %27 = vector.broadcast %4 : vector<1x512xf32> to vector<128x512xf32>
    %28 = arith.addf %26, %27 : vector<128x512xf32>
    %c0_18 = arith.constant 0 : index
    %c0_19 = arith.constant 0 : index
    %29 = vector.load %arg13[%c0_18, %c0_19] : memref<128x512xf32, #tpu.memory_space<vmem>>, vector<128x512xf32>
    tpu.vector_store %arg13[%c0_18, %c0_19], %28 {strides = array<i32>} : memref<128x512xf32, #tpu.memory_space<vmem>>, vector<128x512xf32>,
    %c0_20 = arith.constant 0 : index
    %c0_21 = arith.constant 0 : index
    %30 = vector.load %arg1[%c0_20, %c0_21] : memref<16x128xf32, #tpu.memory_space<vmem>>, vector<16x128xf32>
    %c0_22 = arith.constant 0 : index
    %c0_23 = arith.constant 0 : index
    %31 = vector.load %arg2[%c0_22, %c0_23] : memref<16x128xf32, #tpu.memory_space<vmem>>, vector<16x128xf32>
    %c0_i32 = arith.constant 0 : i32
    %c16_i32 = arith.constant 16 : i32
    %32 = arith.muli %c0_i32, %c16_i32 : i32
    %33 = arith.index_cast %32 : i32 to index
    %c0_24 = arith.constant 0 : index
    %34 = vector.load %arg13[%33, %c0_24] : memref<128x512xf32, #tpu.memory_space<vmem>>, vector<16x512xf32>
    %35 = arith.truncf %30 : vector<16x128xf32> to vector<16x128xbf16>
    %c0_25 = arith.constant 0 : index
    %c0_26 = arith.constant 0 : index
    %36 = vector.load %arg7[%c0_25, %c0_26] : memref<128x512xbf16, #tpu.memory_space<vmem>>, vector<128x512xbf16>
    %cst_27 = arith.constant dense<0.000000e+00> : vector<16x512xf32>
    %37 = tpu.matmul %35, %36, %cst_27 {dimension_numbers = #tpu.dot_dimension_numbers<[1], [0], [0], [1], [0, 0, 1, 1], [], []>} : vector<16x128xbf16>, vector<128x512xbf16>, vector<16x512xf32> -> vector<16x512xf32>
    %38 = arith.addf %34, %37 : vector<16x512xf32>
    %39 = vector.extract_strided_slice %38 {offsets = [0, 0], sizes = [16, 128], strides = [1, 1]} : vector<16x512xf32> to vector<16x128xf32>
    %40 = arith.negf %39 : vector<16x128xf32>
    %41 = math.exp %40 : vector<16x128xf32>
    %cst_28 = arith.constant 1.000000e+00 : f32
    %42 = vector.broadcast %cst_28 : f32 to vector<16x128xf32>
    %43 = arith.addf %42, %41 : vector<16x128xf32>
    %44 = arith.divf %42, %43 : vector<16x128xf32>
    %45 = vector.extract_strided_slice %38 {offsets = [0, 128], sizes = [16, 128], strides = [1, 1]} : vector<16x512xf32> to vector<16x128xf32>
    %46 = arith.negf %45 : vector<16x128xf32>
    %47 = math.exp %46 : vector<16x128xf32>
    %cst_29 = arith.constant 1.000000e+00 : f32
    %48 = vector.broadcast %cst_29 : f32 to vector<16x128xf32>
    %49 = arith.addf %48, %47 : vector<16x128xf32>
    %50 = arith.divf %48, %49 : vector<16x128xf32>
    %51 = vector.extract_strided_slice %38 {offsets = [0, 256], sizes = [16, 128], strides = [1, 1]} : vector<16x512xf32> to vector<16x128xf32>
    %52 = math.tanh %51 : vector<16x128xf32>
    %53 = vector.extract_strided_slice %38 {offsets = [0, 384], sizes = [16, 128], strides = [1, 1]} : vector<16x512xf32> to vector<16x128xf32>
    %54 = arith.negf %53 : vector<16x128xf32>
    %55 = math.exp %54 : vector<16x128xf32>
    %cst_30 = arith.constant 1.000000e+00 : f32
    %56 = vector.broadcast %cst_30 : f32 to vector<16x128xf32>
    %57 = arith.addf %56, %55 : vector<16x128xf32>
    %58 = arith.divf %56, %57 : vector<16x128xf32>
    %59 = arith.mulf %50, %31 : vector<16x128xf32>
    %60 = arith.mulf %44, %52 : vector<16x128xf32>
    %61 = arith.addf %59, %60 : vector<16x128xf32>
    %62 = math.tanh %61 : vector<16x128xf32>
    %63 = arith.mulf %58, %62 : vector<16x128xf32>
    %c16_i32_31 = arith.constant 16 : i32
    %64 = arith.muli %c0_i32, %c16_i32_31 : i32
    %65 = arith.index_cast %64 : i32 to index
    %c0_32 = arith.constant 0 : index
    %66 = vector.load %arg14[%65, %c0_32] : memref<128x128xf32, #tpu.memory_space<vmem>>, vector<16x128xf32>
    tpu.vector_store %arg14[%65, %c0_32], %63 {strides = array<i32>} : memref<128x128xf32, #tpu.memory_space<vmem>>, vector<16x128xf32>,
    %c1_i32 = arith.constant 1 : i32
    %c16_i32_33 = arith.constant 16 : i32
    %67 = arith.muli %c1_i32, %c16_i32_33 : i32
    %68 = arith.index_cast %67 : i32 to index
    %c0_34 = arith.constant 0 : index
    %69 = vector.load %arg13[%68, %c0_34] : memref<128x512xf32, #tpu.memory_space<vmem>>, vector<16x512xf32>
    %70 = arith.truncf %63 : vector<16x128xf32> to vector<16x128xbf16>
    %c0_35 = arith.constant 0 : index
    %c0_36 = arith.constant 0 : index
    %71 = vector.load %arg7[%c0_35, %c0_36] : memref<128x512xbf16, #tpu.memory_space<vmem>>, vector<128x512xbf16>
    %cst_37 = arith.constant dense<0.000000e+00> : vector<16x512xf32>
    %72 = tpu.matmul %70, %71, %cst_37 {dimension_numbers = #tpu.dot_dimension_numbers<[1], [0], [0], [1], [0, 0, 1, 1], [], []>} : vector<16x128xbf16>, vector<128x512xbf16>, vector<16x512xf32> -> vector<16x512xf32>
    %73 = arith.addf %69, %72 : vector<16x512xf32>
    %74 = vector.extract_strided_slice %73 {offsets = [0, 0], sizes = [16, 128], strides = [1, 1]} : vector<16x512xf32> to vector<16x128xf32>
    %75 = arith.negf %74 : vector<16x128xf32>
    %76 = math.exp %75 : vector<16x128xf32>
    %cst_38 = arith.constant 1.000000e+00 : f32
    %77 = vector.broadcast %cst_38 : f32 to vector<16x128xf32>
    %78 = arith.addf %77, %76 : vector<16x128xf32>
    %79 = arith.divf %77, %78 : vector<16x128xf32>
    %80 = vector.extract_strided_slice %73 {offsets = [0, 128], sizes = [16, 128], strides = [1, 1]} : vector<16x512xf32> to vector<16x128xf32>
    %81 = arith.negf %80 : vector<16x128xf32>
    %82 = math.exp %81 : vector<16x128xf32>
    %cst_39 = arith.constant 1.000000e+00 : f32
    %83 = vector.broadcast %cst_39 : f32 to vector<16x128xf32>
    %84 = arith.addf %83, %82 : vector<16x128xf32>
    %85 = arith.divf %83, %84 : vector<16x128xf32>
    %86 = vector.extract_strided_slice %73 {offsets = [0, 256], sizes = [16, 128], strides = [1, 1]} : vector<16x512xf32> to vector<16x128xf32>
    %87 = math.tanh %86 : vector<16x128xf32>
    %88 = vector.extract_strided_slice %73 {offsets = [0, 384], sizes = [16, 128], strides = [1, 1]} : vector<16x512xf32> to vector<16x128xf32>
    %89 = arith.negf %88 : vector<16x128xf32>
    %90 = math.exp %89 : vector<16x128xf32>
    %cst_40 = arith.constant 1.000000e+00 : f32
    %91 = vector.broadcast %cst_40 : f32 to vector<16x128xf32>
    %92 = arith.addf %91, %90 : vector<16x128xf32>
    %93 = arith.divf %91, %92 : vector<16x128xf32>
    %94 = arith.mulf %85, %61 : vector<16x128xf32>
    %95 = arith.mulf %79, %87 : vector<16x128xf32>
    %96 = arith.addf %94, %95 : vector<16x128xf32>
    %97 = math.tanh %96 : vector<16x128xf32>
    %98 = arith.mulf %93, %97 : vector<16x128xf32>
    %c16_i32_41 = arith.constant 16 : i32
    %99 = arith.muli %c1_i32, %c16_i32_41 : i32
    %100 = arith.index_cast %99 : i32 to index
    %c0_42 = arith.constant 0 : index
    %101 = vector.load %arg14[%100, %c0_42] : memref<128x128xf32, #tpu.memory_space<vmem>>, vector<16x128xf32>
    tpu.vector_store %arg14[%100, %c0_42], %98 {strides = array<i32>} : memref<128x128xf32, #tpu.memory_space<vmem>>, vector<16x128xf32>,
    %c2_i32 = arith.constant 2 : i32
    %c16_i32_43 = arith.constant 16 : i32
    %102 = arith.muli %c2_i32, %c16_i32_43 : i32
    %103 = arith.index_cast %102 : i32 to index
    %c0_44 = arith.constant 0 : index
    %104 = vector.load %arg13[%103, %c0_44] : memref<128x512xf32, #tpu.memory_space<vmem>>, vector<16x512xf32>
    %105 = arith.truncf %98 : vector<16x128xf32> to vector<16x128xbf16>
    %c0_45 = arith.constant 0 : index
    %c0_46 = arith.constant 0 : index
    %106 = vector.load %arg7[%c0_45, %c0_46] : memref<128x512xbf16, #tpu.memory_space<vmem>>, vector<128x512xbf16>
    %cst_47 = arith.constant dense<0.000000e+00> : vector<16x512xf32>
    %107 = tpu.matmul %105, %106, %cst_47 {dimension_numbers = #tpu.dot_dimension_numbers<[1], [0], [0], [1], [0, 0, 1, 1], [], []>} : vector<16x128xbf16>, vector<128x512xbf16>, vector<16x512xf32> -> vector<16x512xf32>
    %108 = arith.addf %104, %107 : vector<16x512xf32>
    %109 = vector.extract_strided_slice %108 {offsets = [0, 0], sizes = [16, 128], strides = [1, 1]} : vector<16x512xf32> to vector<16x128xf32>
    %110 = arith.negf %109 : vector<16x128xf32>
    %111 = math.exp %110 : vector<16x128xf32>
    %cst_48 = arith.constant 1.000000e+00 : f32
    %112 = vector.broadcast %cst_48 : f32 to vector<16x128xf32>
    %113 = arith.addf %112, %111 : vector<16x128xf32>
    %114 = arith.divf %112, %113 : vector<16x128xf32>
    %115 = vector.extract_strided_slice %108 {offsets = [0, 128], sizes = [16, 128], strides = [1, 1]} : vector<16x512xf32> to vector<16x128xf32>
    %116 = arith.negf %115 : vector<16x128xf32>
    %117 = math.exp %116 : vector<16x128xf32>
    %cst_49 = arith.constant 1.000000e+00 : f32
    %118 = vector.broadcast %cst_49 : f32 to vector<16x128xf32>
    %119 = arith.addf %118, %117 : vector<16x128xf32>
    %120 = arith.divf %118, %119 : vector<16x128xf32>
    %121 = vector.extract_strided_slice %108 {offsets = [0, 256], sizes = [16, 128], strides = [1, 1]} : vector<16x512xf32> to vector<16x128xf32>
    %122 = math.tanh %121 : vector<16x128xf32>
    %123 = vector.extract_strided_slice %108 {offsets = [0, 384], sizes = [16, 128], strides = [1, 1]} : vector<16x512xf32> to vector<16x128xf32>
    %124 = arith.negf %123 : vector<16x128xf32>
    %125 = math.exp %124 : vector<16x128xf32>
    %cst_50 = arith.constant 1.000000e+00 : f32
    %126 = vector.broadcast %cst_50 : f32 to vector<16x128xf32>
    %127 = arith.addf %126, %125 : vector<16x128xf32>
    %128 = arith.divf %126, %127 : vector<16x128xf32>
    %129 = arith.mulf %120, %96 : vector<16x128xf32>
    %130 = arith.mulf %114, %122 : vector<16x128xf32>
    %131 = arith.addf %129, %130 : vector<16x128xf32>
    %132 = math.tanh %131 : vector<16x128xf32>
    %133 = arith.mulf %128, %132 : vector<16x128xf32>
    %c16_i32_51 = arith.constant 16 : i32
    %134 = arith.muli %c2_i32, %c16_i32_51 : i32
    %135 = arith.index_cast %134 : i32 to index
    %c0_52 = arith.constant 0 : index
    %136 = vector.load %arg14[%135, %c0_52] : memref<128x128xf32, #tpu.memory_space<vmem>>, vector<16x128xf32>
    tpu.vector_store %arg14[%135, %c0_52], %133 {strides = array<i32>} : memref<128x128xf32, #tpu.memory_space<vmem>>, vector<16x128xf32>,
    %c3_i32 = arith.constant 3 : i32
    %c16_i32_53 = arith.constant 16 : i32
    %137 = arith.muli %c3_i32, %c16_i32_53 : i32
    %138 = arith.index_cast %137 : i32 to index
    %c0_54 = arith.constant 0 : index
    %139 = vector.load %arg13[%138, %c0_54] : memref<128x512xf32, #tpu.memory_space<vmem>>, vector<16x512xf32>
    %140 = arith.truncf %133 : vector<16x128xf32> to vector<16x128xbf16>
    %c0_55 = arith.constant 0 : index
    %c0_56 = arith.constant 0 : index
    %141 = vector.load %arg7[%c0_55, %c0_56] : memref<128x512xbf16, #tpu.memory_space<vmem>>, vector<128x512xbf16>
    %cst_57 = arith.constant dense<0.000000e+00> : vector<16x512xf32>
    %142 = tpu.matmul %140, %141, %cst_57 {dimension_numbers = #tpu.dot_dimension_numbers<[1], [0], [0], [1], [0, 0, 1, 1], [], []>} : vector<16x128xbf16>, vector<128x512xbf16>, vector<16x512xf32> -> vector<16x512xf32>
    %143 = arith.addf %139, %142 : vector<16x512xf32>
    %144 = vector.extract_strided_slice %143 {offsets = [0, 0], sizes = [16, 128], strides = [1, 1]} : vector<16x512xf32> to vector<16x128xf32>
    %145 = arith.negf %144 : vector<16x128xf32>
    %146 = math.exp %145 : vector<16x128xf32>
    %cst_58 = arith.constant 1.000000e+00 : f32
    %147 = vector.broadcast %cst_58 : f32 to vector<16x128xf32>
    %148 = arith.addf %147, %146 : vector<16x128xf32>
    %149 = arith.divf %147, %148 : vector<16x128xf32>
    %150 = vector.extract_strided_slice %143 {offsets = [0, 128], sizes = [16, 128], strides = [1, 1]} : vector<16x512xf32> to vector<16x128xf32>
    %151 = arith.negf %150 : vector<16x128xf32>
    %152 = math.exp %151 : vector<16x128xf32>
    %cst_59 = arith.constant 1.000000e+00 : f32
    %153 = vector.broadcast %cst_59 : f32 to vector<16x128xf32>
    %154 = arith.addf %153, %152 : vector<16x128xf32>
    %155 = arith.divf %153, %154 : vector<16x128xf32>
    %156 = vector.extract_strided_slice %143 {offsets = [0, 256], sizes = [16, 128], strides = [1, 1]} : vector<16x512xf32> to vector<16x128xf32>
    %157 = math.tanh %156 : vector<16x128xf32>
    %158 = vector.extract_strided_slice %143 {offsets = [0, 384], sizes = [16, 128], strides = [1, 1]} : vector<16x512xf32> to vector<16x128xf32>
    %159 = arith.negf %158 : vector<16x128xf32>
    %160 = math.exp %159 : vector<16x128xf32>
    %cst_60 = arith.constant 1.000000e+00 : f32
    %161 = vector.broadcast %cst_60 : f32 to vector<16x128xf32>
    %162 = arith.addf %161, %160 : vector<16x128xf32>
    %163 = arith.divf %161, %162 : vector<16x128xf32>
    %164 = arith.mulf %155, %131 : vector<16x128xf32>
    %165 = arith.mulf %149, %157 : vector<16x128xf32>
    %166 = arith.addf %164, %165 : vector<16x128xf32>
    %167 = math.tanh %166 : vector<16x128xf32>
    %168 = arith.mulf %163, %167 : vector<16x128xf32>
    %c16_i32_61 = arith.constant 16 : i32
    %169 = arith.muli %c3_i32, %c16_i32_61 : i32
    %170 = arith.index_cast %169 : i32 to index
    %c0_62 = arith.constant 0 : index
    %171 = vector.load %arg14[%170, %c0_62] : memref<128x128xf32, #tpu.memory_space<vmem>>, vector<16x128xf32>
    tpu.vector_store %arg14[%170, %c0_62], %168 {strides = array<i32>} : memref<128x128xf32, #tpu.memory_space<vmem>>, vector<16x128xf32>,
    %c4_i32 = arith.constant 4 : i32
    %c16_i32_63 = arith.constant 16 : i32
    %172 = arith.muli %c4_i32, %c16_i32_63 : i32
    %173 = arith.index_cast %172 : i32 to index
    %c0_64 = arith.constant 0 : index
    %174 = vector.load %arg13[%173, %c0_64] : memref<128x512xf32, #tpu.memory_space<vmem>>, vector<16x512xf32>
    %175 = arith.truncf %168 : vector<16x128xf32> to vector<16x128xbf16>
    %c0_65 = arith.constant 0 : index
    %c0_66 = arith.constant 0 : index
    %176 = vector.load %arg7[%c0_65, %c0_66] : memref<128x512xbf16, #tpu.memory_space<vmem>>, vector<128x512xbf16>
    %cst_67 = arith.constant dense<0.000000e+00> : vector<16x512xf32>
    %177 = tpu.matmul %175, %176, %cst_67 {dimension_numbers = #tpu.dot_dimension_numbers<[1], [0], [0], [1], [0, 0, 1, 1], [], []>} : vector<16x128xbf16>, vector<128x512xbf16>, vector<16x512xf32> -> vector<16x512xf32>
    %178 = arith.addf %174, %177 : vector<16x512xf32>
    %179 = vector.extract_strided_slice %178 {offsets = [0, 0], sizes = [16, 128], strides = [1, 1]} : vector<16x512xf32> to vector<16x128xf32>
    %180 = arith.negf %179 : vector<16x128xf32>
    %181 = math.exp %180 : vector<16x128xf32>
    %cst_68 = arith.constant 1.000000e+00 : f32
    %182 = vector.broadcast %cst_68 : f32 to vector<16x128xf32>
    %183 = arith.addf %182, %181 : vector<16x128xf32>
    %184 = arith.divf %182, %183 : vector<16x128xf32>
    %185 = vector.extract_strided_slice %178 {offsets = [0, 128], sizes = [16, 128], strides = [1, 1]} : vector<16x512xf32> to vector<16x128xf32>
    %186 = arith.negf %185 : vector<16x128xf32>
    %187 = math.exp %186 : vector<16x128xf32>
    %cst_69 = arith.constant 1.000000e+00 : f32
    %188 = vector.broadcast %cst_69 : f32 to vector<16x128xf32>
    %189 = arith.addf %188, %187 : vector<16x128xf32>
    %190 = arith.divf %188, %189 : vector<16x128xf32>
    %191 = vector.extract_strided_slice %178 {offsets = [0, 256], sizes = [16, 128], strides = [1, 1]} : vector<16x512xf32> to vector<16x128xf32>
    %192 = math.tanh %191 : vector<16x128xf32>
    %193 = vector.extract_strided_slice %178 {offsets = [0, 384], sizes = [16, 128], strides = [1, 1]} : vector<16x512xf32> to vector<16x128xf32>
    %194 = arith.negf %193 : vector<16x128xf32>
    %195 = math.exp %194 : vector<16x128xf32>
    %cst_70 = arith.constant 1.000000e+00 : f32
    %196 = vector.broadcast %cst_70 : f32 to vector<16x128xf32>
    %197 = arith.addf %196, %195 : vector<16x128xf32>
    %198 = arith.divf %196, %197 : vector<16x128xf32>
    %199 = arith.mulf %190, %166 : vector<16x128xf32>
    %200 = arith.mulf %184, %192 : vector<16x128xf32>
    %201 = arith.addf %199, %200 : vector<16x128xf32>
    %202 = math.tanh %201 : vector<16x128xf32>
    %203 = arith.mulf %198, %202 : vector<16x128xf32>
    %c16_i32_71 = arith.constant 16 : i32
    %204 = arith.muli %c4_i32, %c16_i32_71 : i32
    %205 = arith.index_cast %204 : i32 to index
    %c0_72 = arith.constant 0 : index
    %206 = vector.load %arg14[%205, %c0_72] : memref<128x128xf32, #tpu.memory_space<vmem>>, vector<16x128xf32>
    tpu.vector_store %arg14[%205, %c0_72], %203 {strides = array<i32>} : memref<128x128xf32, #tpu.memory_space<vmem>>, vector<16x128xf32>,
    %c5_i32 = arith.constant 5 : i32
    %c16_i32_73 = arith.constant 16 : i32
    %207 = arith.muli %c5_i32, %c16_i32_73 : i32
    %208 = arith.index_cast %207 : i32 to index
    %c0_74 = arith.constant 0 : index
    %209 = vector.load %arg13[%208, %c0_74] : memref<128x512xf32, #tpu.memory_space<vmem>>, vector<16x512xf32>
    %210 = arith.truncf %203 : vector<16x128xf32> to vector<16x128xbf16>
    %c0_75 = arith.constant 0 : index
    %c0_76 = arith.constant 0 : index
    %211 = vector.load %arg7[%c0_75, %c0_76] : memref<128x512xbf16, #tpu.memory_space<vmem>>, vector<128x512xbf16>
    %cst_77 = arith.constant dense<0.000000e+00> : vector<16x512xf32>
    %212 = tpu.matmul %210, %211, %cst_77 {dimension_numbers = #tpu.dot_dimension_numbers<[1], [0], [0], [1], [0, 0, 1, 1], [], []>} : vector<16x128xbf16>, vector<128x512xbf16>, vector<16x512xf32> -> vector<16x512xf32>
    %213 = arith.addf %209, %212 : vector<16x512xf32>
    %214 = vector.extract_strided_slice %213 {offsets = [0, 0], sizes = [16, 128], strides = [1, 1]} : vector<16x512xf32> to vector<16x128xf32>
    %215 = arith.negf %214 : vector<16x128xf32>
    %216 = math.exp %215 : vector<16x128xf32>
    %cst_78 = arith.constant 1.000000e+00 : f32
    %217 = vector.broadcast %cst_78 : f32 to vector<16x128xf32>
    %218 = arith.addf %217, %216 : vector<16x128xf32>
    %219 = arith.divf %217, %218 : vector<16x128xf32>
    %220 = vector.extract_strided_slice %213 {offsets = [0, 128], sizes = [16, 128], strides = [1, 1]} : vector<16x512xf32> to vector<16x128xf32>
    %221 = arith.negf %220 : vector<16x128xf32>
    %222 = math.exp %221 : vector<16x128xf32>
    %cst_79 = arith.constant 1.000000e+00 : f32
    %223 = vector.broadcast %cst_79 : f32 to vector<16x128xf32>
    %224 = arith.addf %223, %222 : vector<16x128xf32>
    %225 = arith.divf %223, %224 : vector<16x128xf32>
    %226 = vector.extract_strided_slice %213 {offsets = [0, 256], sizes = [16, 128], strides = [1, 1]} : vector<16x512xf32> to vector<16x128xf32>
    %227 = math.tanh %226 : vector<16x128xf32>
    %228 = vector.extract_strided_slice %213 {offsets = [0, 384], sizes = [16, 128], strides = [1, 1]} : vector<16x512xf32> to vector<16x128xf32>
    %229 = arith.negf %228 : vector<16x128xf32>
    %230 = math.exp %229 : vector<16x128xf32>
    %cst_80 = arith.constant 1.000000e+00 : f32
    %231 = vector.broadcast %cst_80 : f32 to vector<16x128xf32>
    %232 = arith.addf %231, %230 : vector<16x128xf32>
    %233 = arith.divf %231, %232 : vector<16x128xf32>
    %234 = arith.mulf %225, %201 : vector<16x128xf32>
    %235 = arith.mulf %219, %227 : vector<16x128xf32>
    %236 = arith.addf %234, %235 : vector<16x128xf32>
    %237 = math.tanh %236 : vector<16x128xf32>
    %238 = arith.mulf %233, %237 : vector<16x128xf32>
    %c16_i32_81 = arith.constant 16 : i32
    %239 = arith.muli %c5_i32, %c16_i32_81 : i32
    %240 = arith.index_cast %239 : i32 to index
    %c0_82 = arith.constant 0 : index
    %241 = vector.load %arg14[%240, %c0_82] : memref<128x128xf32, #tpu.memory_space<vmem>>, vector<16x128xf32>
    tpu.vector_store %arg14[%240, %c0_82], %238 {strides = array<i32>} : memref<128x128xf32, #tpu.memory_space<vmem>>, vector<16x128xf32>,
    %c6_i32 = arith.constant 6 : i32
    %c16_i32_83 = arith.constant 16 : i32
    %242 = arith.muli %c6_i32, %c16_i32_83 : i32
    %243 = arith.index_cast %242 : i32 to index
    %c0_84 = arith.constant 0 : index
    %244 = vector.load %arg13[%243, %c0_84] : memref<128x512xf32, #tpu.memory_space<vmem>>, vector<16x512xf32>
    %245 = arith.truncf %238 : vector<16x128xf32> to vector<16x128xbf16>
    %c0_85 = arith.constant 0 : index
    %c0_86 = arith.constant 0 : index
    %246 = vector.load %arg7[%c0_85, %c0_86] : memref<128x512xbf16, #tpu.memory_space<vmem>>, vector<128x512xbf16>
    %cst_87 = arith.constant dense<0.000000e+00> : vector<16x512xf32>
    %247 = tpu.matmul %245, %246, %cst_87 {dimension_numbers = #tpu.dot_dimension_numbers<[1], [0], [0], [1], [0, 0, 1, 1], [], []>} : vector<16x128xbf16>, vector<128x512xbf16>, vector<16x512xf32> -> vector<16x512xf32>
    %248 = arith.addf %244, %247 : vector<16x512xf32>
    %249 = vector.extract_strided_slice %248 {offsets = [0, 0], sizes = [16, 128], strides = [1, 1]} : vector<16x512xf32> to vector<16x128xf32>
    %250 = arith.negf %249 : vector<16x128xf32>
    %251 = math.exp %250 : vector<16x128xf32>
    %cst_88 = arith.constant 1.000000e+00 : f32
    %252 = vector.broadcast %cst_88 : f32 to vector<16x128xf32>
    %253 = arith.addf %252, %251 : vector<16x128xf32>
    %254 = arith.divf %252, %253 : vector<16x128xf32>
    %255 = vector.extract_strided_slice %248 {offsets = [0, 128], sizes = [16, 128], strides = [1, 1]} : vector<16x512xf32> to vector<16x128xf32>
    %256 = arith.negf %255 : vector<16x128xf32>
    %257 = math.exp %256 : vector<16x128xf32>
    %cst_89 = arith.constant 1.000000e+00 : f32
    %258 = vector.broadcast %cst_89 : f32 to vector<16x128xf32>
    %259 = arith.addf %258, %257 : vector<16x128xf32>
    %260 = arith.divf %258, %259 : vector<16x128xf32>
    %261 = vector.extract_strided_slice %248 {offsets = [0, 256], sizes = [16, 128], strides = [1, 1]} : vector<16x512xf32> to vector<16x128xf32>
    %262 = math.tanh %261 : vector<16x128xf32>
    %263 = vector.extract_strided_slice %248 {offsets = [0, 384], sizes = [16, 128], strides = [1, 1]} : vector<16x512xf32> to vector<16x128xf32>
    %264 = arith.negf %263 : vector<16x128xf32>
    %265 = math.exp %264 : vector<16x128xf32>
    %cst_90 = arith.constant 1.000000e+00 : f32
    %266 = vector.broadcast %cst_90 : f32 to vector<16x128xf32>
    %267 = arith.addf %266, %265 : vector<16x128xf32>
    %268 = arith.divf %266, %267 : vector<16x128xf32>
    %269 = arith.mulf %260, %236 : vector<16x128xf32>
    %270 = arith.mulf %254, %262 : vector<16x128xf32>
    %271 = arith.addf %269, %270 : vector<16x128xf32>
    %272 = math.tanh %271 : vector<16x128xf32>
    %273 = arith.mulf %268, %272 : vector<16x128xf32>
    %c16_i32_91 = arith.constant 16 : i32
    %274 = arith.muli %c6_i32, %c16_i32_91 : i32
    %275 = arith.index_cast %274 : i32 to index
    %c0_92 = arith.constant 0 : index
    %276 = vector.load %arg14[%275, %c0_92] : memref<128x128xf32, #tpu.memory_space<vmem>>, vector<16x128xf32>
    tpu.vector_store %arg14[%275, %c0_92], %273 {strides = array<i32>} : memref<128x128xf32, #tpu.memory_space<vmem>>, vector<16x128xf32>,
    %c7_i32 = arith.constant 7 : i32
    %c16_i32_93 = arith.constant 16 : i32
    %277 = arith.muli %c7_i32, %c16_i32_93 : i32
    %278 = arith.index_cast %277 : i32 to index
    %c0_94 = arith.constant 0 : index
    %279 = vector.load %arg13[%278, %c0_94] : memref<128x512xf32, #tpu.memory_space<vmem>>, vector<16x512xf32>
    %280 = arith.truncf %273 : vector<16x128xf32> to vector<16x128xbf16>
    %c0_95 = arith.constant 0 : index
    %c0_96 = arith.constant 0 : index
    %281 = vector.load %arg7[%c0_95, %c0_96] : memref<128x512xbf16, #tpu.memory_space<vmem>>, vector<128x512xbf16>
    %cst_97 = arith.constant dense<0.000000e+00> : vector<16x512xf32>
    %282 = tpu.matmul %280, %281, %cst_97 {dimension_numbers = #tpu.dot_dimension_numbers<[1], [0], [0], [1], [0, 0, 1, 1], [], []>} : vector<16x128xbf16>, vector<128x512xbf16>, vector<16x512xf32> -> vector<16x512xf32>
    %283 = arith.addf %279, %282 : vector<16x512xf32>
    %284 = vector.extract_strided_slice %283 {offsets = [0, 0], sizes = [16, 128], strides = [1, 1]} : vector<16x512xf32> to vector<16x128xf32>
    %285 = arith.negf %284 : vector<16x128xf32>
    %286 = math.exp %285 : vector<16x128xf32>
    %cst_98 = arith.constant 1.000000e+00 : f32
    %287 = vector.broadcast %cst_98 : f32 to vector<16x128xf32>
    %288 = arith.addf %287, %286 : vector<16x128xf32>
    %289 = arith.divf %287, %288 : vector<16x128xf32>
    %290 = vector.extract_strided_slice %283 {offsets = [0, 128], sizes = [16, 128], strides = [1, 1]} : vector<16x512xf32> to vector<16x128xf32>
    %291 = arith.negf %290 : vector<16x128xf32>
    %292 = math.exp %291 : vector<16x128xf32>
    %cst_99 = arith.constant 1.000000e+00 : f32
    %293 = vector.broadcast %cst_99 : f32 to vector<16x128xf32>
    %294 = arith.addf %293, %292 : vector<16x128xf32>
    %295 = arith.divf %293, %294 : vector<16x128xf32>
    %296 = vector.extract_strided_slice %283 {offsets = [0, 256], sizes = [16, 128], strides = [1, 1]} : vector<16x512xf32> to vector<16x128xf32>
    %297 = math.tanh %296 : vector<16x128xf32>
    %298 = vector.extract_strided_slice %283 {offsets = [0, 384], sizes = [16, 128], strides = [1, 1]} : vector<16x512xf32> to vector<16x128xf32>
    %299 = arith.negf %298 : vector<16x128xf32>
    %300 = math.exp %299 : vector<16x128xf32>
    %cst_100 = arith.constant 1.000000e+00 : f32
    %301 = vector.broadcast %cst_100 : f32 to vector<16x128xf32>
    %302 = arith.addf %301, %300 : vector<16x128xf32>
    %303 = arith.divf %301, %302 : vector<16x128xf32>
    %304 = arith.mulf %295, %271 : vector<16x128xf32>
    %305 = arith.mulf %289, %297 : vector<16x128xf32>
    %306 = arith.addf %304, %305 : vector<16x128xf32>
    %307 = math.tanh %306 : vector<16x128xf32>
    %308 = arith.mulf %303, %307 : vector<16x128xf32>
    %c16_i32_101 = arith.constant 16 : i32
    %309 = arith.muli %c7_i32, %c16_i32_101 : i32
    %310 = arith.index_cast %309 : i32 to index
    %c0_102 = arith.constant 0 : index
    %311 = vector.load %arg14[%310, %c0_102] : memref<128x128xf32, #tpu.memory_space<vmem>>, vector<16x128xf32>
    tpu.vector_store %arg14[%310, %c0_102], %308 {strides = array<i32>} : memref<128x128xf32, #tpu.memory_space<vmem>>, vector<16x128xf32>,
    %c8_i32 = arith.constant 8 : i32
    %c0_103 = arith.constant 0 : index
    %c0_104 = arith.constant 0 : index
    %312 = vector.load %arg14[%c0_103, %c0_104] : memref<128x128xf32, #tpu.memory_space<vmem>>, vector<128x128xf32>
    %313 = arith.truncf %312 : vector<128x128xf32> to vector<128x128xbf16>
    %c0_105 = arith.constant 0 : index
    %c0_106 = arith.constant 0 : index
    %314 = vector.load %arg8[%c0_105, %c0_106] : memref<128x128xbf16, #tpu.memory_space<vmem>>, vector<128x128xbf16>
    %cst_107 = arith.constant dense<0.000000e+00> : vector<128x128xf32>
    %315 = tpu.matmul %313, %314, %cst_107 {dimension_numbers = #tpu.dot_dimension_numbers<[1], [0], [0], [1], [0, 0, 1, 1], [], []>} : vector<128x128xbf16>, vector<128x128xbf16>, vector<128x128xf32> -> vector<128x128xf32>
    %316 = vector.broadcast %3 : vector<1x128xf32> to vector<128x128xf32>
    %317 = arith.addf %315, %316 : vector<128x128xf32>
    %c0_108 = arith.constant 0 : index
    %c0_109 = arith.constant 0 : index
    %318 = vector.load %arg10[%c0_108, %c0_109] : memref<128x128xf32, #tpu.memory_space<vmem>>, vector<128x128xf32>
    tpu.vector_store %arg10[%c0_108, %c0_109], %317 {strides = array<i32>} : memref<128x128xf32, #tpu.memory_space<vmem>>, vector<128x128xf32>,
    %c0_110 = arith.constant 0 : index
    %c0_111 = arith.constant 0 : index
    %319 = vector.load %arg11[%c0_110, %c0_111] : memref<16x128xf32, #tpu.memory_space<vmem>>, vector<16x128xf32>
    tpu.vector_store %arg11[%c0_110, %c0_111], %308 {strides = array<i32>} : memref<16x128xf32, #tpu.memory_space<vmem>>, vector<16x128xf32>,
    %c0_112 = arith.constant 0 : index
    %c0_113 = arith.constant 0 : index
    %320 = vector.load %arg12[%c0_112, %c0_113] : memref<16x128xf32, #tpu.memory_space<vmem>>, vector<16x128xf32>
    tpu.vector_store %arg12[%c0_112, %c0_113], %306 {strides = array<i32>} : memref<16x128xf32, #tpu.memory_space<vmem>>, vector<16x128xf32>,
    return
  }
}

</mosaic_0001>

<llo_original>
// kernel: policy_rollout.1
$region0: #{policy_rollout.1}
  #allocation0 [shape = 'u32[]', space=smem, size = 0x4, offset = 0x4, fixed_abs, tag = 'smem constant byte address 0x4 - core index']
  #allocation1 [shape = 'u32[144,128]{1,0:T(1,128)}', space=vmem, size = 0x12000, scoped, tag = 'internal scratch']
  #allocation2 [shape = 'f32[128,512]{1,0:T(8,128)}', space=vmem, size = 0x40000, scoped, tag = 'scratch operand']
  #allocation3 [shape = 'f32[128,128]{1,0:T(8,128)}', space=vmem, size = 0x10000, scoped, tag = 'scratch operand']
  %s0 = inlined_call_operand.vmem [shape: f32[128,1024], index: 0, kind: input, shape index: {}]
  %s1 = inlined_call_operand.vmem [shape: f32[16,128], index: 1, kind: input, shape index: {}]
  %s2 = inlined_call_operand.vmem [shape: f32[16,128], index: 2, kind: input, shape index: {}]
  %s3 = inlined_call_operand.vmem [shape: bf16[1024,128], index: 3, kind: input, shape index: {}]
  %s4 = inlined_call_operand.vmem [shape: bf16[128,128], index: 4, kind: input, shape index: {}]
  %s5 = inlined_call_operand.vmem [shape: bf16[128,128], index: 5, kind: input, shape index: {}]
  %s6 = inlined_call_operand.vmem [shape: bf16[128,512], index: 6, kind: input, shape index: {}]
  %s7 = inlined_call_operand.vmem [shape: bf16[128,512], index: 7, kind: input, shape index: {}]
  %s8 = inlined_call_operand.vmem [shape: bf16[128,128], index: 8, kind: input, shape index: {}]
  %s9 = inlined_call_operand.vmem [shape: f32[1,1024], index: 9, kind: input, shape index: {}]
  %s10 = inlined_call_operand.vmem [shape: f32[128,128], index: 10, kind: output, shape index: {0}]
  %s11 = inlined_call_operand.hbm [shape: f32[16,128], index: 11, kind: output, shape index: {1}]
  %s12 = inlined_call_operand.hbm [shape: f32[16,128], index: 12, kind: output, shape index: {2}]
  %13 = xla_tuple %s10, %s11, %s12
  %s14 = sld [smem:[#allocation0]]
  $region66: #{policy_rollout.1} parent=0
    _
  %s16 = ssub.s32 1, %s14
  %s17 = scalar_select 0, %s16, %s14
  $region1: #{policy_rollout.1} parent=0
    #allocation4 [shape = 'u8[8192]{0}', space=vmem, size = 0x2000, scoped, tag = 'output window, operand 1, single buffered']
    #allocation5 [shape = 's32[1]{0}', space=sflag, size = 0x4, scoped, tag = 'scoped memory for policy_rollout.1']
    #allocation6 [shape = 'u8[8192]{0}', space=vmem, size = 0x2000, scoped, tag = 'output window, operand 2, single buffered']
    #allocation7 [shape = 's32[1]{0}', space=sflag, size = 0x4, scoped, tag = 'scoped memory for policy_rollout.1']
    %18 = vsyncpa [#allocation5], 0
    %19 = vsyncpa [#allocation7], 0
    // Predicated region
    $region2: #{policy_rollout.1} parent=1 // pred_check
      _
    $region3: #{policy_rollout.1} parent=1 // pred_check_branch
      %21 = sbr.rel (0) target = $region5
    $region4: #{policy_rollout.1} parent=1 // pred_region
      _
    $region5: #{policy_rollout.1} parent=1 // pred_fallthru
      _
    // Predicated region
    $region6: #{policy_rollout.1} parent=1 // pred_check
      _
    $region7: #{policy_rollout.1} parent=1 // pred_check_branch
      %23 = sbr.rel (0) target = $region9
    $region8: #{policy_rollout.1} parent=1 // pred_region
      _
    $region9: #{policy_rollout.1} parent=1 // pred_fallthru
      _
    // Predicated region
    $region10: #{policy_rollout.1} parent=1 // pred_check
      _
    $region11: #{policy_rollout.1} parent=1 // pred_check_branch
      %25 = sbr.rel (0) target = $region13
    $region12: #{policy_rollout.1} parent=1 // pred_region
      _
    $region13: #{policy_rollout.1} parent=1 // pred_fallthru
      _
    // Predicated region
    $region14: #{policy_rollout.1} parent=1 // pred_check
      _
    $region15: #{policy_rollout.1} parent=1 // pred_check_branch
      %27 = sbr.rel (0) target = $region17
    $region16: #{policy_rollout.1} parent=1 // pred_region
      _
    $region17: #{policy_rollout.1} parent=1 // pred_fallthru
      _
    // Predicated region
    $region18: #{policy_rollout.1} parent=1 // pred_check
      _
    $region19: #{policy_rollout.1} parent=1 // pred_check_branch
      %29 = sbr.rel (0) target = $region21
    $region20: #{policy_rollout.1} parent=1 // pred_region
      _
    $region21: #{policy_rollout.1} parent=1 // pred_fallthru
      _
    // Predicated region
    $region22: #{policy_rollout.1} parent=1 // pred_check
      _
    $region23: #{policy_rollout.1} parent=1 // pred_check_branch
      %31 = sbr.rel (0) target = $region25
    $region24: #{policy_rollout.1} parent=1 // pred_region
      _
    $region25: #{policy_rollout.1} parent=1 // pred_fallthru
      _
    // Predicated region
    $region26: #{policy_rollout.1} parent=1 // pred_check
      _
    $region27: #{policy_rollout.1} parent=1 // pred_check_branch
      %33 = sbr.rel (0) target = $region29
    $region28: #{policy_rollout.1} parent=1 // pred_region
      _
    $region29: #{policy_rollout.1} parent=1 // pred_fallthru
      _
    // Predicated region
    $region30: #{policy_rollout.1} parent=1 // pred_check
      _
    $region31: #{policy_rollout.1} parent=1 // pred_check_branch
      %35 = sbr.rel (0) target = $region33
    $region32: #{policy_rollout.1} parent=1 // pred_region
      _
    $region33: #{policy_rollout.1} parent=1 // pred_fallthru
      _
    // Predicated region
    $region34: #{policy_rollout.1} parent=1 // pred_check
      _
    $region35: #{policy_rollout.1} parent=1 // pred_check_branch
      %37 = sbr.rel (0) target = $region37
    $region36: #{policy_rollout.1} parent=1 // pred_region
      _
    $region37: #{policy_rollout.1} parent=1 // pred_fallthru
      _
    // Predicated region
    $region38: #{policy_rollout.1} parent=1 // pred_check
      _
    $region39: #{policy_rollout.1} parent=1 // pred_check_branch
      %39 = sbr.rel (0) target = $region41
    $region40: #{policy_rollout.1} parent=1 // pred_region
      _
    $region41: #{policy_rollout.1} parent=1 // pred_fallthru
      _
    %v41 = vld [vmem:[%s9] sm:$0x1]
    %v42 = vld [vmem:[%s9 + $0x1] sm:$0x1]
    %v43 = vld [vmem:[%s9 + $0x2] sm:$0x1]
    %v44 = vld [vmem:[%s9 + $0x3] sm:$0x1]
    %v45 = vld [vmem:[%s9 + $0x4] sm:$0xf]
    %v46 = vld [vmem:[%s0] sm:$0xff]
    %v47 = vld [vmem:[%s0 + $0x8] sm:$0xff]
    %v48 = vld [vmem:[%s0 + $0x10] sm:$0xff]
    %v49 = vld [vmem:[%s0 + $0x18] sm:$0xff]
    %v50 = vld [vmem:[%s0 + $0x20] sm:$0xff]
    %v51 = vld [vmem:[%s0 + $0x28] sm:$0xff]
    %v52 = vld [vmem:[%s0 + $0x30] sm:$0xff]
    %v53 = vld [vmem:[%s0 + $0x38] sm:$0xff]
    %v54 = vld [vmem:[%s0 + $0x40] sm:$0xff]
    %v55 = vld [vmem:[%s0 + $0x48] sm:$0xff]
    %v56 = vld [vmem:[%s0 + $0x50] sm:$0xff]
    %v57 = vld [vmem:[%s0 + $0x58] sm:$0xff]
    %v58 = vld [vmem:[%s0 + $0x60] sm:$0xff]
    %v59 = vld [vmem:[%s0 + $0x68] sm:$0xff]
    %v60 = vld [vmem:[%s0 + $0x70] sm:$0xff]
    %v61 = vld [vmem:[%s0 + $0x78] sm:$0xff]
    %v62 = vld [vmem:[%s0 + $0x80] sm:$0xff]
    %v63 = vld [vmem:[%s0 + $0x88] sm:$0xff]
    %v64 = vld [vmem:[%s0 + $0x90] sm:$0xff]
    %v65 = vld [vmem:[%s0 + $0x98] sm:$0xff]
    %v66 = vld [vmem:[%s0 + $0xa0] sm:$0xff]
    %v67 = vld [vmem:[%s0 + $0xa8] sm:$0xff]
    %v68 = vld [vmem:[%s0 + $0xb0] sm:$0xff]
    %v69 = vld [vmem:[%s0 + $0xb8] sm:$0xff]
    %v70 = vld [vmem:[%s0 + $0xc0] sm:$0xff]
    %v71 = vld [vmem:[%s0 + $0xc8] sm:$0xff]
    %v72 = vld [vmem:[%s0 + $0xd0] sm:$0xff]
    %v73 = vld [vmem:[%s0 + $0xd8] sm:$0xff]
    %v74 = vld [vmem:[%s0 + $0xe0] sm:$0xff]
    %v75 = vld [vmem:[%s0 + $0xe8] sm:$0xff]
    %v76 = vld [vmem:[%s0 + $0xf0] sm:$0xff]
    %v77 = vld [vmem:[%s0 + $0xf8] sm:$0xff]
    %v78 = vld [vmem:[%s0 + $0x100] sm:$0xff]
    %v79 = vld [vmem:[%s0 + $0x108] sm:$0xff]
    %v80 = vld [vmem:[%s0 + $0x110] sm:$0xff]
    %v81 = vld [vmem:[%s0 + $0x118] sm:$0xff]
    %v82 = vld [vmem:[%s0 + $0x120] sm:$0xff]
    %v83 = vld [vmem:[%s0 + $0x128] sm:$0xff]
    %v84 = vld [vmem:[%s0 + $0x130] sm:$0xff]
    %v85 = vld [vmem:[%s0 + $0x138] sm:$0xff]
    %v86 = vld [vmem:[%s0 + $0x140] sm:$0xff]
    %v87 = vld [vmem:[%s0 + $0x148] sm:$0xff]
    %v88 = vld [vmem:[%s0 + $0x150] sm:$0xff]
    %v89 = vld [vmem:[%s0 + $0x158] sm:$0xff]
    %v90 = vld [vmem:[%s0 + $0x160] sm:$0xff]
    %v91 = vld [vmem:[%s0 + $0x168] sm:$0xff]
    %v92 = vld [vmem:[%s0 + $0x170] sm:$0xff]
    %v93 = vld [vmem:[%s0 + $0x178] sm:$0xff]
    %v94 = vld [vmem:[%s0 + $0x180] sm:$0xff]
    %v95 = vld [vmem:[%s0 + $0x188] sm:$0xff]
    %v96 = vld [vmem:[%s0 + $0x190] sm:$0xff]
    %v97 = vld [vmem:[%s0 + $0x198] sm:$0xff]
    %v98 = vld [vmem:[%s0 + $0x1a0] sm:$0xff]
    %v99 = vld [vmem:[%s0 + $0x1a8] sm:$0xff]
    %v100 = vld [vmem:[%s0 + $0x1b0] sm:$0xff]
    %v101 = vld [vmem:[%s0 + $0x1b8] sm:$0xff]
    %v102 = vld [vmem:[%s0 + $0x1c0] sm:$0xff]
    %v103 = vld [vmem:[%s0 + $0x1c8] sm:$0xff]
    %v104 = vld [vmem:[%s0 + $0x1d0] sm:$0xff]
    %v105 = vld [vmem:[%s0 + $0x1d8] sm:$0xff]
    %v106 = vld [vmem:[%s0 + $0x1e0] sm:$0xff]
    %v107 = vld [vmem:[%s0 + $0x1e8] sm:$0xff]
    %v108 = vld [vmem:[%s0 + $0x1f0] sm:$0xff]
    %v109 = vld [vmem:[%s0 + $0x1f8] sm:$0xff]
    %v110 = vld [vmem:[%s0 + $0x200] sm:$0xff]
    %v111 = vld [vmem:[%s0 + $0x208] sm:$0xff]
    %v112 = vld [vmem:[%s0 + $0x210] sm:$0xff]
    %v113 = vld [vmem:[%s0 + $0x218] sm:$0xff]
    %v114 = vld [vmem:[%s0 + $0x220] sm:$0xff]
    %v115 = vld [vmem:[%s0 + $0x228] sm:$0xff]
    %v116 = vld [vmem:[%s0 + $0x230] sm:$0xff]
    %v117 = vld [vmem:[%s0 + $0x238] sm:$0xff]
    %v118 = vld [vmem:[%s0 + $0x240] sm:$0xff]
    %v119 = vld [vmem:[%s0 + $0x248] sm:$0xff]
    %v120 = vld [vmem:[%s0 + $0x250] sm:$0xff]
    %v121 = vld [vmem:[%s0 + $0x258] sm:$0xff]
    %v122 = vld [vmem:[%s0 + $0x260] sm:$0xff]
    %v123 = vld [vmem:[%s0 + $0x268] sm:$0xff]
    %v124 = vld [vmem:[%s0 + $0x270] sm:$0xff]
    %v125 = vld [vmem:[%s0 + $0x278] sm:$0xff]
    %v126 = vld [vmem:[%s0 + $0x280] sm:$0xff]
    %v127 = vld [vmem:[%s0 + $0x288] sm:$0xff]
    %v128 = vld [vmem:[%s0 + $0x290] sm:$0xff]
    %v129 = vld [vmem:[%s0 + $0x298] sm:$0xff]
    %v130 = vld [vmem:[%s0 + $0x2a0] sm:$0xff]
    %v131 = vld [vmem:[%s0 + $0x2a8] sm:$0xff]
    %v132 = vld [vmem:[%s0 + $0x2b0] sm:$0xff]
    %v133 = vld [vmem:[%s0 + $0x2b8] sm:$0xff]
    %v134 = vld [vmem:[%s0 + $0x2c0] sm:$0xff]
    %v135 = vld [vmem:[%s0 + $0x2c8] sm:$0xff]
    %v136 = vld [vmem:[%s0 + $0x2d0] sm:$0xff]
    %v137 = vld [vmem:[%s0 + $0x2d8] sm:$0xff]
    %v138 = vld [vmem:[%s0 + $0x2e0] sm:$0xff]
    %v139 = vld [vmem:[%s0 + $0x2e8] sm:$0xff]
    %v140 = vld [vmem:[%s0 + $0x2f0] sm:$0xff]
    %v141 = vld [vmem:[%s0 + $0x2f8] sm:$0xff]
    %v142 = vld [vmem:[%s0 + $0x300] sm:$0xff]
    %v143 = vld [vmem:[%s0 + $0x308] sm:$0xff]
    %v144 = vld [vmem:[%s0 + $0x310] sm:$0xff]
    %v145 = vld [vmem:[%s0 + $0x318] sm:$0xff]
    %v146 = vld [vmem:[%s0 + $0x320] sm:$0xff]
    %v147 = vld [vmem:[%s0 + $0x328] sm:$0xff]
    %v148 = vld [vmem:[%s0 + $0x330] sm:$0xff]
    %v149 = vld [vmem:[%s0 + $0x338] sm:$0xff]
    %v150 = vld [vmem:[%s0 + $0x340] sm:$0xff]
    %v151 = vld [vmem:[%s0 + $0x348] sm:$0xff]
    %v152 = vld [vmem:[%s0 + $0x350] sm:$0xff]
    %v153 = vld [vmem:[%s0 + $0x358] sm:$0xff]
    %v154 = vld [vmem:[%s0 + $0x360] sm:$0xff]
    %v155 = vld [vmem:[%s0 + $0x368] sm:$0xff]
    %v156 = vld [vmem:[%s0 + $0x370] sm:$0xff]
    %v157 = vld [vmem:[%s0 + $0x378] sm:$0xff]
    %v158 = vld [vmem:[%s0 + $0x380] sm:$0xff]
    %v159 = vld [vmem:[%s0 + $0x388] sm:$0xff]
    %v160 = vld [vmem:[%s0 + $0x390] sm:$0xff]
    %v161 = vld [vmem:[%s0 + $0x398] sm:$0xff]
    %v162 = vld [vmem:[%s0 + $0x3a0] sm:$0xff]
    %v163 = vld [vmem:[%s0 + $0x3a8] sm:$0xff]
    %v164 = vld [vmem:[%s0 + $0x3b0] sm:$0xff]
    %v165 = vld [vmem:[%s0 + $0x3b8] sm:$0xff]
    %v166 = vld [vmem:[%s0 + $0x3c0] sm:$0xff]
    %v167 = vld [vmem:[%s0 + $0x3c8] sm:$0xff]
    %v168 = vld [vmem:[%s0 + $0x3d0] sm:$0xff]
    %v169 = vld [vmem:[%s0 + $0x3d8] sm:$0xff]
    %v170 = vld [vmem:[%s0 + $0x3e0] sm:$0xff]
    %v171 = vld [vmem:[%s0 + $0x3e8] sm:$0xff]
    %v172 = vld [vmem:[%s0 + $0x3f0] sm:$0xff]
    %v173 = vld [vmem:[%s0 + $0x3f8] sm:$0xff]
    %v174 = vpack.c.bf16 %v54, %v46
    %v175 = vpack.c.bf16 %v55, %v47
    %v176 = vpack.c.bf16 %v56, %v48
    %v177 = vpack.c.bf16 %v57, %v49
    %v178 = vpack.c.bf16 %v58, %v50
    %v179 = vpack.c.bf16 %v59, %v51
    %v180 = vpack.c.bf16 %v60, %v52
    %v181 = vpack.c.bf16 %v61, %v53
    %v182 = vpack.c.bf16 %v70, %v62
    %v183 = vpack.c.bf16 %v71, %v63
    %v184 = vpack.c.bf16 %v72, %v64
    %v185 = vpack.c.bf16 %v73, %v65
    %v186 = vpack.c.bf16 %v74, %v66
    %v187 = vpack.c.bf16 %v75, %v67
    %v188 = vpack.c.bf16 %v76, %v68
    %v189 = vpack.c.bf16 %v77, %v69
    %v190 = vpack.c.bf16 %v86, %v78
    %v191 = vpack.c.bf16 %v87, %v79
    %v192 = vpack.c.bf16 %v88, %v80
    %v193 = vpack.c.bf16 %v89, %v81
    %v194 = vpack.c.bf16 %v90, %v82
    %v195 = vpack.c.bf16 %v91, %v83
    %v196 = vpack.c.bf16 %v92, %v84
    %v197 = vpack.c.bf16 %v93, %v85
    %v198 = vpack.c.bf16 %v102, %v94
    %v199 = vpack.c.bf16 %v103, %v95
    %v200 = vpack.c.bf16 %v104, %v96
    %v201 = vpack.c.bf16 %v105, %v97
    %v202 = vpack.c.bf16 %v106, %v98
    %v203 = vpack.c.bf16 %v107, %v99
    %v204 = vpack.c.bf16 %v108, %v100
    %v205 = vpack.c.bf16 %v109, %v101
    %v206 = vpack.c.bf16 %v118, %v110
    %v207 = vpack.c.bf16 %v119, %v111
    %v208 = vpack.c.bf16 %v120, %v112
    %v209 = vpack.c.bf16 %v121, %v113
    %v210 = vpack.c.bf16 %v122, %v114
    %v211 = vpack.c.bf16 %v123, %v115
    %v212 = vpack.c.bf16 %v124, %v116
    %v213 = vpack.c.bf16 %v125, %v117
    %v214 = vpack.c.bf16 %v134, %v126
    %v215 = vpack.c.bf16 %v135, %v127
    %v216 = vpack.c.bf16 %v136, %v128
    %v217 = vpack.c.bf16 %v137, %v129
    %v218 = vpack.c.bf16 %v138, %v130
    %v219 = vpack.c.bf16 %v139, %v131
    %v220 = vpack.c.bf16 %v140, %v132
    %v221 = vpack.c.bf16 %v141, %v133
    %v222 = vpack.c.bf16 %v150, %v142
    %v223 = vpack.c.bf16 %v151, %v143
    %v224 = vpack.c.bf16 %v152, %v144
    %v225 = vpack.c.bf16 %v153, %v145
    %v226 = vpack.c.bf16 %v154, %v146
    %v227 = vpack.c.bf16 %v155, %v147
    %v228 = vpack.c.bf16 %v156, %v148
    %v229 = vpack.c.bf16 %v157, %v149
    %v230 = vpack.c.bf16 %v166, %v158
    %v231 = vpack.c.bf16 %v167, %v159
    %v232 = vpack.c.bf16 %v168, %v160
    %v233 = vpack.c.bf16 %v169, %v161
    %v234 = vpack.c.bf16 %v170, %v162
    %v235 = vpack.c.bf16 %v171, %v163
    %v236 = vpack.c.bf16 %v172, %v164
    %v237 = vpack.c.bf16 %v173, %v165
    %v238 = vld [vmem:[%s3] sm:$0xf]
    %v239 = vld [vmem:[%s3 + $0x4] sm:$0xf]
    %v240 = vld [vmem:[%s3 + $0x8] sm:$0xf]
    %v241 = vld [vmem:[%s3 + $0xc] sm:$0xf]
    %v242 = vld [vmem:[%s3 + $0x10] sm:$0xf]
    %v243 = vld [vmem:[%s3 + $0x14] sm:$0xf]
    %v244 = vld [vmem:[%s3 + $0x18] sm:$0xf]
    %v245 = vld [vmem:[%s3 + $0x1c] sm:$0xf]
    %v246 = vld [vmem:[%s3 + $0x20] sm:$0xf]
    %v247 = vld [vmem:[%s3 + $0x24] sm:$0xf]
    %v248 = vld [vmem:[%s3 + $0x28] sm:$0xf]
    %v249 = vld [vmem:[%s3 + $0x2c] sm:$0xf]
    %v250 = vld [vmem:[%s3 + $0x30] sm:$0xf]
    %v251 = vld [vmem:[%s3 + $0x34] sm:$0xf]
    %v252 = vld [vmem:[%s3 + $0x38] sm:$0xf]
    %v253 = vld [vmem:[%s3 + $0x3c] sm:$0xf]
    %v254 = vld [vmem:[%s3 + $0x40] sm:$0xf]
    %v255 = vld [vmem:[%s3 + $0x44] sm:$0xf]
    %v256 = vld [vmem:[%s3 + $0x48] sm:$0xf]
    %v257 = vld [vmem:[%s3 + $0x4c] sm:$0xf]
    %v258 = vld [vmem:[%s3 + $0x50] sm:$0xf]
    %v259 = vld [vmem:[%s3 + $0x54] sm:$0xf]
    %v260 = vld [vmem:[%s3 + $0x58] sm:$0xf]
    %v261 = vld [vmem:[%s3 + $0x5c] sm:$0xf]
    %v262 = vld [vmem:[%s3 + $0x60] sm:$0xf]
    %v263 = vld [vmem:[%s3 + $0x64] sm:$0xf]
    %v264 = vld [vmem:[%s3 + $0x68] sm:$0xf]
    %v265 = vld [vmem:[%s3 + $0x6c] sm:$0xf]
    %v266 = vld [vmem:[%s3 + $0x70] sm:$0xf]
    %v267 = vld [vmem:[%s3 + $0x74] sm:$0xf]
    %v268 = vld [vmem:[%s3 + $0x78] sm:$0xf]
    %v269 = vld [vmem:[%s3 + $0x7c] sm:$0xf]
    %v270 = vld [vmem:[%s3 + $0x80] sm:$0xf]
    %v271 = vld [vmem:[%s3 + $0x84] sm:$0xf]
    %v272 = vld [vmem:[%s3 + $0x88] sm:$0xf]
    %v273 = vld [vmem:[%s3 + $0x8c] sm:$0xf]
    %v274 = vld [vmem:[%s3 + $0x90] sm:$0xf]
    %v275 = vld [vmem:[%s3 + $0x94] sm:$0xf]
    %v276 = vld [vmem:[%s3 + $0x98] sm:$0xf]
    %v277 = vld [vmem:[%s3 + $0x9c] sm:$0xf]
    %v278 = vld [vmem:[%s3 + $0xa0] sm:$0xf]
    %v279 = vld [vmem:[%s3 + $0xa4] sm:$0xf]
    %v280 = vld [vmem:[%s3 + $0xa8] sm:$0xf]
    %v281 = vld [vmem:[%s3 + $0xac] sm:$0xf]
    %v282 = vld [vmem:[%s3 + $0xb0] sm:$0xf]
    %v283 = vld [vmem:[%s3 + $0xb4] sm:$0xf]
    %v284 = vld [vmem:[%s3 + $0xb8] sm:$0xf]
    %v285 = vld [vmem:[%s3 + $0xbc] sm:$0xf]
    %v286 = vld [vmem:[%s3 + $0xc0] sm:$0xf]
    %v287 = vld [vmem:[%s3 + $0xc4] sm:$0xf]
    %v288 = vld [vmem:[%s3 + $0xc8] sm:$0xf]
    %v289 = vld [vmem:[%s3 + $0xcc] sm:$0xf]
    %v290 = vld [vmem:[%s3 + $0xd0] sm:$0xf]
    %v291 = vld [vmem:[%s3 + $0xd4] sm:$0xf]
    %v292 = vld [vmem:[%s3 + $0xd8] sm:$0xf]
    %v293 = vld [vmem:[%s3 + $0xdc] sm:$0xf]
    %v294 = vld [vmem:[%s3 + $0xe0] sm:$0xf]
    %v295 = vld [vmem:[%s3 + $0xe4] sm:$0xf]
    %v296 = vld [vmem:[%s3 + $0xe8] sm:$0xf]
    %v297 = vld [vmem:[%s3 + $0xec] sm:$0xf]
    %v298 = vld [vmem:[%s3 + $0xf0] sm:$0xf]
    %v299 = vld [vmem:[%s3 + $0xf4] sm:$0xf]
    %v300 = vld [vmem:[%s3 + $0xf8] sm:$0xf]
    %v301 = vld [vmem:[%s3 + $0xfc] sm:$0xf]
    %v302 = vld [vmem:[%s3 + $0x100] sm:$0xf]
    %v303 = vld [vmem:[%s3 + $0x104] sm:$0xf]
    %v304 = vld [vmem:[%s3 + $0x108] sm:$0xf]
    %v305 = vld [vmem:[%s3 + $0x10c] sm:$0xf]
    %v306 = vld [vmem:[%s3 + $0x110] sm:$0xf]
    %v307 = vld [vmem:[%s3 + $0x114] sm:$0xf]
    %v308 = vld [vmem:[%s3 + $0x118] sm:$0xf]
    %v309 = vld [vmem:[%s3 + $0x11c] sm:$0xf]
    %v310 = vld [vmem:[%s3 + $0x120] sm:$0xf]
    %v311 = vld [vmem:[%s3 + $0x124] sm:$0xf]
    %v312 = vld [vmem:[%s3 + $0x128] sm:$0xf]
    %v313 = vld [vmem:[%s3 + $0x12c] sm:$0xf]
    %v314 = vld [vmem:[%s3 + $0x130] sm:$0xf]
    %v315 = vld [vmem:[%s3 + $0x134] sm:$0xf]
    %v316 = vld [vmem:[%s3 + $0x138] sm:$0xf]
    %v317 = vld [vmem:[%s3 + $0x13c] sm:$0xf]
    %v318 = vld [vmem:[%s3 + $0x140] sm:$0xf]
    %v319 = vld [vmem:[%s3 + $0x144] sm:$0xf]
    %v320 = vld [vmem:[%s3 + $0x148] sm:$0xf]
    %v321 = vld [vmem:[%s3 + $0x14c] sm:$0xf]
    %v322 = vld [vmem:[%s3 + $0x150] sm:$0xf]
    %v323 = vld [vmem:[%s3 + $0x154] sm:$0xf]
    %v324 = vld [vmem:[%s3 + $0x158] sm:$0xf]
    %v325 = vld [vmem:[%s3 + $0x15c] sm:$0xf]
    %v326 = vld [vmem:[%s3 + $0x160] sm:$0xf]
    %v327 = vld [vmem:[%s3 + $0x164] sm:$0xf]
    %v328 = vld [vmem:[%s3 + $0x168] sm:$0xf]
    %v329 = vld [vmem:[%s3 + $0x16c] sm:$0xf]
    %v330 = vld [vmem:[%s3 + $0x170] sm:$0xf]
    %v331 = vld [vmem:[%s3 + $0x174] sm:$0xf]
    %v332 = vld [vmem:[%s3 + $0x178] sm:$0xf]
    %v333 = vld [vmem:[%s3 + $0x17c] sm:$0xf]
    %v334 = vld [vmem:[%s3 + $0x180] sm:$0xf]
    %v335 = vld [vmem:[%s3 + $0x184] sm:$0xf]
    %v336 = vld [vmem:[%s3 + $0x188] sm:$0xf]
    %v337 = vld [vmem:[%s3 + $0x18c] sm:$0xf]
    %v338 = vld [vmem:[%s3 + $0x190] sm:$0xf]
    %v339 = vld [vmem:[%s3 + $0x194] sm:$0xf]
    %v340 = vld [vmem:[%s3 + $0x198] sm:$0xf]
    %v341 = vld [vmem:[%s3 + $0x19c] sm:$0xf]
    %v342 = vld [vmem:[%s3 + $0x1a0] sm:$0xf]
    %v343 = vld [vmem:[%s3 + $0x1a4] sm:$0xf]
    %v344 = vld [vmem:[%s3 + $0x1a8] sm:$0xf]
    %v345 = vld [vmem:[%s3 + $0x1ac] sm:$0xf]
    %v346 = vld [vmem:[%s3 + $0x1b0] sm:$0xf]
    %v347 = vld [vmem:[%s3 + $0x1b4] sm:$0xf]
    %v348 = vld [vmem:[%s3 + $0x1b8] sm:$0xf]
    %v349 = vld [vmem:[%s3 + $0x1bc] sm:$0xf]
    %v350 = vld [vmem:[%s3 + $0x1c0] sm:$0xf]
    %v351 = vld [vmem:[%s3 + $0x1c4] sm:$0xf]
    %v352 = vld [vmem:[%s3 + $0x1c8] sm:$0xf]
    %v353 = vld [vmem:[%s3 + $0x1cc] sm:$0xf]
    %v354 = vld [vmem:[%s3 + $0x1d0] sm:$0xf]
    %v355 = vld [vmem:[%s3 + $0x1d4] sm:$0xf]
    %v356 = vld [vmem:[%s3 + $0x1d8] sm:$0xf]
    %v357 = vld [vmem:[%s3 + $0x1dc] sm:$0xf]
    %v358 = vld [vmem:[%s3 + $0x1e0] sm:$0xf]
    %v359 = vld [vmem:[%s3 + $0x1e4] sm:$0xf]
    %v360 = vld [vmem:[%s3 + $0x1e8] sm:$0xf]
    %v361 = vld [vmem:[%s3 + $0x1ec] sm:$0xf]
    %v362 = vld [vmem:[%s3 + $0x1f0] sm:$0xf]
    %v363 = vld [vmem:[%s3 + $0x1f4] sm:$0xf]
    %v364 = vld [vmem:[%s3 + $0x1f8] sm:$0xf]
    %v365 = vld [vmem:[%s3 + $0x1fc] sm:$0xf]
    %v367 = vlaneseq
    %v368 = vshrl.u32 %v367, 7
    %v369 = vsub.s32 0, %v368
    %v370 = vrot.slane %v41, %v369
    %v500 = vunpack.c.l.b16 %v238
    %v501 = vunpack.c.l.b16 %v239
    %v502 = vunpack.c.l.b16 %v240
    %v503 = vunpack.c.l.b16 %v241
    %v504 = vunpack.c.l.b16 %v242
    %v505 = vunpack.c.l.b16 %v243
    %v506 = vunpack.c.l.b16 %v244
    %v507 = vunpack.c.l.b16 %v245
    %v508 = vunpack.c.l.b16 %v246
    %v509 = vunpack.c.l.b16 %v247
    %v510 = vunpack.c.l.b16 %v248
    %v511 = vunpack.c.l.b16 %v249
    %v512 = vunpack.c.l.b16 %v250
    %v513 = vunpack.c.l.b16 %v251
    %v514 = vunpack.c.l.b16 %v252
    %v515 = vunpack.c.l.b16 %v253
    %v516 = vunpack.c.l.b16 %v254
    %v517 = vunpack.c.l.b16 %v255
    %v518 = vunpack.c.l.b16 %v256
    %v519 = vunpack.c.l.b16 %v257
    %v520 = vunpack.c.l.b16 %v258
    %v521 = vunpack.c.l.b16 %v259
    %v522 = vunpack.c.l.b16 %v260
    %v523 = vunpack.c.l.b16 %v261
    %v524 = vunpack.c.l.b16 %v262
    %v525 = vunpack.c.l.b16 %v263
    %v526 = vunpack.c.l.b16 %v264
    %v527 = vunpack.c.l.b16 %v265
    %v528 = vunpack.c.l.b16 %v266
    %v529 = vunpack.c.l.b16 %v267
    %v530 = vunpack.c.l.b16 %v268
    %v531 = vunpack.c.l.b16 %v269
    %v532 = vunpack.c.l.b16 %v270
    %v533 = vunpack.c.l.b16 %v271
    %v534 = vunpack.c.l.b16 %v272
    %v535 = vunpack.c.l.b16 %v273
    %v536 = vunpack.c.l.b16 %v274
    %v537 = vunpack.c.l.b16 %v275
    %v538 = vunpack.c.l.b16 %v276
    %v539 = vunpack.c.l.b16 %v277
    %v540 = vunpack.c.l.b16 %v278
    %v541 = vunpack.c.l.b16 %v279
    %v542 = vunpack.c.l.b16 %v280
    %v543 = vunpack.c.l.b16 %v281
    %v544 = vunpack.c.l.b16 %v282
    %v545 = vunpack.c.l.b16 %v283
    %v546 = vunpack.c.l.b16 %v284
    %v547 = vunpack.c.l.b16 %v285
    %v548 = vunpack.c.l.b16 %v286
    %v549 = vunpack.c.l.b16 %v287
    %v550 = vunpack.c.l.b16 %v288
    %v551 = vunpack.c.l.b16 %v289
    %v552 = vunpack.c.l.b16 %v290
    %v553 = vunpack.c.l.b16 %v291
    %v554 = vunpack.c.l.b16 %v292
    %v555 = vunpack.c.l.b16 %v293
    %v556 = vunpack.c.l.b16 %v294
    %v557 = vunpack.c.l.b16 %v295
    %v558 = vunpack.c.l.b16 %v296
    %v559 = vunpack.c.l.b16 %v297
    %v560 = vunpack.c.l.b16 %v298
    %v561 = vunpack.c.l.b16 %v299
    %v562 = vunpack.c.l.b16 %v300
    %v563 = vunpack.c.l.b16 %v301
    %v564 = vunpack.c.l.b16 %v302
    %v565 = vunpack.c.l.b16 %v303
    %v566 = vunpack.c.l.b16 %v304
    %v567 = vunpack.c.l.b16 %v305
    %v568 = vunpack.c.l.b16 %v306
    %v569 = vunpack.c.l.b16 %v307
    %v570 = vunpack.c.l.b16 %v308
    %v571 = vunpack.c.l.b16 %v309
    %v572 = vunpack.c.l.b16 %v310
    %v573 = vunpack.c.l.b16 %v311
    %v574 = vunpack.c.l.b16 %v312
    %v575 = vunpack.c.l.b16 %v313
    %v576 = vunpack.c.l.b16 %v314
    %v577 = vunpack.c.l.b16 %v315
    %v578 = vunpack.c.l.b16 %v316
    %v579 = vunpack.c.l.b16 %v317
    %v580 = vunpack.c.l.b16 %v318
    %v581 = vunpack.c.l.b16 %v319
    %v582 = vunpack.c.l.b16 %v320
    %v583 = vunpack.c.l.b16 %v321
    %v584 = vunpack.c.l.b16 %v322
    %v585 = vunpack.c.l.b16 %v323
    %v586 = vunpack.c.l.b16 %v324
    %v587 = vunpack.c.l.b16 %v325
    %v588 = vunpack.c.l.b16 %v326
    %v589 = vunpack.c.l.b16 %v327
    %v590 = vunpack.c.l.b16 %v328
    %v591 = vunpack.c.l.b16 %v329
    %v592 = vunpack.c.l.b16 %v330
    %v593 = vunpack.c.l.b16 %v331
    %v594 = vunpack.c.l.b16 %v332
    %v595 = vunpack.c.l.b16 %v333
    %v596 = vunpack.c.l.b16 %v334
    %v597 = vunpack.c.l.b16 %v335
    %v598 = vunpack.c.l.b16 %v336
    %v599 = vunpack.c.l.b16 %v337
    %v600 = vunpack.c.l.b16 %v338
    %v601 = vunpack.c.l.b16 %v339
    %v602 = vunpack.c.l.b16 %v340
    %v603 = vunpack.c.l.b16 %v341
    %v604 = vunpack.c.l.b16 %v342
    %v605 = vunpack.c.l.b16 %v343
    %v606 = vunpack.c.l.b16 %v344
    %v607 = vunpack.c.l.b16 %v345
    %v608 = vunpack.c.l.b16 %v346
    %v609 = vunpack.c.l.b16 %v347
    %v610 = vunpack.c.l.b16 %v348
    %v611 = vunpack.c.l.b16 %v349
    %v612 = vunpack.c.l.b16 %v350
    %v613 = vunpack.c.l.b16 %v351
    %v614 = vunpack.c.l.b16 %v352
    %v615 = vunpack.c.l.b16 %v353
    %v616 = vunpack.c.l.b16 %v354
    %v617 = vunpack.c.l.b16 %v355
    %v618 = vunpack.c.l.b16 %v356
    %v619 = vunpack.c.l.b16 %v357
    %v620 = vunpack.c.l.b16 %v358
    %v621 = vunpack.c.l.b16 %v359
    %v622 = vunpack.c.l.b16 %v360
    %v623 = vunpack.c.l.b16 %v361
    %v624 = vunpack.c.l.b16 %v362
    %v625 = vunpack.c.l.b16 %v363
    %v626 = vunpack.c.l.b16 %v364
    %v627 = vunpack.c.l.b16 %v365
    %v628 = vpack.c.b16 %v501, %v500
    %v629 = vpack.c.b16 %v503, %v502
    %v630 = vpack.c.b16 %v505, %v504
    %v631 = vpack.c.b16 %v507, %v506
    %v632 = vpack.c.b16 %v509, %v508
    %v633 = vpack.c.b16 %v511, %v510
    %v634 = vpack.c.b16 %v513, %v512
    %v635 = vpack.c.b16 %v515, %v514
    %v636 = vpack.c.b16 %v517, %v516
    %v637 = vpack.c.b16 %v519, %v518
    %v638 = vpack.c.b16 %v521, %v520
    %v639 = vpack.c.b16 %v523, %v522
    %v640 = vpack.c.b16 %v525, %v524
    %v641 = vpack.c.b16 %v527, %v526
    %v642 = vpack.c.b16 %v529, %v528
    %v643 = vpack.c.b16 %v531, %v530
    %v644 = vpack.c.b16 %v533, %v532
    %v645 = vpack.c.b16 %v535, %v534
    %v646 = vpack.c.b16 %v537, %v536
    %v647 = vpack.c.b16 %v539, %v538
    %v648 = vpack.c.b16 %v541, %v540
    %v649 = vpack.c.b16 %v543, %v542
    %v650 = vpack.c.b16 %v545, %v544
    %v651 = vpack.c.b16 %v547, %v546
    %v652 = vpack.c.b16 %v549, %v548
    %v653 = vpack.c.b16 %v551, %v550
    %v654 = vpack.c.b16 %v553, %v552
    %v655 = vpack.c.b16 %v555, %v554
    %v656 = vpack.c.b16 %v557, %v556
    %v657 = vpack.c.b16 %v559, %v558
    %v658 = vpack.c.b16 %v561, %v560
    %v659 = vpack.c.b16 %v563, %v562
    %v660 = vpack.c.b16 %v565, %v564
    %v661 = vpack.c.b16 %v567, %v566
    %v662 = vpack.c.b16 %v569, %v568
    %v663 = vpack.c.b16 %v571, %v570
    %v664 = vpack.c.b16 %v573, %v572
    %v665 = vpack.c.b16 %v575, %v574
    %v666 = vpack.c.b16 %v577, %v576
    %v667 = vpack.c.b16 %v579, %v578
    %v668 = vpack.c.b16 %v581, %v580
    %v669 = vpack.c.b16 %v583, %v582
    %v670 = vpack.c.b16 %v585, %v584
    %v671 = vpack.c.b16 %v587, %v586
    %v672 = vpack.c.b16 %v589, %v588
    %v673 = vpack.c.b16 %v591, %v590
    %v674 = vpack.c.b16 %v593, %v592
    %v675 = vpack.c.b16 %v595, %v594
    %v676 = vpack.c.b16 %v597, %v596
    %v677 = vpack.c.b16 %v599, %v598
    %v678 = vpack.c.b16 %v601, %v600
    %v679 = vpack.c.b16 %v603, %v602
    %v680 = vpack.c.b16 %v605, %v604
    %v681 = vpack.c.b16 %v607, %v606
    %v682 = vpack.c.b16 %v609, %v608
    %v683 = vpack.c.b16 %v611, %v610
    %v684 = vpack.c.b16 %v613, %v612
    %v685 = vpack.c.b16 %v615, %v614
    %v686 = vpack.c.b16 %v617, %v616
    %v687 = vpack.c.b16 %v619, %v618
    %v688 = vpack.c.b16 %v621, %v620
    %v689 = vpack.c.b16 %v623, %v622
    %v690 = vpack.c.b16 %v625, %v624
    %v691 = vpack.c.b16 %v627, %v626
    %756 = vmatprep.subr.bf16.mxu0 0
    %757 = vmatpush1.bf16.msra.mxu0 %v628
    %758 = vmatprep.subr.bf16.mxu0 0
    %759 = vmatpush1.bf16.msra.mxu0 %v629
    %760 = vmatprep.subr.bf16.mxu0 0
    %761 = vmatpush1.bf16.msra.mxu0 %v630
    %762 = vmatprep.subr.bf16.mxu0 0
    %763 = vmatpush1.bf16.msra.mxu0 %v631
    %764 = vmatprep.subr.bf16.mxu0 0
    %765 = vmatpush1.bf16.msra.mxu0 %v632
    %766 = vmatprep.subr.bf16.mxu0 0
    %767 = vmatpush1.bf16.msra.mxu0 %v633
    %768 = vmatprep.subr.bf16.mxu0 0
    %769 = vmatpush1.bf16.msra.mxu0 %v634
    %770 = vmatprep.subr.bf16.mxu0 0
    %771 = vmatpush1.bf16.msra.mxu0 %v635
    %772 = vmatprep.subr.bf16.mxu0 0
    %773 = vmatpush1.bf16.msra.mxu0 %v636
    %774 = vmatprep.subr.bf16.mxu0 0
    %775 = vmatpush1.bf16.msra.mxu0 %v637
    %776 = vmatprep.subr.bf16.mxu0 0
    %777 = vmatpush1.bf16.msra.mxu0 %v638
    %778 = vmatprep.subr.bf16.mxu0 0
    %779 = vmatpush1.bf16.msra.mxu0 %v639
    %780 = vmatprep.subr.bf16.mxu0 0
    %781 = vmatpush1.bf16.msra.mxu0 %v640
    %782 = vmatprep.subr.bf16.mxu0 0
    %783 = vmatpush1.bf16.msra.mxu0 %v641
    %784 = vmatprep.subr.bf16.mxu0 0
    %785 = vmatpush1.bf16.msra.mxu0 %v642
    %786 = vmatprep.subr.bf16.mxu0 0
    %787 = vmatpush1.bf16.msra.mxu0 %v643
    %788 = vmatprep.mubr.bf16.mxu0 %v175
    %789 = vmatmul.mubr.bf16.gmra.mrb[0].mxu0 %v174
    %v790 = vpop.f32.mrb[0].mxu0
    %v791 = vadd.f32 %v370, %v790
    %v792 = vpop.f32.mrb[0].mxu0
    %v793 = vpop.f32.mrb[0].mxu0
    %v794 = vadd.f32 %v370, %v793
    %v795 = vpop.f32.mrb[0].mxu0
    %796 = vmatprep.mubr.bf16.mxu0 %v183
    %797 = vmatmul.mubr.bf16.gmra.mrb[0].mxu0 %v182
    %v798 = vpop.f32.mrb[0].mxu0
    %v799 = vadd.f32 %v370, %v798
    %v800 = vpop.f32.mrb[0].mxu0
    %v801 = vpop.f32.mrb[0].mxu0
    %v802 = vadd.f32 %v370, %v801
    %v803 = vpop.f32.mrb[0].mxu0
    %804 = vmatprep.mubr.bf16.mxu0 %v191
    %805 = vmatmul.mubr.bf16.gmra.mrb[0].mxu0 %v190
    %v806 = vpop.f32.mrb[0].mxu0
    %v807 = vadd.f32 %v370, %v806
    %v808 = vpop.f32.mrb[0].mxu0
    %v809 = vpop.f32.mrb[0].mxu0
    %v810 = vadd.f32 %v370, %v809
    %v811 = vpop.f32.mrb[0].mxu0
    %812 = vmatprep.mubr.bf16.mxu0 %v199
    %813 = vmatmul.mubr.bf16.gmra.mrb[0].mxu0 %v198
    %v814 = vpop.f32.mrb[0].mxu0
    %v815 = vadd.f32 %v370, %v814
    %v816 = vpop.f32.mrb[0].mxu0
    %v817 = vpop.f32.mrb[0].mxu0
    %v818 = vadd.f32 %v370, %v817
    %v819 = vpop.f32.mrb[0].mxu0
    %820 = vmatprep.mubr.bf16.mxu0 %v207
    %821 = vmatmul.mubr.bf16.gmra.mrb[0].mxu0 %v206
    %v822 = vpop.f32.mrb[0].mxu0
    %v823 = vadd.f32 %v370, %v822
    %v824 = vpop.f32.mrb[0].mxu0
    %v825 = vpop.f32.mrb[0].mxu0
    %v826 = vadd.f32 %v370, %v825
    %v827 = vpop.f32.mrb[0].mxu0
    %828 = vmatprep.mubr.bf16.mxu0 %v215
    %829 = vmatmul.mubr.bf16.gmra.mrb[0].mxu0 %v214
    %v830 = vpop.f32.mrb[0].mxu0
    %v831 = vadd.f32 %v370, %v830
    %v832 = vpop.f32.mrb[0].mxu0
    %v833 = vpop.f32.mrb[0].mxu0
    %v834 = vadd.f32 %v370, %v833
    %v835 = vpop.f32.mrb[0].mxu0
    %836 = vmatprep.mubr.bf16.mxu0 %v223
    %837 = vmatmul.mubr.bf16.gmra.mrb[0].mxu0 %v222
    %v838 = vpop.f32.mrb[0].mxu0
    %v839 = vadd.f32 %v370, %v838
    %v840 = vpop.f32.mrb[0].mxu0
    %v841 = vpop.f32.mrb[0].mxu0
    %v842 = vadd.f32 %v370, %v841
    %v843 = vpop.f32.mrb[0].mxu0
    %844 = vmatprep.mubr.bf16.mxu0 %v231
    %845 = vmatmul.mubr.bf16.gmra.mrb[0].mxu0 %v230
    %v846 = vpop.f32.mrb[0].mxu0
    %v847 = vadd.f32 %v370, %v846
    %v848 = vpop.f32.mrb[0].mxu0
    %v849 = vpop.f32.mrb[0].mxu0
    %v850 = vadd.f32 %v370, %v849
    %v851 = vpop.f32.mrb[0].mxu0
    %852 = vdwg.mxu0
    %853 = vmatprep.subr.bf16.mxu0 0
    %854 = vmatpush1.bf16.msra.mxu0 %v644
    %855 = vmatprep.subr.bf16.mxu0 0
    %856 = vmatpush1.bf16.msra.mxu0 %v645
    %857 = vmatprep.subr.bf16.mxu0 0
    %858 = vmatpush1.bf16.msra.mxu0 %v646
    %859 = vmatprep.subr.bf16.mxu0 0
    %860 = vmatpush1.bf16.msra.mxu0 %v647
    %861 = vmatprep.subr.bf16.mxu0 0
    %862 = vmatpush1.bf16.msra.mxu0 %v648
    %863 = vmatprep.subr.bf16.mxu0 0
    %864 = vmatpush1.bf16.msra.mxu0 %v649
    %865 = vmatprep.subr.bf16.mxu0 0
    %866 = vmatpush1.bf16.msra.mxu0 %v650
    %867 = vmatprep.subr.bf16.mxu0 0
    %868 = vmatpush1.bf16.msra.mxu0 %v651
    %869 = vmatprep.subr.bf16.mxu0 0
    %870 = vmatpush1.bf16.msra.mxu0 %v652
    %871 = vmatprep.subr.bf16.mxu0 0
    %872 = vmatpush1.bf16.msra.mxu0 %v653
    %873 = vmatprep.subr.bf16.mxu0 0
    %874 = vmatpush1.bf16.msra.mxu0 %v654
    %875 = vmatprep.subr.bf16.mxu0 0
    %876 = vmatpush1.bf16.msra.mxu0 %v655
    %877 = vmatprep.subr.bf16.mxu0 0
    %878 = vmatpush1.bf16.msra.mxu0 %v656
    %879 = vmatprep.subr.bf16.mxu0 0
    %880 = vmatpush1.bf16.msra.mxu0 %v657
    %881 = vmatprep.subr.bf16.mxu0 0
    %882 = vmatpush1.bf16.msra.mxu0 %v658
    %883 = vmatprep.subr.bf16.mxu0 0
    %884 = vmatpush1.bf16.msra.mxu0 %v659
    %885 = vmatprep.mubr.bf16.mxu0 %v177
    %886 = vmatmul.mubr.bf16.gmra.mrb[0].mxu0 %v176
    %v887 = vpop.f32.mrb[0].mxu0
    %v888 = vadd.f32 %v791, %v887
    %v889 = vpop.f32.mrb[0].mxu0
    %v890 = vpop.f32.mrb[0].mxu0
    %v891 = vadd.f32 %v794, %v890
    %v892 = vpop.f32.mrb[0].mxu0
    %893 = vmatprep.mubr.bf16.mxu0 %v185
    %894 = vmatmul.mubr.bf16.gmra.mrb[0].mxu0 %v184
    %v895 = vpop.f32.mrb[0].mxu0
    %v896 = vadd.f32 %v799, %v895
    %v897 = vpop.f32.mrb[0].mxu0
    %v898 = vpop.f32.mrb[0].mxu0
    %v899 = vadd.f32 %v802, %v898
    %v900 = vpop.f32.mrb[0].mxu0
    %901 = vmatprep.mubr.bf16.mxu0 %v193
    %902 = vmatmul.mubr.bf16.gmra.mrb[0].mxu0 %v192
    %v903 = vpop.f32.mrb[0].mxu0
    %v904 = vadd.f32 %v807, %v903
    %v905 = vpop.f32.mrb[0].mxu0
    %v906 = vpop.f32.mrb[0].mxu0
    %v907 = vadd.f32 %v810, %v906
    %v908 = vpop.f32.mrb[0].mxu0
    %909 = vmatprep.mubr.bf16.mxu0 %v201
    %910 = vmatmul.mubr.bf16.gmra.mrb[0].mxu0 %v200
    %v911 = vpop.f32.mrb[0].mxu0
    %v912 = vadd.f32 %v815, %v911
    %v913 = vpop.f32.mrb[0].mxu0
    %v914 = vpop.f32.mrb[0].mxu0
    %v915 = vadd.f32 %v818, %v914
    %v916 = vpop.f32.mrb[0].mxu0
    %917 = vmatprep.mubr.bf16.mxu0 %v209
    %918 = vmatmul.mubr.bf16.gmra.mrb[0].mxu0 %v208
    %v919 = vpop.f32.mrb[0].mxu0
    %v920 = vadd.f32 %v823, %v919
    %v921 = vpop.f32.mrb[0].mxu0
    %v922 = vpop.f32.mrb[0].mxu0
    %v923 = vadd.f32 %v826, %v922
    %v924 = vpop.f32.mrb[0].mxu0
    %925 = vmatprep.mubr.bf16.mxu0 %v217
    %926 = vmatmul.mubr.bf16.gmra.mrb[0].mxu0 %v216
    %v927 = vpop.f32.mrb[0].mxu0
    %v928 = vadd.f32 %v831, %v927
    %v929 = vpop.f32.mrb[0].mxu0
    %v930 = vpop.f32.mrb[0].mxu0
    %v931 = vadd.f32 %v834, %v930
    %v932 = vpop.f32.mrb[0].mxu0
    %933 = vmatprep.mubr.bf16.mxu0 %v225
    %934 = vmatmul.mubr.bf16.gmra.mrb[0].mxu0 %v224
    %v935 = vpop.f32.mrb[0].mxu0
    %v936 = vadd.f32 %v839, %v935
    %v937 = vpop.f32.mrb[0].mxu0
    %v938 = vpop.f32.mrb[0].mxu0
    %v939 = vadd.f32 %v842, %v938
    %v940 = vpop.f32.mrb[0].mxu0
    %941 = vmatprep.mubr.bf16.mxu0 %v233
    %942 = vmatmul.mubr.bf16.gmra.mrb[0].mxu0 %v232
    %v943 = vpop.f32.mrb[0].mxu0
    %v944 = vadd.f32 %v847, %v943
    %v945 = vpop.f32.mrb[0].mxu0
    %v946 = vpop.f32.mrb[0].mxu0
    %v947 = vadd.f32 %v850, %v946
    %v948 = vpop.f32.mrb[0].mxu0
    %949 = vdwg.mxu0
    %950 = vmatprep.subr.bf16.mxu0 0
    %951 = vmatpush1.bf16.msra.mxu0 %v660
    %952 = vmatprep.subr.bf16.mxu0 0
    %953 = vmatpush1.bf16.msra.mxu0 %v661
    %954 = vmatprep.subr.bf16.mxu0 0
    %955 = vmatpush1.bf16.msra.mxu0 %v662
    %956 = vmatprep.subr.bf16.mxu0 0
    %957 = vmatpush1.bf16.msra.mxu0 %v663
    %958 = vmatprep.subr.bf16.mxu0 0
    %959 = vmatpush1.bf16.msra.mxu0 %v664
    %960 = vmatprep.subr.bf16.mxu0 0
    %961 = vmatpush1.bf16.msra.mxu0 %v665
    %962 = vmatprep.subr.bf16.mxu0 0
    %963 = vmatpush1.bf16.msra.mxu0 %v666
    %964 = vmatprep.subr.bf16.mxu0 0
    %965 = vmatpush1.bf16.msra.mxu0 %v667
    %966 = vmatprep.subr.bf16.mxu0 0
    %967 = vmatpush1.bf16.msra.mxu0 %v668
    %968 = vmatprep.subr.bf16.mxu0 0
    %969 = vmatpush1.bf16.msra.mxu0 %v669
    %970 = vmatprep.subr.bf16.mxu0 0
    %971 = vmatpush1.bf16.msra.mxu0 %v670
    %972 = vmatprep.subr.bf16.mxu0 0
    %973 = vmatpush1.bf16.msra.mxu0 %v671
    %974 = vmatprep.subr.bf16.mxu0 0
    %975 = vmatpush1.bf16.msra.mxu0 %v672
    %976 = vmatprep.subr.bf16.mxu0 0
    %977 = vmatpush1.bf16.msra.mxu0 %v673
    %978 = vmatprep.subr.bf16.mxu0 0
    %979 = vmatpush1.bf16.msra.mxu0 %v674
    %980 = vmatprep.subr.bf16.mxu0 0
    %981 = vmatpush1.bf16.msra.mxu0 %v675
    %982 = vmatprep.mubr.bf16.mxu0 %v179
    %983 = vmatmul.mubr.bf16.gmra.mrb[0].mxu0 %v178
    %v984 = vpop.f32.mrb[0].mxu0
    %v985 = vadd.f32 %v888, %v984
    %v986 = vpop.f32.mrb[0].mxu0
    %v987 = vpop.f32.mrb[0].mxu0
    %v988 = vadd.f32 %v891, %v987
    %v989 = vpop.f32.mrb[0].mxu0
    %990 = vmatprep.mubr.bf16.mxu0 %v187
    %991 = vmatmul.mubr.bf16.gmra.mrb[0].mxu0 %v186
    %v992 = vpop.f32.mrb[0].mxu0
    %v993 = vadd.f32 %v896, %v992
    %v994 = vpop.f32.mrb[0].mxu0
    %v995 = vpop.f32.mrb[0].mxu0
    %v996 = vadd.f32 %v899, %v995
    %v997 = vpop.f32.mrb[0].mxu0
    %998 = vmatprep.mubr.bf16.mxu0 %v195
    %999 = vmatmul.mubr.bf16.gmra.mrb[0].mxu0 %v194
    %v1000 = vpop.f32.mrb[0].mxu0
    %v1001 = vadd.f32 %v904, %v1000
    %v1002 = vpop.f32.mrb[0].mxu0
    %v1003 = vpop.f32.mrb[0].mxu0
    %v1004 = vadd.f32 %v907, %v1003
    %v1005 = vpop.f32.mrb[0].mxu0
    %1006 = vmatprep.mubr.bf16.mxu0 %v203
    %1007 = vmatmul.mubr.bf16.gmra.mrb[0].mxu0 %v202
    %v1008 = vpop.f32.mrb[0].mxu0
    %v1009 = vadd.f32 %v912, %v1008
    %v1010 = vpop.f32.mrb[0].mxu0
    %v1011 = vpop.f32.mrb[0].mxu0
    %v1012 = vadd.f32 %v915, %v1011
    %v1013 = vpop.f32.mrb[0].mxu0
    %1014 = vmatprep.mubr.bf16.mxu0 %v211
    %1015 = vmatmul.mubr.bf16.gmra.mrb[0].mxu0 %v210
    %v1016 = vpop.f32.mrb[0].mxu0
    %v1017 = vadd.f32 %v920, %v1016
    %v1018 = vpop.f32.mrb[0].mxu0
    %v1019 = vpop.f32.mrb[0].mxu0
    %v1020 = vadd.f32 %v923, %v1019
    %v1021 = vpop.f32.mrb[0].mxu0
    %1022 = vmatprep.mubr.bf16.mxu0 %v219
    %1023 = vmatmul.mubr.bf16.gmra.mrb[0].mxu0 %v218
    %v1024 = vpop.f32.mrb[0].mxu0
    %v1025 = vadd.f32 %v928, %v1024
    %v1026 = vpop.f32.mrb[0].mxu0
    %v1027 = vpop.f32.mrb[0].mxu0
    %v1028 = vadd.f32 %v931, %v1027
    %v1029 = vpop.f32.mrb[0].mxu0
    %1030 = vmatprep.mubr.bf16.mxu0 %v227
    %1031 = vmatmul.mubr.bf16.gmra.mrb[0].mxu0 %v226
    %v1032 = vpop.f32.mrb[0].mxu0
    %v1033 = vadd.f32 %v936, %v1032
    %v1034 = vpop.f32.mrb[0].mxu0
    %v1035 = vpop.f32.mrb[0].mxu0
    %v1036 = vadd.f32 %v939, %v1035
    %v1037 = vpop.f32.mrb[0].mxu0
    %1038 = vmatprep.mubr.bf16.mxu0 %v235
    %1039 = vmatmul.mubr.bf16.gmra.mrb[0].mxu0 %v234
    %v1040 = vpop.f32.mrb[0].mxu0
    %v1041 = vadd.f32 %v944, %v1040
    %v1042 = vpop.f32.mrb[0].mxu0
    %v1043 = vpop.f32.mrb[0].mxu0
    %v1044 = vadd.f32 %v947, %v1043
    %v1045 = vpop.f32.mrb[0].mxu0
    %1046 = vdwg.mxu0
    %1047 = vmatprep.subr.bf16.mxu0 0
    %1048 = vmatpush1.bf16.msra.mxu0 %v676
    %1049 = vmatprep.subr.bf16.mxu0 0
    %1050 = vmatpush1.bf16.msra.mxu0 %v677
    %1051 = vmatprep.subr.bf16.mxu0 0
    %1052 = vmatpush1.bf16.msra.mxu0 %v678
    %1053 = vmatprep.subr.bf16.mxu0 0
    %1054 = vmatpush1.bf16.msra.mxu0 %v679
    %1055 = vmatprep.subr.bf16.mxu0 0
    %1056 = vmatpush1.bf16.msra.mxu0 %v680
    %1057 = vmatprep.subr.bf16.mxu0 0
    %1058 = vmatpush1.bf16.msra.mxu0 %v681
    %1059 = vmatprep.subr.bf16.mxu0 0
    %1060 = vmatpush1.bf16.msra.mxu0 %v682
    %1061 = vmatprep.subr.bf16.mxu0 0
    %1062 = vmatpush1.bf16.msra.mxu0 %v683
    %1063 = vmatprep.subr.bf16.mxu0 0
    %1064 = vmatpush1.bf16.msra.mxu0 %v684
    %1065 = vmatprep.subr.bf16.mxu0 0
    %1066 = vmatpush1.bf16.msra.mxu0 %v685
    %1067 = vmatprep.subr.bf16.mxu0 0
    %1068 = vmatpush1.bf16.msra.mxu0 %v686
    %1069 = vmatprep.subr.bf16.mxu0 0
    %1070 = vmatpush1.bf16.msra.mxu0 %v687
    %1071 = vmatprep.subr.bf16.mxu0 0
    %1072 = vmatpush1.bf16.msra.mxu0 %v688
    %1073 = vmatprep.subr.bf16.mxu0 0
    %1074 = vmatpush1.bf16.msra.mxu0 %v689
    %1075 = vmatprep.subr.bf16.mxu0 0
    %1076 = vmatpush1.bf16.msra.mxu0 %v690
    %1077 = vmatprep.subr.bf16.mxu0 0
    %1078 = vmatpush1.bf16.msra.mxu0 %v691
    %1079 = vmatprep.mubr.bf16.mxu0 %v181
    %1080 = vmatmul.mubr.bf16.gmra.mrb[0].mxu0 %v180
    %v1081 = vpop.f32.mrb[0].mxu0
    %v1082 = vadd.f32 %v985, %v1081
    %v1083 = vpop.f32.mrb[0].mxu0
    %v1084 = vpop.f32.mrb[0].mxu0
    %v1085 = vadd.f32 %v988, %v1084
    %v1086 = vpop.f32.mrb[0].mxu0
    %1087 = vmatprep.mubr.bf16.mxu0 %v189
    %1088 = vmatmul.mubr.bf16.gmra.mrb[0].mxu0 %v188
    %v1089 = vpop.f32.mrb[0].mxu0
    %v1090 = vadd.f32 %v993, %v1089
    %v1091 = vpop.f32.mrb[0].mxu0
    %v1092 = vpop.f32.mrb[0].mxu0
    %v1093 = vadd.f32 %v996, %v1092
    %v1094 = vpop.f32.mrb[0].mxu0
    %1095 = vmatprep.mubr.bf16.mxu0 %v197
    %1096 = vmatmul.mubr.bf16.gmra.mrb[0].mxu0 %v196
    %v1097 = vpop.f32.mrb[0].mxu0
    %v1098 = vadd.f32 %v1001, %v1097
    %v1099 = vpop.f32.mrb[0].mxu0
    %v1100 = vpop.f32.mrb[0].mxu0
    %v1101 = vadd.f32 %v1004, %v1100
    %v1102 = vpop.f32.mrb[0].mxu0
    %1103 = vmatprep.mubr.bf16.mxu0 %v205
    %1104 = vmatmul.mubr.bf16.gmra.mrb[0].mxu0 %v204
    %v1105 = vpop.f32.mrb[0].mxu0
    %v1106 = vadd.f32 %v1009, %v1105
    %v1107 = vpop.f32.mrb[0].mxu0
    %v1108 = vpop.f32.mrb[0].mxu0
    %v1109 = vadd.f32 %v1012, %v1108
    %v1110 = vpop.f32.mrb[0].mxu0
    %1111 = vmatprep.mubr.bf16.mxu0 %v213
    %1112 = vmatmul.mubr.bf16.gmra.mrb[0].mxu0 %v212
    %v1113 = vpop.f32.mrb[0].mxu0
    %v1114 = vadd.f32 %v1017, %v1113
    %v1115 = vpop.f32.mrb[0].mxu0
    %v1116 = vpop.f32.mrb[0].mxu0
    %v1117 = vadd.f32 %v1020, %v1116
    %v1118 = vpop.f32.mrb[0].mxu0
    %1119 = vmatprep.mubr.bf16.mxu0 %v221
    %1120 = vmatmul.mubr.bf16.gmra.mrb[0].mxu0 %v220
    %v1121 = vpop.f32.mrb[0].mxu0
    %v1122 = vadd.f32 %v1025, %v1121
    %v1123 = vpop.f32.mrb[0].mxu0
    %v1124 = vpop.f32.mrb[0].mxu0
    %v1125 = vadd.f32 %v1028, %v1124
    %v1126 = vpop.f32.mrb[0].mxu0
    %1127 = vmatprep.mubr.bf16.mxu0 %v229
    %1128 = vmatmul.mubr.bf16.gmra.mrb[0].mxu0 %v228
    %v1129 = vpop.f32.mrb[0].mxu0
    %v1130 = vadd.f32 %v1033, %v1129
    %v1131 = vpop.f32.mrb[0].mxu0
    %v1132 = vpop.f32.mrb[0].mxu0
    %v1133 = vadd.f32 %v1036, %v1132
    %v1134 = vpop.f32.mrb[0].mxu0
    %1135 = vmatprep.mubr.bf16.mxu0 %v237
    %1136 = vmatmul.mubr.bf16.gmra.mrb[0].mxu0 %v236
    %v1137 = vpop.f32.mrb[0].mxu0
    %v1138 = vadd.f32 %v1041, %v1137
    %v1139 = vpop.f32.mrb[0].mxu0
    %v1140 = vpop.f32.mrb[0].mxu0
    %v1141 = vadd.f32 %v1044, %v1140
    %v1142 = vpop.f32.mrb[0].mxu0
    %1143 = vdwg.mxu0
    %v1144 = vtanh.pop %v1082
    %v1145 = vtanh.pop %v1085
    %v1146 = vtanh.pop %v1090
    %v1147 = vtanh.pop %v1093
    %v1148 = vtanh.pop %v1098
    %v1149 = vtanh.pop %v1101
    %v1150 = vtanh.pop %v1106
    %v1151 = vtanh.pop %v1109
    %v1152 = vtanh.pop %v1114
    %v1153 = vtanh.pop %v1117
    %v1154 = vtanh.pop %v1122
    %v1155 = vtanh.pop %v1125
    %v1156 = vtanh.pop %v1130
    %v1157 = vtanh.pop %v1133
    %v1158 = vtanh.pop %v1138
    %v1159 = vtanh.pop %v1141
    %v1160 = vpack.c.bf16 %v1145, %v1144
    %v1161 = vpack.c.bf16 %v1147, %v1146
    %v1162 = vpack.c.bf16 %v1149, %v1148
    %v1163 = vpack.c.bf16 %v1151, %v1150
    %v1164 = vpack.c.bf16 %v1153, %v1152
    %v1165 = vpack.c.bf16 %v1155, %v1154
    %v1166 = vpack.c.bf16 %v1157, %v1156
    %v1167 = vpack.c.bf16 %v1159, %v1158
    %v1168 = vld [vmem:[%s4] sm:$0xf]
    %v1169 = vld [vmem:[%s4 + $0x4] sm:$0xf]
    %v1170 = vld [vmem:[%s4 + $0x8] sm:$0xf]
    %v1171 = vld [vmem:[%s4 + $0xc] sm:$0xf]
    %v1172 = vld [vmem:[%s4 + $0x10] sm:$0xf]
    %v1173 = vld [vmem:[%s4 + $0x14] sm:$0xf]
    %v1174 = vld [vmem:[%s4 + $0x18] sm:$0xf]
    %v1175 = vld [vmem:[%s4 + $0x1c] sm:$0xf]
    %v1176 = vld [vmem:[%s4 + $0x20] sm:$0xf]
    %v1177 = vld [vmem:[%s4 + $0x24] sm:$0xf]
    %v1178 = vld [vmem:[%s4 + $0x28] sm:$0xf]
    %v1179 = vld [vmem:[%s4 + $0x2c] sm:$0xf]
    %v1180 = vld [vmem:[%s4 + $0x30] sm:$0xf]
    %v1181 = vld [vmem:[%s4 + $0x34] sm:$0xf]
    %v1182 = vld [vmem:[%s4 + $0x38] sm:$0xf]
    %v1183 = vld [vmem:[%s4 + $0x3c] sm:$0xf]
    %v1185 = vlaneseq
    %v1186 = vshrl.u32 %v1185, 7
    %v1187 = vsub.s32 0, %v1186
    %v1188 = vrot.slane %v42, %v1187
    %v1206 = vunpack.c.l.b16 %v1168
    %v1207 = vunpack.c.l.b16 %v1169
    %v1208 = vunpack.c.l.b16 %v1170
    %v1209 = vunpack.c.l.b16 %v1171
    %v1210 = vunpack.c.l.b16 %v1172
    %v1211 = vunpack.c.l.b16 %v1173
    %v1212 = vunpack.c.l.b16 %v1174
    %v1213 = vunpack.c.l.b16 %v1175
    %v1214 = vunpack.c.l.b16 %v1176
    %v1215 = vunpack.c.l.b16 %v1177
    %v1216 = vunpack.c.l.b16 %v1178
    %v1217 = vunpack.c.l.b16 %v1179
    %v1218 = vunpack.c.l.b16 %v1180
    %v1219 = vunpack.c.l.b16 %v1181
    %v1220 = vunpack.c.l.b16 %v1182
    %v1221 = vunpack.c.l.b16 %v1183
    %v1222 = vpack.c.b16 %v1207, %v1206
    %v1223 = vpack.c.b16 %v1209, %v1208
    %v1224 = vpack.c.b16 %v1211, %v1210
    %v1225 = vpack.c.b16 %v1213, %v1212
    %v1226 = vpack.c.b16 %v1215, %v1214
    %v1227 = vpack.c.b16 %v1217, %v1216
    %v1228 = vpack.c.b16 %v1219, %v1218
    %v1229 = vpack.c.b16 %v1221, %v1220
    %1238 = vmatprep.subr.bf16.mxu0 0
    %1239 = vmatpush1.bf16.msra.mxu0 %v1222
    %1240 = vmatprep.subr.bf16.mxu0 0
    %1241 = vmatpush1.bf16.msra.mxu0 %v1223
    %1242 = vmatprep.subr.bf16.mxu0 0
    %1243 = vmatpush1.bf16.msra.mxu0 %v1224
    %1244 = vmatprep.subr.bf16.mxu0 0
    %1245 = vmatpush1.bf16.msra.mxu0 %v1225
    %1246 = vmatprep.subr.bf16.mxu0 0
    %1247 = vmatpush1.bf16.msra.mxu0 %v1226
    %1248 = vmatprep.subr.bf16.mxu0 0
    %1249 = vmatpush1.bf16.msra.mxu0 %v1227
    %1250 = vmatprep.subr.bf16.mxu0 0
    %1251 = vmatpush1.bf16.msra.mxu0 %v1228
    %1252 = vmatprep.subr.bf16.mxu0 0
    %1253 = vmatpush1.bf16.msra.mxu0 %v1229
    %1254 = vmatprep.subr.bf16.mxu0 0
    %1255 = vmatpush1.bf16.msra.mxu0 0
    %1256 = vmatprep.subr.bf16.mxu0 0
    %1257 = vmatpush1.bf16.msra.mxu0 0
    %1258 = vmatprep.subr.bf16.mxu0 0
    %1259 = vmatpush1.bf16.msra.mxu0 0
    %1260 = vmatprep.subr.bf16.mxu0 0
    %1261 = vmatpush1.bf16.msra.mxu0 0
    %1262 = vmatprep.subr.bf16.mxu0 0
    %1263 = vmatpush1.bf16.msra.mxu0 0
    %1264 = vmatprep.subr.bf16.mxu0 0
    %1265 = vmatpush1.bf16.msra.mxu0 0
    %1266 = vmatprep.subr.bf16.mxu0 0
    %1267 = vmatpush1.bf16.msra.mxu0 0
    %1268 = vmatprep.subr.bf16.mxu0 0
    %1269 = vmatpush1.bf16.msra.mxu0 0
    %1270 = vmatprep.mubr.bf16.mxu0 0
    %1271 = vmatmul.mubr.bf16.gmra.mrb[0].mxu0 %v1160
    %v1272 = vpop.f32.mrb[0].mxu0
    %v1273 = vadd.f32 %v1188, %v1272
    %v1274 = vpop.f32.mrb[0].mxu0
    %v1275 = vpop.f32.mrb[0].mxu0
    %v1276 = vadd.f32 %v1188, %v1275
    %v1277 = vpop.f32.mrb[0].mxu0
    %1278 = vmatprep.mubr.bf16.mxu0 0
    %1279 = vmatmul.mubr.bf16.gmra.mrb[0].mxu0 %v1161
    %v1280 = vpop.f32.mrb[0].mxu0
    %v1281 = vadd.f32 %v1188, %v1280
    %v1282 = vpop.f32.mrb[0].mxu0
    %v1283 = vpop.f32.mrb[0].mxu0
    %v1284 = vadd.f32 %v1188, %v1283
    %v1285 = vpop.f32.mrb[0].mxu0
    %1286 = vmatprep.mubr.bf16.mxu0 0
    %1287 = vmatmul.mubr.bf16.gmra.mrb[0].mxu0 %v1162
    %v1288 = vpop.f32.mrb[0].mxu0
    %v1289 = vadd.f32 %v1188, %v1288
    %v1290 = vpop.f32.mrb[0].mxu0
    %v1291 = vpop.f32.mrb[0].mxu0
    %v1292 = vadd.f32 %v1188, %v1291
    %v1293 = vpop.f32.mrb[0].mxu0
    %1294 = vmatprep.mubr.bf16.mxu0 0
    %1295 = vmatmul.mubr.bf16.gmra.mrb[0].mxu0 %v1163
    %v1296 = vpop.f32.mrb[0].mxu0
    %v1297 = vadd.f32 %v1188, %v1296
    %v1298 = vpop.f32.mrb[0].mxu0
    %v1299 = vpop.f32.mrb[0].mxu0
    %v1300 = vadd.f32 %v1188, %v1299
    %v1301 = vpop.f32.mrb[0].mxu0
    %1302 = vmatprep.mubr.bf16.mxu0 0
    %1303 = vmatmul.mubr.bf16.gmra.mrb[0].mxu0 %v1164
    %v1304 = vpop.f32.mrb[0].mxu0
    %v1305 = vadd.f32 %v1188, %v1304
    %v1306 = vpop.f32.mrb[0].mxu0
    %v1307 = vpop.f32.mrb[0].mxu0
    %v1308 = vadd.f32 %v1188, %v1307
    %v1309 = vpop.f32.mrb[0].mxu0
    %1310 = vmatprep.mubr.bf16.mxu0 0
    %1311 = vmatmul.mubr.bf16.gmra.mrb[0].mxu0 %v1165
    %v1312 = vpop.f32.mrb[0].mxu0
    %v1313 = vadd.f32 %v1188, %v1312
    %v1314 = vpop.f32.mrb[0].mxu0
    %v1315 = vpop.f32.mrb[0].mxu0
    %v1316 = vadd.f32 %v1188, %v1315
    %v1317 = vpop.f32.mrb[0].mxu0
    %1318 = vmatprep.mubr.bf16.mxu0 0
    %1319 = vmatmul.mubr.bf16.gmra.mrb[0].mxu0 %v1166
    %v1320 = vpop.f32.mrb[0].mxu0
    %v1321 = vadd.f32 %v1188, %v1320
    %v1322 = vpop.f32.mrb[0].mxu0
    %v1323 = vpop.f32.mrb[0].mxu0
    %v1324 = vadd.f32 %v1188, %v1323
    %v1325 = vpop.f32.mrb[0].mxu0
    %1326 = vmatprep.mubr.bf16.mxu0 0
    %1327 = vmatmul.mubr.bf16.gmra.mrb[0].mxu0 %v1167
    %v1328 = vpop.f32.mrb[0].mxu0
    %v1329 = vadd.f32 %v1188, %v1328
    %v1330 = vpop.f32.mrb[0].mxu0
    %v1331 = vpop.f32.mrb[0].mxu0
    %v1332 = vadd.f32 %v1188, %v1331
    %v1333 = vpop.f32.mrb[0].mxu0
    %1334 = vdwg.mxu0
    %v1335 = vtanh.pop %v1273
    %v1336 = vtanh.pop %v1276
    %v1337 = vtanh.pop %v1281
    %v1338 = vtanh.pop %v1284
    %v1339 = vtanh.pop %v1289
    %v1340 = vtanh.pop %v1292
    %v1341 = vtanh.pop %v1297
    %v1342 = vtanh.pop %v1300
    %v1343 = vtanh.pop %v1305
    %v1344 = vtanh.pop %v1308
    %v1345 = vtanh.pop %v1313
    %v1346 = vtanh.pop %v1316
    %v1347 = vtanh.pop %v1321
    %v1348 = vtanh.pop %v1324
    %v1349 = vtanh.pop %v1329
    %v1350 = vtanh.pop %v1332
    %v1351 = vpack.c.bf16 %v1336, %v1335
    %v1352 = vpack.c.bf16 %v1338, %v1337
    %v1353 = vpack.c.bf16 %v1340, %v1339
    %v1354 = vpack.c.bf16 %v1342, %v1341
    %v1355 = vpack.c.bf16 %v1344, %v1343
    %v1356 = vpack.c.bf16 %v1346, %v1345
    %v1357 = vpack.c.bf16 %v1348, %v1347
    %v1358 = vpack.c.bf16 %v1350, %v1349
    %v1359 = vld [vmem:[%s5] sm:$0xf]
    %v1360 = vld [vmem:[%s5 + $0x4] sm:$0xf]
    %v1361 = vld [vmem:[%s5 + $0x8] sm:$0xf]
    %v1362 = vld [vmem:[%s5 + $0xc] sm:$0xf]
    %v1363 = vld [vmem:[%s5 + $0x10] sm:$0xf]
    %v1364 = vld [vmem:[%s5 + $0x14] sm:$0xf]
    %v1365 = vld [vmem:[%s5 + $0x18] sm:$0xf]
    %v1366 = vld [vmem:[%s5 + $0x1c] sm:$0xf]
    %v1367 = vld [vmem:[%s5 + $0x20] sm:$0xf]
    %v1368 = vld [vmem:[%s5 + $0x24] sm:$0xf]
    %v1369 = vld [vmem:[%s5 + $0x28] sm:$0xf]
    %v1370 = vld [vmem:[%s5 + $0x2c] sm:$0xf]
    %v1371 = vld [vmem:[%s5 + $0x30] sm:$0xf]
    %v1372 = vld [vmem:[%s5 + $0x34] sm:$0xf]
    %v1373 = vld [vmem:[%s5 + $0x38] sm:$0xf]
    %v1374 = vld [vmem:[%s5 + $0x3c] sm:$0xf]
    %v1376 = vlaneseq
    %v1377 = vshrl.u32 %v1376, 7
    %v1378 = vsub.s32 0, %v1377
    %v1379 = vrot.slane %v43, %v1378
    %v1397 = vunpack.c.l.b16 %v1359
    %v1398 = vunpack.c.l.b16 %v1360
    %v1399 = vunpack.c.l.b16 %v1361
    %v1400 = vunpack.c.l.b16 %v1362
    %v1401 = vunpack.c.l.b16 %v1363
    %v1402 = vunpack.c.l.b16 %v1364
    %v1403 = vunpack.c.l.b16 %v1365
    %v1404 = vunpack.c.l.b16 %v1366
    %v1405 = vunpack.c.l.b16 %v1367
    %v1406 = vunpack.c.l.b16 %v1368
    %v1407 = vunpack.c.l.b16 %v1369
    %v1408 = vunpack.c.l.b16 %v1370
    %v1409 = vunpack.c.l.b16 %v1371
    %v1410 = vunpack.c.l.b16 %v1372
    %v1411 = vunpack.c.l.b16 %v1373
    %v1412 = vunpack.c.l.b16 %v1374
    %v1413 = vpack.c.b16 %v1398, %v1397
    %v1414 = vpack.c.b16 %v1400, %v1399
    %v1415 = vpack.c.b16 %v1402, %v1401
    %v1416 = vpack.c.b16 %v1404, %v1403
    %v1417 = vpack.c.b16 %v1406, %v1405
    %v1418 = vpack.c.b16 %v1408, %v1407
    %v1419 = vpack.c.b16 %v1410, %v1409
    %v1420 = vpack.c.b16 %v1412, %v1411
    %1429 = vmatprep.subr.bf16.mxu0 0
    %1430 = vmatpush1.bf16.msra.mxu0 %v1413
    %1431 = vmatprep.subr.bf16.mxu0 0
    %1432 = vmatpush1.bf16.msra.mxu0 %v1414
    %1433 = vmatprep.subr.bf16.mxu0 0
    %1434 = vmatpush1.bf16.msra.mxu0 %v1415
    %1435 = vmatprep.subr.bf16.mxu0 0
    %1436 = vmatpush1.bf16.msra.mxu0 %v1416
    %1437 = vmatprep.subr.bf16.mxu0 0
    %1438 = vmatpush1.bf16.msra.mxu0 %v1417
    %1439 = vmatprep.subr.bf16.mxu0 0
    %1440 = vmatpush1.bf16.msra.mxu0 %v1418
    %1441 = vmatprep.subr.bf16.mxu0 0
    %1442 = vmatpush1.bf16.msra.mxu0 %v1419
    %1443 = vmatprep.subr.bf16.mxu0 0
    %1444 = vmatpush1.bf16.msra.mxu0 %v1420
    %1445 = vmatprep.subr.bf16.mxu0 0
    %1446 = vmatpush1.bf16.msra.mxu0 0
    %1447 = vmatprep.subr.bf16.mxu0 0
    %1448 = vmatpush1.bf16.msra.mxu0 0
    %1449 = vmatprep.subr.bf16.mxu0 0
    %1450 = vmatpush1.bf16.msra.mxu0 0
    %1451 = vmatprep.subr.bf16.mxu0 0
    %1452 = vmatpush1.bf16.msra.mxu0 0
    %1453 = vmatprep.subr.bf16.mxu0 0
    %1454 = vmatpush1.bf16.msra.mxu0 0
    %1455 = vmatprep.subr.bf16.mxu0 0
    %1456 = vmatpush1.bf16.msra.mxu0 0
    %1457 = vmatprep.subr.bf16.mxu0 0
    %1458 = vmatpush1.bf16.msra.mxu0 0
    %1459 = vmatprep.subr.bf16.mxu0 0
    %1460 = vmatpush1.bf16.msra.mxu0 0
    %1461 = vmatprep.mubr.bf16.mxu0 0
    %1462 = vmatmul.mubr.bf16.gmra.mrb[0].mxu0 %v1351
    %v1463 = vpop.f32.mrb[0].mxu0
    %v1464 = vadd.f32 %v1379, %v1463
    %v1465 = vpop.f32.mrb[0].mxu0
    %v1466 = vpop.f32.mrb[0].mxu0
    %v1467 = vadd.f32 %v1379, %v1466
    %v1468 = vpop.f32.mrb[0].mxu0
    %1469 = vmatprep.mubr.bf16.mxu0 0
    %1470 = vmatmul.mubr.bf16.gmra.mrb[0].mxu0 %v1352
    %v1471 = vpop.f32.mrb[0].mxu0
    %v1472 = vadd.f32 %v1379, %v1471
    %v1473 = vpop.f32.mrb[0].mxu0
    %v1474 = vpop.f32.mrb[0].mxu0
    %v1475 = vadd.f32 %v1379, %v1474
    %v1476 = vpop.f32.mrb[0].mxu0
    %1477 = vmatprep.mubr.bf16.mxu0 0
    %1478 = vmatmul.mubr.bf16.gmra.mrb[0].mxu0 %v1353
    %v1479 = vpop.f32.mrb[0].mxu0
    %v1480 = vadd.f32 %v1379, %v1479
    %v1481 = vpop.f32.mrb[0].mxu0
    %v1482 = vpop.f32.mrb[0].mxu0
    %v1483 = vadd.f32 %v1379, %v1482
    %v1484 = vpop.f32.mrb[0].mxu0
    %1485 = vmatprep.mubr.bf16.mxu0 0
    %1486 = vmatmul.mubr.bf16.gmra.mrb[0].mxu0 %v1354
    %v1487 = vpop.f32.mrb[0].mxu0
    %v1488 = vadd.f32 %v1379, %v1487
    %v1489 = vpop.f32.mrb[0].mxu0
    %v1490 = vpop.f32.mrb[0].mxu0
    %v1491 = vadd.f32 %v1379, %v1490
    %v1492 = vpop.f32.mrb[0].mxu0
    %1493 = vmatprep.mubr.bf16.mxu0 0
    %1494 = vmatmul.mubr.bf16.gmra.mrb[0].mxu0 %v1355
    %v1495 = vpop.f32.mrb[0].mxu0
    %v1496 = vadd.f32 %v1379, %v1495
    %v1497 = vpop.f32.mrb[0].mxu0
    %v1498 = vpop.f32.mrb[0].mxu0
    %v1499 = vadd.f32 %v1379, %v1498
    %v1500 = vpop.f32.mrb[0].mxu0
    %1501 = vmatprep.mubr.bf16.mxu0 0
    %1502 = vmatmul.mubr.bf16.gmra.mrb[0].mxu0 %v1356
    %v1503 = vpop.f32.mrb[0].mxu0
    %v1504 = vadd.f32 %v1379, %v1503
    %v1505 = vpop.f32.mrb[0].mxu0
    %v1506 = vpop.f32.mrb[0].mxu0
    %v1507 = vadd.f32 %v1379, %v1506
    %v1508 = vpop.f32.mrb[0].mxu0
    %1509 = vmatprep.mubr.bf16.mxu0 0
    %1510 = vmatmul.mubr.bf16.gmra.mrb[0].mxu0 %v1357
    %v1511 = vpop.f32.mrb[0].mxu0
    %v1512 = vadd.f32 %v1379, %v1511
    %v1513 = vpop.f32.mrb[0].mxu0
    %v1514 = vpop.f32.mrb[0].mxu0
    %v1515 = vadd.f32 %v1379, %v1514
    %v1516 = vpop.f32.mrb[0].mxu0
    %1517 = vmatprep.mubr.bf16.mxu0 0
    %1518 = vmatmul.mubr.bf16.gmra.mrb[0].mxu0 %v1358
    %v1519 = vpop.f32.mrb[0].mxu0
    %v1520 = vadd.f32 %v1379, %v1519
    %v1521 = vpop.f32.mrb[0].mxu0
    %v1522 = vpop.f32.mrb[0].mxu0
    %v1523 = vadd.f32 %v1379, %v1522
    %v1524 = vpop.f32.mrb[0].mxu0
    %1525 = vdwg.mxu0
    %v1526 = vtanh.pop %v1464
    %v1527 = vtanh.pop %v1467
    %v1528 = vtanh.pop %v1472
    %v1529 = vtanh.pop %v1475
    %v1530 = vtanh.pop %v1480
    %v1531 = vtanh.pop %v1483
    %v1532 = vtanh.pop %v1488
    %v1533 = vtanh.pop %v1491
    %v1534 = vtanh.pop %v1496
    %v1535 = vtanh.pop %v1499
    %v1536 = vtanh.pop %v1504
    %v1537 = vtanh.pop %v1507
    %v1538 = vtanh.pop %v1512
    %v1539 = vtanh.pop %v1515
    %v1540 = vtanh.pop %v1520
    %v1541 = vtanh.pop %v1523
    %v1542 = vpack.c.bf16 %v1527, %v1526
    %v1543 = vpack.c.bf16 %v1529, %v1528
    %v1544 = vpack.c.bf16 %v1531, %v1530
    %v1545 = vpack.c.bf16 %v1533, %v1532
    %v1546 = vpack.c.bf16 %v1535, %v1534
    %v1547 = vpack.c.bf16 %v1537, %v1536
    %v1548 = vpack.c.bf16 %v1539, %v1538
    %v1549 = vpack.c.bf16 %v1541, %v1540
    %v1550 = vld [vmem:[%s6] sm:$0xff]
    %v1551 = vld [vmem:[%s6 + $0x8] sm:$0xff]
    %v1552 = vld [vmem:[%s6 + $0x10] sm:$0xff]
    %v1553 = vld [vmem:[%s6 + $0x18] sm:$0xff]
    %v1554 = vld [vmem:[%s6 + $0x20] sm:$0xff]
    %v1555 = vld [vmem:[%s6 + $0x28] sm:$0xff]
    %v1556 = vld [vmem:[%s6 + $0x30] sm:$0xff]
    %v1557 = vld [vmem:[%s6 + $0x38] sm:$0xff]
    %v1558 = vld [vmem:[%s6 + $0x40] sm:$0xff]
    %v1559 = vld [vmem:[%s6 + $0x48] sm:$0xff]
    %v1560 = vld [vmem:[%s6 + $0x50] sm:$0xff]
    %v1561 = vld [vmem:[%s6 + $0x58] sm:$0xff]
    %v1562 = vld [vmem:[%s6 + $0x60] sm:$0xff]
    %v1563 = vld [vmem:[%s6 + $0x68] sm:$0xff]
    %v1564 = vld [vmem:[%s6 + $0x70] sm:$0xff]
    %v1565 = vld [vmem:[%s6 + $0x78] sm:$0xff]
    %v1566 = vld [vmem:[%s6 + $0x80] sm:$0xff]
    %v1567 = vld [vmem:[%s6 + $0x88] sm:$0xff]
    %v1568 = vld [vmem:[%s6 + $0x90] sm:$0xff]
    %v1569 = vld [vmem:[%s6 + $0x98] sm:$0xff]
    %v1570 = vld [vmem:[%s6 + $0xa0] sm:$0xff]
    %v1571 = vld [vmem:[%s6 + $0xa8] sm:$0xff]
    %v1572 = vld [vmem:[%s6 + $0xb0] sm:$0xff]
    %v1573 = vld [vmem:[%s6 + $0xb8] sm:$0xff]
    %v1574 = vld [vmem:[%s6 + $0xc0] sm:$0xff]
    %v1575 = vld [vmem:[%s6 + $0xc8] sm:$0xff]
    %v1576 = vld [vmem:[%s6 + $0xd0] sm:$0xff]
    %v1577 = vld [vmem:[%s6 + $0xd8] sm:$0xff]
    %v1578 = vld [vmem:[%s6 + $0xe0] sm:$0xff]
    %v1579 = vld [vmem:[%s6 + $0xe8] sm:$0xff]
    %v1580 = vld [vmem:[%s6 + $0xf0] sm:$0xff]
    %v1581 = vld [vmem:[%s6 + $0xf8] sm:$0xff]
    %v1583 = vlaneseq
    %v1584 = vshrl.u32 %v1583, 7
    %v1585 = vsub.s32 0, %v1584
    %v1586 = vrot.slane %v45, %v1585
    %v1587 = vlaneseq
    %v1588 = vshrl.u32 %v1587, 7
    %v1589 = vsub.s32 1, %v1588
    %v1590 = vrot.slane %v45, %v1589
    %v1591 = vlaneseq
    %v1592 = vshrl.u32 %v1591, 7
    %v1593 = vsub.s32 2, %v1592
    %v1594 = vrot.slane %v45, %v1593
    %v1595 = vlaneseq
    %v1596 = vshrl.u32 %v1595, 7
    %v1597 = vsub.s32 3, %v1596
    %v1598 = vrot.slane %v45, %v1597
    %v1635 = vunpack.c.l.b16 %v1550
    %v1636 = vunpack.c.h.b16 %v1550
    %v1637 = vunpack.c.l.b16 %v1551
    %v1638 = vunpack.c.h.b16 %v1551
    %v1639 = vunpack.c.l.b16 %v1552
    %v1640 = vunpack.c.h.b16 %v1552
    %v1641 = vunpack.c.l.b16 %v1553
    %v1642 = vunpack.c.h.b16 %v1553
    %v1643 = vunpack.c.l.b16 %v1554
    %v1644 = vunpack.c.h.b16 %v1554
    %v1645 = vunpack.c.l.b16 %v1555
    %v1646 = vunpack.c.h.b16 %v1555
    %v1647 = vunpack.c.l.b16 %v1556
    %v1648 = vunpack.c.h.b16 %v1556
    %v1649 = vunpack.c.l.b16 %v1557
    %v1650 = vunpack.c.h.b16 %v1557
    %v1651 = vunpack.c.l.b16 %v1558
    %v1652 = vunpack.c.h.b16 %v1558
    %v1653 = vunpack.c.l.b16 %v1559
    %v1654 = vunpack.c.h.b16 %v1559
    %v1655 = vunpack.c.l.b16 %v1560
    %v1656 = vunpack.c.h.b16 %v1560
    %v1657 = vunpack.c.l.b16 %v1561
    %v1658 = vunpack.c.h.b16 %v1561
    %v1659 = vunpack.c.l.b16 %v1562
    %v1660 = vunpack.c.h.b16 %v1562
    %v1661 = vunpack.c.l.b16 %v1563
    %v1662 = vunpack.c.h.b16 %v1563
    %v1663 = vunpack.c.l.b16 %v1564
    %v1664 = vunpack.c.h.b16 %v1564
    %v1665 = vunpack.c.l.b16 %v1565
    %v1666 = vunpack.c.h.b16 %v1565
    %v1667 = vunpack.c.l.b16 %v1566
    %v1668 = vunpack.c.h.b16 %v1566
    %v1669 = vunpack.c.l.b16 %v1567
    %v1670 = vunpack.c.h.b16 %v1567
    %v1671 = vunpack.c.l.b16 %v1568
    %v1672 = vunpack.c.h.b16 %v1568
    %v1673 = vunpack.c.l.b16 %v1569
    %v1674 = vunpack.c.h.b16 %v1569
    %v1675 = vunpack.c.l.b16 %v1570
    %v1676 = vunpack.c.h.b16 %v1570
    %v1677 = vunpack.c.l.b16 %v1571
    %v1678 = vunpack.c.h.b16 %v1571
    %v1679 = vunpack.c.l.b16 %v1572
    %v1680 = vunpack.c.h.b16 %v1572
    %v1681 = vunpack.c.l.b16 %v1573
    %v1682 = vunpack.c.h.b16 %v1573
    %v1683 = vunpack.c.l.b16 %v1574
    %v1684 = vunpack.c.h.b16 %v1574
    %v1685 = vunpack.c.l.b16 %v1575
    %v1686 = vunpack.c.h.b16 %v1575
    %v1687 = vunpack.c.l.b16 %v1576
    %v1688 = vunpack.c.h.b16 %v1576
    %v1689 = vunpack.c.l.b16 %v1577
    %v1690 = vunpack.c.h.b16 %v1577
    %v1691 = vunpack.c.l.b16 %v1578
    %v1692 = vunpack.c.h.b16 %v1578
    %v1693 = vunpack.c.l.b16 %v1579
    %v1694 = vunpack.c.h.b16 %v1579
    %v1695 = vunpack.c.l.b16 %v1580
    %v1696 = vunpack.c.h.b16 %v1580
    %v1697 = vunpack.c.l.b16 %v1581
    %v1698 = vunpack.c.h.b16 %v1581
    %v1699 = vpack.c.b16 %v1639, %v1635
    %v1700 = vpack.c.b16 %v1640, %v1636
    %v1701 = vpack.c.b16 %v1641, %v1637
    %v1702 = vpack.c.b16 %v1642, %v1638
    %v1703 = vpack.c.b16 %v1647, %v1643
    %v1704 = vpack.c.b16 %v1648, %v1644
    %v1705 = vpack.c.b16 %v1649, %v1645
    %v1706 = vpack.c.b16 %v1650, %v1646
    %v1707 = vpack.c.b16 %v1655, %v1651
    %v1708 = vpack.c.b16 %v1656, %v1652
    %v1709 = vpack.c.b16 %v1657, %v1653
    %v1710 = vpack.c.b16 %v1658, %v1654
    %v1711 = vpack.c.b16 %v1663, %v1659
    %v1712 = vpack.c.b16 %v1664, %v1660
    %v1713 = vpack.c.b16 %v1665, %v1661
    %v1714 = vpack.c.b16 %v1666, %v1662
    %v1715 = vpack.c.b16 %v1671, %v1667
    %v1716 = vpack.c.b16 %v1672, %v1668
    %v1717 = vpack.c.b16 %v1673, %v1669
    %v1718 = vpack.c.b16 %v1674, %v1670
    %v1719 = vpack.c.b16 %v1679, %v1675
    %v1720 = vpack.c.b16 %v1680, %v1676
    %v1721 = vpack.c.b16 %v1681, %v1677
    %v1722 = vpack.c.b16 %v1682, %v1678
    %v1723 = vpack.c.b16 %v1687, %v1683
    %v1724 = vpack.c.b16 %v1688, %v1684
    %v1725 = vpack.c.b16 %v1689, %v1685
    %v1726 = vpack.c.b16 %v1690, %v1686
    %v1727 = vpack.c.b16 %v1695, %v1691
    %v1728 = vpack.c.b16 %v1696, %v1692
    %v1729 = vpack.c.b16 %v1697, %v1693
    %v1730 = vpack.c.b16 %v1698, %v1694
    %1763 = vmatprep.subr.bf16.mxu0 %v1700
    %1764 = vmatpush1.bf16.msra.mxu0 %v1699
    %1765 = vmatprep.subr.bf16.mxu0 %v1704
    %1766 = vmatpush1.bf16.msra.mxu0 %v1703
    %1767 = vmatprep.subr.bf16.mxu0 %v1708
    %1768 = vmatpush1.bf16.msra.mxu0 %v1707
    %1769 = vmatprep.subr.bf16.mxu0 %v1712
    %1770 = vmatpush1.bf16.msra.mxu0 %v1711
    %1771 = vmatprep.subr.bf16.mxu0 %v1716
    %1772 = vmatpush1.bf16.msra.mxu0 %v1715
    %1773 = vmatprep.subr.bf16.mxu0 %v1720
    %1774 = vmatpush1.bf16.msra.mxu0 %v1719
    %1775 = vmatprep.subr.bf16.mxu0 %v1724
    %1776 = vmatpush1.bf16.msra.mxu0 %v1723
    %1777 = vmatprep.subr.bf16.mxu0 %v1728
    %1778 = vmatpush1.bf16.msra.mxu0 %v1727
    %1779 = vmatprep.subr.bf16.mxu0 0
    %1780 = vmatpush1.bf16.msra.mxu0 0
    %1781 = vmatprep.subr.bf16.mxu0 0
    %1782 = vmatpush1.bf16.msra.mxu0 0
    %1783 = vmatprep.subr.bf16.mxu0 0
    %1784 = vmatpush1.bf16.msra.mxu0 0
    %1785 = vmatprep.subr.bf16.mxu0 0
    %1786 = vmatpush1.bf16.msra.mxu0 0
    %1787 = vmatprep.subr.bf16.mxu0 0
    %1788 = vmatpush1.bf16.msra.mxu0 0
    %1789 = vmatprep.subr.bf16.mxu0 0
    %1790 = vmatpush1.bf16.msra.mxu0 0
    %1791 = vmatprep.subr.bf16.mxu0 0
    %1792 = vmatpush1.bf16.msra.mxu0 0
    %1793 = vmatprep.subr.bf16.mxu0 0
    %1794 = vmatpush1.bf16.msra.mxu0 0
    %1795 = vmatprep.mubr.bf16.mxu0 0
    %1796 = vmatmul.mubr.bf16.gmra.mrb[0].mxu0 %v1542
    %v1797 = vpop.f32.mrb[0].mxu0
    %v1798 = vadd.f32 %v1586, %v1797
    %v1799 = vpop.f32.mrb[0].mxu0
    %v1800 = vadd.f32 %v1590, %v1799
    %v1801 = vpop.f32.mrb[0].mxu0
    %v1802 = vadd.f32 %v1586, %v1801
    %v1803 = vpop.f32.mrb[0].mxu0
    %v1804 = vadd.f32 %v1590, %v1803
    %1805 = vmatprep.mubr.bf16.mxu0 0
    %1806 = vmatmul.mubr.bf16.gmra.mrb[0].mxu0 %v1543
    %v1807 = vpop.f32.mrb[0].mxu0
    %v1808 = vadd.f32 %v1586, %v1807
    %v1809 = vpop.f32.mrb[0].mxu0
    %v1810 = vadd.f32 %v1590, %v1809
    %v1811 = vpop.f32.mrb[0].mxu0
    %v1812 = vadd.f32 %v1586, %v1811
    %v1813 = vpop.f32.mrb[0].mxu0
    %v1814 = vadd.f32 %v1590, %v1813
    %1815 = vmatprep.mubr.bf16.mxu0 0
    %1816 = vmatmul.mubr.bf16.gmra.mrb[0].mxu0 %v1544
    %v1817 = vpop.f32.mrb[0].mxu0
    %v1818 = vadd.f32 %v1586, %v1817
    %v1819 = vpop.f32.mrb[0].mxu0
    %v1820 = vadd.f32 %v1590, %v1819
    %v1821 = vpop.f32.mrb[0].mxu0
    %v1822 = vadd.f32 %v1586, %v1821
    %v1823 = vpop.f32.mrb[0].mxu0
    %v1824 = vadd.f32 %v1590, %v1823
    %1825 = vmatprep.mubr.bf16.mxu0 0
    %1826 = vmatmul.mubr.bf16.gmra.mrb[0].mxu0 %v1545
    %v1827 = vpop.f32.mrb[0].mxu0
    %v1828 = vadd.f32 %v1586, %v1827
    %v1829 = vpop.f32.mrb[0].mxu0
    %v1830 = vadd.f32 %v1590, %v1829
    %v1831 = vpop.f32.mrb[0].mxu0
    %v1832 = vadd.f32 %v1586, %v1831
    %v1833 = vpop.f32.mrb[0].mxu0
    %v1834 = vadd.f32 %v1590, %v1833
    %1835 = vmatprep.mubr.bf16.mxu0 0
    %1836 = vmatmul.mubr.bf16.gmra.mrb[0].mxu0 %v1546
    %v1837 = vpop.f32.mrb[0].mxu0
    %v1838 = vadd.f32 %v1586, %v1837
    %v1839 = vpop.f32.mrb[0].mxu0
    %v1840 = vadd.f32 %v1590, %v1839
    %v1841 = vpop.f32.mrb[0].mxu0
    %v1842 = vadd.f32 %v1586, %v1841
    %v1843 = vpop.f32.mrb[0].mxu0
    %v1844 = vadd.f32 %v1590, %v1843
    %1845 = vmatprep.mubr.bf16.mxu0 0
    %1846 = vmatmul.mubr.bf16.gmra.mrb[0].mxu0 %v1547
    %v1847 = vpop.f32.mrb[0].mxu0
    %v1848 = vadd.f32 %v1586, %v1847
    %v1849 = vpop.f32.mrb[0].mxu0
    %v1850 = vadd.f32 %v1590, %v1849
    %v1851 = vpop.f32.mrb[0].mxu0
    %v1852 = vadd.f32 %v1586, %v1851
    %v1853 = vpop.f32.mrb[0].mxu0
    %v1854 = vadd.f32 %v1590, %v1853
    %1855 = vmatprep.mubr.bf16.mxu0 0
    %1856 = vmatmul.mubr.bf16.gmra.mrb[0].mxu0 %v1548
    %v1857 = vpop.f32.mrb[0].mxu0
    %v1858 = vadd.f32 %v1586, %v1857
    %v1859 = vpop.f32.mrb[0].mxu0
    %v1860 = vadd.f32 %v1590, %v1859
    %v1861 = vpop.f32.mrb[0].mxu0
    %v1862 = vadd.f32 %v1586, %v1861
    %v1863 = vpop.f32.mrb[0].mxu0
    %v1864 = vadd.f32 %v1590, %v1863
    %1865 = vmatprep.mubr.bf16.mxu0 0
    %1866 = vmatmul.mubr.bf16.gmra.mrb[0].mxu0 %v1549
    %v1867 = vpop.f32.mrb[0].mxu0
    %v1868 = vadd.f32 %v1586, %v1867
    %v1869 = vpop.f32.mrb[0].mxu0
    %v1870 = vadd.f32 %v1590, %v1869
    %v1871 = vpop.f32.mrb[0].mxu0
    %v1872 = vadd.f32 %v1586, %v1871
    %v1873 = vpop.f32.mrb[0].mxu0
    %v1874 = vadd.f32 %v1590, %v1873
    %1875 = vdwg.mxu0
    %1876 = vmatprep.subr.bf16.mxu0 %v1702
    %1877 = vmatpush1.bf16.msra.mxu0 %v1701
    %1878 = vmatprep.subr.bf16.mxu0 %v1706
    %1879 = vmatpush1.bf16.msra.mxu0 %v1705
    %1880 = vmatprep.subr.bf16.mxu0 %v1710
    %1881 = vmatpush1.bf16.msra.mxu0 %v1709
    %1882 = vmatprep.subr.bf16.mxu0 %v1714
    %1883 = vmatpush1.bf16.msra.mxu0 %v1713
    %1884 = vmatprep.subr.bf16.mxu0 %v1718
    %1885 = vmatpush1.bf16.msra.mxu0 %v1717
    %1886 = vmatprep.subr.bf16.mxu0 %v1722
    %1887 = vmatpush1.bf16.msra.mxu0 %v1721
    %1888 = vmatprep.subr.bf16.mxu0 %v1726
    %1889 = vmatpush1.bf16.msra.mxu0 %v1725
    %1890 = vmatprep.subr.bf16.mxu0 %v1730
    %1891 = vmatpush1.bf16.msra.mxu0 %v1729
    %1892 = vmatprep.subr.bf16.mxu0 0
    %1893 = vmatpush1.bf16.msra.mxu0 0
    %1894 = vmatprep.subr.bf16.mxu0 0
    %1895 = vmatpush1.bf16.msra.mxu0 0
    %1896 = vmatprep.subr.bf16.mxu0 0
    %1897 = vmatpush1.bf16.msra.mxu0 0
    %1898 = vmatprep.subr.bf16.mxu0 0
    %1899 = vmatpush1.bf16.msra.mxu0 0
    %1900 = vmatprep.subr.bf16.mxu0 0
    %1901 = vmatpush1.bf16.msra.mxu0 0
    %1902 = vmatprep.subr.bf16.mxu0 0
    %1903 = vmatpush1.bf16.msra.mxu0 0
    %1904 = vmatprep.subr.bf16.mxu0 0
    %1905 = vmatpush1.bf16.msra.mxu0 0
    %1906 = vmatprep.subr.bf16.mxu0 0
    %1907 = vmatpush1.bf16.msra.mxu0 0
    %1908 = vmatprep.mubr.bf16.mxu0 0
    %1909 = vmatmul.mubr.bf16.gmra.mrb[0].mxu0 %v1542
    %v1910 = vpop.f32.mrb[0].mxu0
    %v1911 = vadd.f32 %v1594, %v1910
    %v1912 = vpop.f32.mrb[0].mxu0
    %v1913 = vadd.f32 %v1598, %v1912
    %v1914 = vpop.f32.mrb[0].mxu0
    %v1915 = vadd.f32 %v1594, %v1914
    %v1916 = vpop.f32.mrb[0].mxu0
    %v1917 = vadd.f32 %v1598, %v1916
    %1918 = vmatprep.mubr.bf16.mxu0 0
    %1919 = vmatmul.mubr.bf16.gmra.mrb[0].mxu0 %v1543
    %v1920 = vpop.f32.mrb[0].mxu0
    %v1921 = vadd.f32 %v1594, %v1920
    %v1922 = vpop.f32.mrb[0].mxu0
    %v1923 = vadd.f32 %v1598, %v1922
    %v1924 = vpop.f32.mrb[0].mxu0
    %v1925 = vadd.f32 %v1594, %v1924
    %v1926 = vpop.f32.mrb[0].mxu0
    %v1927 = vadd.f32 %v1598, %v1926
    %1928 = vmatprep.mubr.bf16.mxu0 0
    %1929 = vmatmul.mubr.bf16.gmra.mrb[0].mxu0 %v1544
    %v1930 = vpop.f32.mrb[0].mxu0
    %v1931 = vadd.f32 %v1594, %v1930
    %v1932 = vpop.f32.mrb[0].mxu0
    %v1933 = vadd.f32 %v1598, %v1932
    %v1934 = vpop.f32.mrb[0].mxu0
    %v1935 = vadd.f32 %v1594, %v1934
    %v1936 = vpop.f32.mrb[0].mxu0
    %v1937 = vadd.f32 %v1598, %v1936
    %1938 = vmatprep.mubr.bf16.mxu0 0
    %1939 = vmatmul.mubr.bf16.gmra.mrb[0].mxu0 %v1545
    %v1940 = vpop.f32.mrb[0].mxu0
    %v1941 = vadd.f32 %v1594, %v1940
    %v1942 = vpop.f32.mrb[0].mxu0
    %v1943 = vadd.f32 %v1598, %v1942
    %v1944 = vpop.f32.mrb[0].mxu0
    %v1945 = vadd.f32 %v1594, %v1944
    %v1946 = vpop.f32.mrb[0].mxu0
    %v1947 = vadd.f32 %v1598, %v1946
    %1948 = vmatprep.mubr.bf16.mxu0 0
    %1949 = vmatmul.mubr.bf16.gmra.mrb[0].mxu0 %v1546
    %v1950 = vpop.f32.mrb[0].mxu0
    %v1951 = vadd.f32 %v1594, %v1950
    %v1952 = vpop.f32.mrb[0].mxu0
    %v1953 = vadd.f32 %v1598, %v1952
    %v1954 = vpop.f32.mrb[0].mxu0
    %v1955 = vadd.f32 %v1594, %v1954
    %v1956 = vpop.f32.mrb[0].mxu0
    %v1957 = vadd.f32 %v1598, %v1956
    %1958 = vmatprep.mubr.bf16.mxu0 0
    %1959 = vmatmul.mubr.bf16.gmra.mrb[0].mxu0 %v1547
    %v1960 = vpop.f32.mrb[0].mxu0
    %v1961 = vadd.f32 %v1594, %v1960
    %v1962 = vpop.f32.mrb[0].mxu0
    %v1963 = vadd.f32 %v1598, %v1962
    %v1964 = vpop.f32.mrb[0].mxu0
    %v1965 = vadd.f32 %v1594, %v1964
    %v1966 = vpop.f32.mrb[0].mxu0
    %v1967 = vadd.f32 %v1598, %v1966
    %1968 = vmatprep.mubr.bf16.mxu0 0
    %1969 = vmatmul.mubr.bf16.gmra.mrb[0].mxu0 %v1548
    %v1970 = vpop.f32.mrb[0].mxu0
    %v1971 = vadd.f32 %v1594, %v1970
    %v1972 = vpop.f32.mrb[0].mxu0
    %v1973 = vadd.f32 %v1598, %v1972
    %v1974 = vpop.f32.mrb[0].mxu0
    %v1975 = vadd.f32 %v1594, %v1974
    %v1976 = vpop.f32.mrb[0].mxu0
    %v1977 = vadd.f32 %v1598, %v1976
    %1978 = vmatprep.mubr.bf16.mxu0 0
    %1979 = vmatmul.mubr.bf16.gmra.mrb[0].mxu0 %v1549
    %v1980 = vpop.f32.mrb[0].mxu0
    %v1981 = vadd.f32 %v1594, %v1980
    %v1982 = vpop.f32.mrb[0].mxu0
    %v1983 = vadd.f32 %v1598, %v1982
    %v1984 = vpop.f32.mrb[0].mxu0
    %v1985 = vadd.f32 %v1594, %v1984
    %v1986 = vpop.f32.mrb[0].mxu0
    %v1987 = vadd.f32 %v1598, %v1986
    %1988 = vdwg.mxu0
    %1989 = vst [vmem:[#allocation2] sm:$0xff] %v1798
    %1990 = vst [vmem:[#allocation2 + $0x8] sm:$0xff] %v1800
    %1991 = vst [vmem:[#allocation2 + $0x10] sm:$0xff] %v1911
    %1992 = vst [vmem:[#allocation2 + $0x18] sm:$0xff] %v1913
    %1993 = vst [vmem:[#allocation2 + $0x20] sm:$0xff] %v1802
    %1994 = vst [vmem:[#allocation2 + $0x28] sm:$0xff] %v1804
    %1995 = vst [vmem:[#allocation2 + $0x30] sm:$0xff] %v1915
    %1996 = vst [vmem:[#allocation2 + $0x38] sm:$0xff] %v1917
    %1997 = vst [vmem:[#allocation2 + $0x40] sm:$0xff] %v1808
    %1998 = vst [vmem:[#allocation2 + $0x48] sm:$0xff] %v1810
    %1999 = vst [vmem:[#allocation2 + $0x50] sm:$0xff] %v1921
    %2000 = vst [vmem:[#allocation2 + $0x58] sm:$0xff] %v1923
    %2001 = vst [vmem:[#allocation2 + $0x60] sm:$0xff] %v1812
    %2002 = vst [vmem:[#allocation2 + $0x68] sm:$0xff] %v1814
    %2003 = vst [vmem:[#allocation2 + $0x70] sm:$0xff] %v1925
    %2004 = vst [vmem:[#allocation2 + $0x78] sm:$0xff] %v1927
    %2005 = vst [vmem:[#allocation2 + $0x80] sm:$0xff] %v1818
    %2006 = vst [vmem:[#allocation2 + $0x88] sm:$0xff] %v1820
    %2007 = vst [vmem:[#allocation2 + $0x90] sm:$0xff] %v1931
    %2008 = vst [vmem:[#allocation2 + $0x98] sm:$0xff] %v1933
    %2009 = vst [vmem:[#allocation2 + $0xa0] sm:$0xff] %v1822
    %2010 = vst [vmem:[#allocation2 + $0xa8] sm:$0xff] %v1824
    %2011 = vst [vmem:[#allocation2 + $0xb0] sm:$0xff] %v1935
    %2012 = vst [vmem:[#allocation2 + $0xb8] sm:$0xff] %v1937
    %2013 = vst [vmem:[#allocation2 + $0xc0] sm:$0xff] %v1828
    %2014 = vst [vmem:[#allocation2 + $0xc8] sm:$0xff] %v1830
    %2015 = vst [vmem:[#allocation2 + $0xd0] sm:$0xff] %v1941
    %2016 = vst [vmem:[#allocation2 + $0xd8] sm:$0xff] %v1943
    %2017 = vst [vmem:[#allocation2 + $0xe0] sm:$0xff] %v1832
    %2018 = vst [vmem:[#allocation2 + $0xe8] sm:$0xff] %v1834
    %2019 = vst [vmem:[#allocation2 + $0xf0] sm:$0xff] %v1945
    %2020 = vst [vmem:[#allocation2 + $0xf8] sm:$0xff] %v1947
    %2021 = vst [vmem:[#allocation2 + $0x100] sm:$0xff] %v1838
    %2022 = vst [vmem:[#allocation2 + $0x108] sm:$0xff] %v1840
    %2023 = vst [vmem:[#allocation2 + $0x110] sm:$0xff] %v1951
    %2024 = vst [vmem:[#allocation2 + $0x118] sm:$0xff] %v1953
    %2025 = vst [vmem:[#allocation2 + $0x120] sm:$0xff] %v1842
    %2026 = vst [vmem:[#allocation2 + $0x128] sm:$0xff] %v1844
    %2027 = vst [vmem:[#allocation2 + $0x130] sm:$0xff] %v1955
    %2028 = vst [vmem:[#allocation2 + $0x138] sm:$0xff] %v1957
    %2029 = vst [vmem:[#allocation2 + $0x140] sm:$0xff] %v1848
    %2030 = vst [vmem:[#allocation2 + $0x148] sm:$0xff] %v1850
    %2031 = vst [vmem:[#allocation2 + $0x150] sm:$0xff] %v1961
    %2032 = vst [vmem:[#allocation2 + $0x158] sm:$0xff] %v1963
    %2033 = vst [vmem:[#allocation2 + $0x160] sm:$0xff] %v1852
    %2034 = vst [vmem:[#allocation2 + $0x168] sm:$0xff] %v1854
    %2035 = vst [vmem:[#allocation2 + $0x170] sm:$0xff] %v1965
    %2036 = vst [vmem:[#allocation2 + $0x178] sm:$0xff] %v1967
    %2037 = vst [vmem:[#allocation2 + $0x180] sm:$0xff] %v1858
    %2038 = vst [vmem:[#allocation2 + $0x188] sm:$0xff] %v1860
    %2039 = vst [vmem:[#allocation2 + $0x190] sm:$0xff] %v1971
    %2040 = vst [vmem:[#allocation2 + $0x198] sm:$0xff] %v1973
    %2041 = vst [vmem:[#allocation2 + $0x1a0] sm:$0xff] %v1862
    %2042 = vst [vmem:[#allocation2 + $0x1a8] sm:$0xff] %v1864
    %2043 = vst [vmem:[#allocation2 + $0x1b0] sm:$0xff] %v1975
    %2044 = vst [vmem:[#allocation2 + $0x1b8] sm:$0xff] %v1977
    %2045 = vst [vmem:[#allocation2 + $0x1c0] sm:$0xff] %v1868
    %2046 = vst [vmem:[#allocation2 + $0x1c8] sm:$0xff] %v1870
    %2047 = vst [vmem:[#allocation2 + $0x1d0] sm:$0xff] %v1981
    %2048 = vst [vmem:[#allocation2 + $0x1d8] sm:$0xff] %v1983
    %2049 = vst [vmem:[#allocation2 + $0x1e0] sm:$0xff] %v1872
    %2050 = vst [vmem:[#allocation2 + $0x1e8] sm:$0xff] %v1874
    %2051 = vst [vmem:[#allocation2 + $0x1f0] sm:$0xff] %v1985
    %2052 = vst [vmem:[#allocation2 + $0x1f8] sm:$0xff] %v1987
    %v2053 = vld [vmem:[%s1] sm:$0xff]
    %v2054 = vld [vmem:[%s1 + $0x8] sm:$0xff]
    %v2055 = vld [vmem:[%s2] sm:$0xff]
    %v2056 = vld [vmem:[%s2 + $0x8] sm:$0xff]
    %v2057 = vld [vmem:[#allocation2] sm:$0xff]
    %v2058 = vld [vmem:[#allocation2 + $0x8] sm:$0xff]
    %v2059 = vld [vmem:[#allocation2 + $0x10] sm:$0xff]
    %v2060 = vld [vmem:[#allocation2 + $0x18] sm:$0xff]
    %v2061 = vld [vmem:[#allocation2 + $0x20] sm:$0xff]
    %v2062 = vld [vmem:[#allocation2 + $0x28] sm:$0xff]
    %v2063 = vld [vmem:[#allocation2 + $0x30] sm:$0xff]
    %v2064 = vld [vmem:[#allocation2 + $0x38] sm:$0xff]
    %v2065 = vpack.c.bf16 %v2054, %v2053
    %v2066 = vld [vmem:[%s7] sm:$0xff]
    %v2067 = vld [vmem:[%s7 + $0x8] sm:$0xff]
    %v2068 = vld [vmem:[%s7 + $0x10] sm:$0xff]
    %v2069 = vld [vmem:[%s7 + $0x18] sm:$0xff]
    %v2070 = vld [vmem:[%s7 + $0x20] sm:$0xff]
    %v2071 = vld [vmem:[%s7 + $0x28] sm:$0xff]
    %v2072 = vld [vmem:[%s7 + $0x30] sm:$0xff]
    %v2073 = vld [vmem:[%s7 + $0x38] sm:$0xff]
    %v2074 = vld [vmem:[%s7 + $0x40] sm:$0xff]
    %v2075 = vld [vmem:[%s7 + $0x48] sm:$0xff]
    %v2076 = vld [vmem:[%s7 + $0x50] sm:$0xff]
    %v2077 = vld [vmem:[%s7 + $0x58] sm:$0xff]
    %v2078 = vld [vmem:[%s7 + $0x60] sm:$0xff]
    %v2079 = vld [vmem:[%s7 + $0x68] sm:$0xff]
    %v2080 = vld [vmem:[%s7 + $0x70] sm:$0xff]
    %v2081 = vld [vmem:[%s7 + $0x78] sm:$0xff]
    %v2082 = vld [vmem:[%s7 + $0x80] sm:$0xff]
    %v2083 = vld [vmem:[%s7 + $0x88] sm:$0xff]
    %v2084 = vld [vmem:[%s7 + $0x90] sm:$0xff]
    %v2085 = vld [vmem:[%s7 + $0x98] sm:$0xff]
    %v2086 = vld [vmem:[%s7 + $0xa0] sm:$0xff]
    %v2087 = vld [vmem:[%s7 + $0xa8] sm:$0xff]
    %v2088 = vld [vmem:[%s7 + $0xb0] sm:$0xff]
    %v2089 = vld [vmem:[%s7 + $0xb8] sm:$0xff]
    %v2090 = vld [vmem:[%s7 + $0xc0] sm:$0xff]
    %v2091 = vld [vmem:[%s7 + $0xc8] sm:$0xff]
    %v2092 = vld [vmem:[%s7 + $0xd0] sm:$0xff]
    %v2093 = vld [vmem:[%s7 + $0xd8] sm:$0xff]
    %v2094 = vld [vmem:[%s7 + $0xe0] sm:$0xff]
    %v2095 = vld [vmem:[%s7 + $0xe8] sm:$0xff]
    %v2096 = vld [vmem:[%s7 + $0xf0] sm:$0xff]
    %v2097 = vld [vmem:[%s7 + $0xf8] sm:$0xff]
    %v2130 = vunpack.c.l.b16 %v2066
    %v2131 = vunpack.c.h.b16 %v2066
    %v2132 = vunpack.c.l.b16 %v2067
    %v2133 = vunpack.c.h.b16 %v2067
    %v2134 = vunpack.c.l.b16 %v2068
    %v2135 = vunpack.c.h.b16 %v2068
    %v2136 = vunpack.c.l.b16 %v2069
    %v2137 = vunpack.c.h.b16 %v2069
    %v2138 = vunpack.c.l.b16 %v2070
    %v2139 = vunpack.c.h.b16 %v2070
    %v2140 = vunpack.c.l.b16 %v2071
    %v2141 = vunpack.c.h.b16 %v2071
    %v2142 = vunpack.c.l.b16 %v2072
    %v2143 = vunpack.c.h.b16 %v2072
    %v2144 = vunpack.c.l.b16 %v2073
    %v2145 = vunpack.c.h.b16 %v2073
    %v2146 = vunpack.c.l.b16 %v2074
    %v2147 = vunpack.c.h.b16 %v2074
    %v2148 = vunpack.c.l.b16 %v2075
    %v2149 = vunpack.c.h.b16 %v2075
    %v2150 = vunpack.c.l.b16 %v2076
    %v2151 = vunpack.c.h.b16 %v2076
    %v2152 = vunpack.c.l.b16 %v2077
    %v2153 = vunpack.c.h.b16 %v2077
    %v2154 = vunpack.c.l.b16 %v2078
    %v2155 = vunpack.c.h.b16 %v2078
    %v2156 = vunpack.c.l.b16 %v2079
    %v2157 = vunpack.c.h.b16 %v2079
    %v2158 = vunpack.c.l.b16 %v2080
    %v2159 = vunpack.c.h.b16 %v2080
    %v2160 = vunpack.c.l.b16 %v2081
    %v2161 = vunpack.c.h.b16 %v2081
    %v2162 = vunpack.c.l.b16 %v2082
    %v2163 = vunpack.c.h.b16 %v2082
    %v2164 = vunpack.c.l.b16 %v2083
    %v2165 = vunpack.c.h.b16 %v2083
    %v2166 = vunpack.c.l.b16 %v2084
    %v2167 = vunpack.c.h.b16 %v2084
    %v2168 = vunpack.c.l.b16 %v2085
    %v2169 = vunpack.c.h.b16 %v2085
    %v2170 = vunpack.c.l.b16 %v2086
    %v2171 = vunpack.c.h.b16 %v2086
    %v2172 = vunpack.c.l.b16 %v2087
    %v2173 = vunpack.c.h.b16 %v2087
    %v2174 = vunpack.c.l.b16 %v2088
    %v2175 = vunpack.c.h.b16 %v2088
    %v2176 = vunpack.c.l.b16 %v2089
    %v2177 = vunpack.c.h.b16 %v2089
    %v2178 = vunpack.c.l.b16 %v2090
    %v2179 = vunpack.c.h.b16 %v2090
    %v2180 = vunpack.c.l.b16 %v2091
    %v2181 = vunpack.c.h.b16 %v2091
    %v2182 = vunpack.c.l.b16 %v2092
    %v2183 = vunpack.c.h.b16 %v2092
    %v2184 = vunpack.c.l.b16 %v2093
    %v2185 = vunpack.c.h.b16 %v2093
    %v2186 = vunpack.c.l.b16 %v2094
    %v2187 = vunpack.c.h.b16 %v2094
    %v2188 = vunpack.c.l.b16 %v2095
    %v2189 = vunpack.c.h.b16 %v2095
    %v2190 = vunpack.c.l.b16 %v2096
    %v2191 = vunpack.c.h.b16 %v2096
    %v2192 = vunpack.c.l.b16 %v2097
    %v2193 = vunpack.c.h.b16 %v2097
    %v2194 = vpack.c.b16 %v2134, %v2130
    %v2195 = vpack.c.b16 %v2135, %v2131
    %v2196 = vpack.c.b16 %v2136, %v2132
    %v2197 = vpack.c.b16 %v2137, %v2133
    %v2198 = vpack.c.b16 %v2142, %v2138
    %v2199 = vpack.c.b16 %v2143, %v2139
    %v2200 = vpack.c.b16 %v2144, %v2140
    %v2201 = vpack.c.b16 %v2145, %v2141
    %v2202 = vpack.c.b16 %v2150, %v2146
    %v2203 = vpack.c.b16 %v2151, %v2147
    %v2204 = vpack.c.b16 %v2152, %v2148
    %v2205 = vpack.c.b16 %v2153, %v2149
    %v2206 = vpack.c.b16 %v2158, %v2154
    %v2207 = vpack.c.b16 %v2159, %v2155
    %v2208 = vpack.c.b16 %v2160, %v2156
    %v2209 = vpack.c.b16 %v2161, %v2157
    %v2210 = vpack.c.b16 %v2166, %v2162
    %v2211 = vpack.c.b16 %v2167, %v2163
    %v2212 = vpack.c.b16 %v2168, %v2164
    %v2213 = vpack.c.b16 %v2169, %v2165
    %v2214 = vpack.c.b16 %v2174, %v2170
    %v2215 = vpack.c.b16 %v2175, %v2171
    %v2216 = vpack.c.b16 %v2176, %v2172
    %v2217 = vpack.c.b16 %v2177, %v2173
    %v2218 = vpack.c.b16 %v2182, %v2178
    %v2219 = vpack.c.b16 %v2183, %v2179
    %v2220 = vpack.c.b16 %v2184, %v2180
    %v2221 = vpack.c.b16 %v2185, %v2181
    %v2222 = vpack.c.b16 %v2190, %v2186
    %v2223 = vpack.c.b16 %v2191, %v2187
    %v2224 = vpack.c.b16 %v2192, %v2188
    %v2225 = vpack.c.b16 %v2193, %v2189
    %2258 = vmatprep.subr.bf16.mxu0 %v2195
    %2259 = vmatpush1.bf16.msra.mxu0 %v2194
    %2260 = vmatprep.subr.bf16.mxu0 %v2199
    %2261 = vmatpush1.bf16.msra.mxu0 %v2198
    %2262 = vmatprep.subr.bf16.mxu0 %v2203
    %2263 = vmatpush1.bf16.msra.mxu0 %v2202
    %2264 = vmatprep.subr.bf16.mxu0 %v2207
    %2265 = vmatpush1.bf16.msra.mxu0 %v2206
    %2266 = vmatprep.subr.bf16.mxu0 %v2211
    %2267 = vmatpush1.bf16.msra.mxu0 %v2210
    %2268 = vmatprep.subr.bf16.mxu0 %v2215
    %2269 = vmatpush1.bf16.msra.mxu0 %v2214
    %2270 = vmatprep.subr.bf16.mxu0 %v2219
    %2271 = vmatpush1.bf16.msra.mxu0 %v2218
    %2272 = vmatprep.subr.bf16.mxu0 %v2223
    %2273 = vmatpush1.bf16.msra.mxu0 %v2222
    %2274 = vmatprep.subr.bf16.mxu0 0
    %2275 = vmatpush1.bf16.msra.mxu0 0
    %2276 = vmatprep.subr.bf16.mxu0 0
    %2277 = vmatpush1.bf16.msra.mxu0 0
    %2278 = vmatprep.subr.bf16.mxu0 0
    %2279 = vmatpush1.bf16.msra.mxu0 0
    %2280 = vmatprep.subr.bf16.mxu0 0
    %2281 = vmatpush1.bf16.msra.mxu0 0
    %2282 = vmatprep.subr.bf16.mxu0 0
    %2283 = vmatpush1.bf16.msra.mxu0 0
    %2284 = vmatprep.subr.bf16.mxu0 0
    %2285 = vmatpush1.bf16.msra.mxu0 0
    %2286 = vmatprep.subr.bf16.mxu0 0
    %2287 = vmatpush1.bf16.msra.mxu0 0
    %2288 = vmatprep.subr.bf16.mxu0 0
    %2289 = vmatpush1.bf16.msra.mxu0 0
    %2290 = vmatprep.mubr.bf16.mxu0 0
    %2291 = vmatmul.mubr.bf16.gmra.mrb[0].mxu0 %v2065
    %v2292 = vpop.f32.mrb[0].mxu0
    %v2293 = vadd.f32 0.0, %v2292
    %v2294 = vpop.f32.mrb[0].mxu0
    %v2295 = vadd.f32 0.0, %v2294
    %v2296 = vpop.f32.mrb[0].mxu0
    %v2297 = vadd.f32 0.0, %v2296
    %v2298 = vpop.f32.mrb[0].mxu0
    %v2299 = vadd.f32 0.0, %v2298
    %2300 = vdwg.mxu0
    %2301 = vmatprep.subr.bf16.mxu0 %v2197
    %2302 = vmatpush1.bf16.msra.mxu0 %v2196
    %2303 = vmatprep.subr.bf16.mxu0 %v2201
    %2304 = vmatpush1.bf16.msra.mxu0 %v2200
    %2305 = vmatprep.subr.bf16.mxu0 %v2205
    %2306 = vmatpush1.bf16.msra.mxu0 %v2204
    %2307 = vmatprep.subr.bf16.mxu0 %v2209
    %2308 = vmatpush1.bf16.msra.mxu0 %v2208
    %2309 = vmatprep.subr.bf16.mxu0 %v2213
    %2310 = vmatpush1.bf16.msra.mxu0 %v2212
    %2311 = vmatprep.subr.bf16.mxu0 %v2217
    %2312 = vmatpush1.bf16.msra.mxu0 %v2216
    %2313 = vmatprep.subr.bf16.mxu0 %v2221
    %2314 = vmatpush1.bf16.msra.mxu0 %v2220
    %2315 = vmatprep.subr.bf16.mxu0 %v2225
    %2316 = vmatpush1.bf16.msra.mxu0 %v2224
    %2317 = vmatprep.subr.bf16.mxu0 0
    %2318 = vmatpush1.bf16.msra.mxu0 0
    %2319 = vmatprep.subr.bf16.mxu0 0
    %2320 = vmatpush1.bf16.msra.mxu0 0
    %2321 = vmatprep.subr.bf16.mxu0 0
    %2322 = vmatpush1.bf16.msra.mxu0 0
    %2323 = vmatprep.subr.bf16.mxu0 0
    %2324 = vmatpush1.bf16.msra.mxu0 0
    %2325 = vmatprep.subr.bf16.mxu0 0
    %2326 = vmatpush1.bf16.msra.mxu0 0
    %2327 = vmatprep.subr.bf16.mxu0 0
    %2328 = vmatpush1.bf16.msra.mxu0 0
    %2329 = vmatprep.subr.bf16.mxu0 0
    %2330 = vmatpush1.bf16.msra.mxu0 0
    %2331 = vmatprep.subr.bf16.mxu0 0
    %2332 = vmatpush1.bf16.msra.mxu0 0
    %2333 = vmatprep.mubr.bf16.mxu0 0
    %2334 = vmatmul.mubr.bf16.gmra.mrb[0].mxu0 %v2065
    %v2335 = vpop.f32.mrb[0].mxu0
    %v2336 = vadd.f32 0.0, %v2335
    %v2337 = vpop.f32.mrb[0].mxu0
    %v2338 = vadd.f32 0.0, %v2337
    %v2339 = vpop.f32.mrb[0].mxu0
    %v2340 = vadd.f32 0.0, %v2339
    %v2341 = vpop.f32.mrb[0].mxu0
    %v2342 = vadd.f32 0.0, %v2341
    %2343 = vdwg.mxu0
    %v2344 = vadd.f32 %v2057, %v2293
    %v2345 = vadd.f32 %v2058, %v2295
    %v2346 = vadd.f32 %v2059, %v2336
    %v2347 = vadd.f32 %v2060, %v2338
    %v2348 = vadd.f32 %v2061, %v2297
    %v2349 = vadd.f32 %v2062, %v2299
    %v2350 = vadd.f32 %v2063, %v2340
    %v2351 = vadd.f32 %v2064, %v2342
    %v2352 = vxor.u32 %v2344, 2147483648
    %v2353 = vxor.u32 %v2348, 2147483648
    %v2354 = vmul.f32 %v2352, 1.442695
    %v2355 = vpow.pop %v2354
    %v2356 = vmul.f32 %v2353, 1.442695
    %v2357 = vpow.pop %v2356
    %v2358 = vadd.f32 %v2355, 1.0
    %v2359 = vadd.f32 %v2357, 1.0
    %v2360 = vrcp.pop %v2358
    %v2361 = vmul.f32 1.0, %v2360
    %v2362 = vrcp.pop %v2359
    %v2363 = vmul.f32 1.0, %v2362
    %v2364 = vxor.u32 %v2345, 2147483648
    %v2365 = vxor.u32 %v2349, 2147483648
    %v2366 = vmul.f32 %v2364, 1.442695
    %v2367 = vpow.pop %v2366
    %v2368 = vmul.f32 %v2365, 1.442695
    %v2369 = vpow.pop %v2368
    %v2370 = vadd.f32 %v2367, 1.0
    %v2371 = vadd.f32 %v2369, 1.0
    %v2372 = vrcp.pop %v2370
    %v2373 = vmul.f32 1.0, %v2372
    %v2374 = vrcp.pop %v2371
    %v2375 = vmul.f32 1.0, %v2374
    %v2376 = vtanh.pop %v2346
    %v2377 = vtanh.pop %v2350
    %v2378 = vxor.u32 %v2347, 2147483648
    %v2379 = vxor.u32 %v2351, 2147483648
    %v2380 = vmul.f32 %v2378, 1.442695
    %v2381 = vpow.pop %v2380
    %v2382 = vmul.f32 %v2379, 1.442695
    %v2383 = vpow.pop %v2382
    %v2384 = vadd.f32 %v2381, 1.0
    %v2385 = vadd.f32 %v2383, 1.0
    %v2386 = vrcp.pop %v2384
    %v2387 = vmul.f32 1.0, %v2386
    %v2388 = vrcp.pop %v2385
    %v2389 = vmul.f32 1.0, %v2388
    %v2390 = vmul.f32 %v2373, %v2055
    %v2391 = vmul.f32 %v2375, %v2056
    %v2392 = vmul.f32 %v2361, %v2376
    %v2393 = vmul.f32 %v2363, %v2377
    %v2394 = vadd.f32 %v2390, %v2392
    %v2395 = vadd.f32 %v2391, %v2393
    %v2396 = vtanh.pop %v2394
    %v2397 = vtanh.pop %v2395
    %v2398 = vmul.f32 %v2387, %v2396
    %v2399 = vmul.f32 %v2389, %v2397
    %2400 = vst [vmem:[#allocation3] sm:$0xff] %v2398
    %2401 = vst [vmem:[#allocation3 + $0x8] sm:$0xff] %v2399
    %v2402 = vld [vmem:[#allocation2 + $0x40] sm:$0xff]
    %v2403 = vld [vmem:[#allocation2 + $0x48] sm:$0xff]
    %v2404 = vld [vmem:[#allocation2 + $0x50] sm:$0xff]
    %v2405 = vld [vmem:[#allocation2 + $0x58] sm:$0xff]
    %v2406 = vld [vmem:[#allocation2 + $0x60] sm:$0xff]
    %v2407 = vld [vmem:[#allocation2 + $0x68] sm:$0xff]
    %v2408 = vld [vmem:[#allocation2 + $0x70] sm:$0xff]
    %v2409 = vld [vmem:[#allocation2 + $0x78] sm:$0xff]
    %v2410 = vpack.c.bf16 %v2399, %v2398
    %v2411 = vld [vmem:[%s7] sm:$0xff]
    %v2412 = vld [vmem:[%s7 + $0x8] sm:$0xff]
    %v2413 = vld [vmem:[%s7 + $0x10] sm:$0xff]
    %v2414 = vld [vmem:[%s7 + $0x18] sm:$0xff]
    %v2415 = vld [vmem:[%s7 + $0x20] sm:$0xff]
    %v2416 = vld [vmem:[%s7 + $0x28] sm:$0xff]
    %v2417 = vld [vmem:[%s7 + $0x30] sm:$0xff]
    %v2418 = vld [vmem:[%s7 + $0x38] sm:$0xff]
    %v2419 = vld [vmem:[%s7 + $0x40] sm:$0xff]
    %v2420 = vld [vmem:[%s7 + $0x48] sm:$0xff]
    %v2421 = vld [vmem:[%s7 + $0x50] sm:$0xff]
    %v2422 = vld [vmem:[%s7 + $0x58] sm:$0xff]
    %v2423 = vld [vmem:[%s7 + $0x60] sm:$0xff]
    %v2424 = vld [vmem:[%s7 + $0x68] sm:$0xff]
    %v2425 = vld [vmem:[%s7 + $0x70] sm:$0xff]
    %v2426 = vld [vmem:[%s7 + $0x78] sm:$0xff]
    %v2427 = vld [vmem:[%s7 + $0x80] sm:$0xff]
    %v2428 = vld [vmem:[%s7 + $0x88] sm:$0xff]
    %v2429 = vld [vmem:[%s7 + $0x90] sm:$0xff]
    %v2430 = vld [vmem:[%s7 + $0x98] sm:$0xff]
    %v2431 = vld [vmem:[%s7 + $0xa0] sm:$0xff]
    %v2432 = vld [vmem:[%s7 + $0xa8] sm:$0xff]
    %v2433 = vld [vmem:[%s7 + $0xb0] sm:$0xff]
    %v2434 = vld [vmem:[%s7 + $0xb8] sm:$0xff]
    %v2435 = vld [vmem:[%s7 + $0xc0] sm:$0xff]
    %v2436 = vld [vmem:[%s7 + $0xc8] sm:$0xff]
    %v2437 = vld [vmem:[%s7 + $0xd0] sm:$0xff]
    %v2438 = vld [vmem:[%s7 + $0xd8] sm:$0xff]
    %v2439 = vld [vmem:[%s7 + $0xe0] sm:$0xff]
    %v2440 = vld [vmem:[%s7 + $0xe8] sm:$0xff]
    %v2441 = vld [vmem:[%s7 + $0xf0] sm:$0xff]
    %v2442 = vld [vmem:[%s7 + $0xf8] sm:$0xff]
    %v2475 = vunpack.c.l.b16 %v2411
    %v2476 = vunpack.c.h.b16 %v2411
    %v2477 = vunpack.c.l.b16 %v2412
    %v2478 = vunpack.c.h.b16 %v2412
    %v2479 = vunpack.c.l.b16 %v2413
    %v2480 = vunpack.c.h.b16 %v2413
    %v2481 = vunpack.c.l.b16 %v2414
    %v2482 = vunpack.c.h.b16 %v2414
    %v2483 = vunpack.c.l.b16 %v2415
    %v2484 = vunpack.c.h.b16 %v2415
    %v2485 = vunpack.c.l.b16 %v2416
    %v2486 = vunpack.c.h.b16 %v2416
    %v2487 = vunpack.c.l.b16 %v2417
    %v2488 = vunpack.c.h.b16 %v2417
    %v2489 = vunpack.c.l.b16 %v2418
    %v2490 = vunpack.c.h.b16 %v2418
    %v2491 = vunpack.c.l.b16 %v2419
    %v2492 = vunpack.c.h.b16 %v2419
    %v2493 = vunpack.c.l.b16 %v2420
    %v2494 = vunpack.c.h.b16 %v2420
    %v2495 = vunpack.c.l.b16 %v2421
    %v2496 = vunpack.c.h.b16 %v2421
    %v2497 = vunpack.c.l.b16 %v2422
    %v2498 = vunpack.c.h.b16 %v2422
    %v2499 = vunpack.c.l.b16 %v2423
    %v2500 = vunpack.c.h.b16 %v2423
    %v2501 = vunpack.c.l.b16 %v2424
    %v2502 = vunpack.c.h.b16 %v2424
    %v2503 = vunpack.c.l.b16 %v2425
    %v2504 = vunpack.c.h.b16 %v2425
    %v2505 = vunpack.c.l.b16 %v2426
    %v2506 = vunpack.c.h.b16 %v2426
    %v2507 = vunpack.c.l.b16 %v2427
    %v2508 = vunpack.c.h.b16 %v2427
    %v2509 = vunpack.c.l.b16 %v2428
    %v2510 = vunpack.c.h.b16 %v2428
    %v2511 = vunpack.c.l.b16 %v2429
    %v2512 = vunpack.c.h.b16 %v2429
    %v2513 = vunpack.c.l.b16 %v2430
    %v2514 = vunpack.c.h.b16 %v2430
    %v2515 = vunpack.c.l.b16 %v2431
    %v2516 = vunpack.c.h.b16 %v2431
    %v2517 = vunpack.c.l.b16 %v2432
    %v2518 = vunpack.c.h.b16 %v2432
    %v2519 = vunpack.c.l.b16 %v2433
    %v2520 = vunpack.c.h.b16 %v2433
    %v2521 = vunpack.c.l.b16 %v2434
    %v2522 = vunpack.c.h.b16 %v2434
    %v2523 = vunpack.c.l.b16 %v2435
    %v2524 = vunpack.c.h.b16 %v2435
    %v2525 = vunpack.c.l.b16 %v2436
    %v2526 = vunpack.c.h.b16 %v2436
    %v2527 = vunpack.c.l.b16 %v2437
    %v2528 = vunpack.c.h.b16 %v2437
    %v2529 = vunpack.c.l.b16 %v2438
    %v2530 = vunpack.c.h.b16 %v2438
    %v2531 = vunpack.c.l.b16 %v2439
    %v2532 = vunpack.c.h.b16 %v2439
    %v2533 = vunpack.c.l.b16 %v2440
    %v2534 = vunpack.c.h.b16 %v2440
    %v2535 = vunpack.c.l.b16 %v2441
    %v2536 = vunpack.c.h.b16 %v2441
    %v2537 = vunpack.c.l.b16 %v2442
    %v2538 = vunpack.c.h.b16 %v2442
    %v2539 = vpack.c.b16 %v2479, %v2475
    %v2540 = vpack.c.b16 %v2480, %v2476
    %v2541 = vpack.c.b16 %v2481, %v2477
    %v2542 = vpack.c.b16 %v2482, %v2478
    %v2543 = vpack.c.b16 %v2487, %v2483
    %v2544 = vpack.c.b16 %v2488, %v2484
    %v2545 = vpack.c.b16 %v2489, %v2485
    %v2546 = vpack.c.b16 %v2490, %v2486
    %v2547 = vpack.c.b16 %v2495, %v2491
    %v2548 = vpack.c.b16 %v2496, %v2492
    %v2549 = vpack.c.b16 %v2497, %v2493
    %v2550 = vpack.c.b16 %v2498, %v2494
    %v2551 = vpack.c.b16 %v2503, %v2499
    %v2552 = vpack.c.b16 %v2504, %v2500
    %v2553 = vpack.c.b16 %v2505, %v2501
    %v2554 = vpack.c.b16 %v2506, %v2502
    %v2555 = vpack.c.b16 %v2511, %v2507
    %v2556 = vpack.c.b16 %v2512, %v2508
    %v2557 = vpack.c.b16 %v2513, %v2509
    %v2558 = vpack.c.b16 %v2514, %v2510
    %v2559 = vpack.c.b16 %v2519, %v2515
    %v2560 = vpack.c.b16 %v2520, %v2516
    %v2561 = vpack.c.b16 %v2521, %v2517
    %v2562 = vpack.c.b16 %v2522, %v2518
    %v2563 = vpack.c.b16 %v2527, %v2523
    %v2564 = vpack.c.b16 %v2528, %v2524
    %v2565 = vpack.c.b16 %v2529, %v2525
    %v2566 = vpack.c.b16 %v2530, %v2526
    %v2567 = vpack.c.b16 %v2535, %v2531
    %v2568 = vpack.c.b16 %v2536, %v2532
    %v2569 = vpack.c.b16 %v2537, %v2533
    %v2570 = vpack.c.b16 %v2538, %v2534
    %2603 = vmatprep.subr.bf16.mxu0 %v2540
    %2604 = vmatpush1.bf16.msra.mxu0 %v2539
    %2605 = vmatprep.subr.bf16.mxu0 %v2544
    %2606 = vmatpush1.bf16.msra.mxu0 %v2543
    %2607 = vmatprep.subr.bf16.mxu0 %v2548
    %2608 = vmatpush1.bf16.msra.mxu0 %v2547
    %2609 = vmatprep.subr.bf16.mxu0 %v2552
    %2610 = vmatpush1.bf16.msra.mxu0 %v2551
    %2611 = vmatprep.subr.bf16.mxu0 %v2556
    %2612 = vmatpush1.bf16.msra.mxu0 %v2555
    %2613 = vmatprep.subr.bf16.mxu0 %v2560
    %2614 = vmatpush1.bf16.msra.mxu0 %v2559
    %2615 = vmatprep.subr.bf16.mxu0 %v2564
    %2616 = vmatpush1.bf16.msra.mxu0 %v2563
    %2617 = vmatprep.subr.bf16.mxu0 %v2568
    %2618 = vmatpush1.bf16.msra.mxu0 %v2567
    %2619 = vmatprep.subr.bf16.mxu0 0
    %2620 = vmatpush1.bf16.msra.mxu0 0
    %2621 = vmatprep.subr.bf16.mxu0 0
    %2622 = vmatpush1.bf16.msra.mxu0 0
    %2623 = vmatprep.subr.bf16.mxu0 0
    %2624 = vmatpush1.bf16.msra.mxu0 0
    %2625 = vmatprep.subr.bf16.mxu0 0
    %2626 = vmatpush1.bf16.msra.mxu0 0
    %2627 = vmatprep.subr.bf16.mxu0 0
    %2628 = vmatpush1.bf16.msra.mxu0 0
    %2629 = vmatprep.subr.bf16.mxu0 0
    %2630 = vmatpush1.bf16.msra.mxu0 0
    %2631 = vmatprep.subr.bf16.mxu0 0
    %2632 = vmatpush1.bf16.msra.mxu0 0
    %2633 = vmatprep.subr.bf16.mxu0 0
    %2634 = vmatpush1.bf16.msra.mxu0 0
    %2635 = vmatprep.mubr.bf16.mxu0 0
    %2636 = vmatmul.mubr.bf16.gmra.mrb[0].mxu0 %v2410
    %v2637 = vpop.f32.mrb[0].mxu0
    %v2638 = vadd.f32 0.0, %v2637
    %v2639 = vpop.f32.mrb[0].mxu0
    %v2640 = vadd.f32 0.0, %v2639
    %v2641 = vpop.f32.mrb[0].mxu0
    %v2642 = vadd.f32 0.0, %v2641
    %v2643 = vpop.f32.mrb[0].mxu0
    %v2644 = vadd.f32 0.0, %v2643
    %2645 = vdwg.mxu0
    %2646 = vmatprep.subr.bf16.mxu0 %v2542
    %2647 = vmatpush1.bf16.msra.mxu0 %v2541
    %2648 = vmatprep.subr.bf16.mxu0 %v2546
    %2649 = vmatpush1.bf16.msra.mxu0 %v2545
    %2650 = vmatprep.subr.bf16.mxu0 %v2550
    %2651 = vmatpush1.bf16.msra.mxu0 %v2549
    %2652 = vmatprep.subr.bf16.mxu0 %v2554
    %2653 = vmatpush1.bf16.msra.mxu0 %v2553
    %2654 = vmatprep.subr.bf16.mxu0 %v2558
    %2655 = vmatpush1.bf16.msra.mxu0 %v2557
    %2656 = vmatprep.subr.bf16.mxu0 %v2562
    %2657 = vmatpush1.bf16.msra.mxu0 %v2561
    %2658 = vmatprep.subr.bf16.mxu0 %v2566
    %2659 = vmatpush1.bf16.msra.mxu0 %v2565
    %2660 = vmatprep.subr.bf16.mxu0 %v2570
    %2661 = vmatpush1.bf16.msra.mxu0 %v2569
    %2662 = vmatprep.subr.bf16.mxu0 0
    %2663 = vmatpush1.bf16.msra.mxu0 0
    %2664 = vmatprep.subr.bf16.mxu0 0
    %2665 = vmatpush1.bf16.msra.mxu0 0
    %2666 = vmatprep.subr.bf16.mxu0 0
    %2667 = vmatpush1.bf16.msra.mxu0 0
    %2668 = vmatprep.subr.bf16.mxu0 0
    %2669 = vmatpush1.bf16.msra.mxu0 0
    %2670 = vmatprep.subr.bf16.mxu0 0
    %2671 = vmatpush1.bf16.msra.mxu0 0
    %2672 = vmatprep.subr.bf16.mxu0 0
    %2673 = vmatpush1.bf16.msra.mxu0 0
    %2674 = vmatprep.subr.bf16.mxu0 0
    %2675 = vmatpush1.bf16.msra.mxu0 0
    %2676 = vmatprep.subr.bf16.mxu0 0
    %2677 = vmatpush1.bf16.msra.mxu0 0
    %2678 = vmatprep.mubr.bf16.mxu0 0
    %2679 = vmatmul.mubr.bf16.gmra.mrb[0].mxu0 %v2410
    %v2680 = vpop.f32.mrb[0].mxu0
    %v2681 = vadd.f32 0.0, %v2680
    %v2682 = vpop.f32.mrb[0].mxu0
    %v2683 = vadd.f32 0.0, %v2682
    %v2684 = vpop.f32.mrb[0].mxu0
    %v2685 = vadd.f32 0.0, %v2684
    %v2686 = vpop.f32.mrb[0].mxu0
    %v2687 = vadd.f32 0.0, %v2686
    %2688 = vdwg.mxu0
    %v2689 = vadd.f32 %v2402, %v2638
    %v2690 = vadd.f32 %v2403, %v2640
    %v2691 = vadd.f32 %v2404, %v2681
    %v2692 = vadd.f32 %v2405, %v2683
    %v2693 = vadd.f32 %v2406, %v2642
    %v2694 = vadd.f32 %v2407, %v2644
    %v2695 = vadd.f32 %v2408, %v2685
    %v2696 = vadd.f32 %v2409, %v2687
    %v2697 = vxor.u32 %v2689, 2147483648
    %v2698 = vxor.u32 %v2693, 2147483648
    %v2699 = vmul.f32 %v2697, 1.442695
    %v2700 = vpow.pop %v2699
    %v2701 = vmul.f32 %v2698, 1.442695
    %v2702 = vpow.pop %v2701
    %v2703 = vadd.f32 %v2700, 1.0
    %v2704 = vadd.f32 %v2702, 1.0
    %v2705 = vrcp.pop %v2703
    %v2706 = vmul.f32 1.0, %v2705
    %v2707 = vrcp.pop %v2704
    %v2708 = vmul.f32 1.0, %v2707
    %v2709 = vxor.u32 %v2690, 2147483648
    %v2710 = vxor.u32 %v2694, 2147483648
    %v2711 = vmul.f32 %v2709, 1.442695
    %v2712 = vpow.pop %v2711
    %v2713 = vmul.f32 %v2710, 1.442695
    %v2714 = vpow.pop %v2713
    %v2715 = vadd.f32 %v2712, 1.0
    %v2716 = vadd.f32 %v2714, 1.0
    %v2717 = vrcp.pop %v2715
    %v2718 = vmul.f32 1.0, %v2717
    %v2719 = vrcp.pop %v2716
    %v2720 = vmul.f32 1.0, %v2719
    %v2721 = vtanh.pop %v2691
    %v2722 = vtanh.pop %v2695
    %v2723 = vxor.u32 %v2692, 2147483648
    %v2724 = vxor.u32 %v2696, 2147483648
    %v2725 = vmul.f32 %v2723, 1.442695
    %v2726 = vpow.pop %v2725
    %v2727 = vmul.f32 %v2724, 1.442695
    %v2728 = vpow.pop %v2727
    %v2729 = vadd.f32 %v2726, 1.0
    %v2730 = vadd.f32 %v2728, 1.0
    %v2731 = vrcp.pop %v2729
    %v2732 = vmul.f32 1.0, %v2731
    %v2733 = vrcp.pop %v2730
    %v2734 = vmul.f32 1.0, %v2733
    %v2735 = vmul.f32 %v2718, %v2394
    %v2736 = vmul.f32 %v2720, %v2395
    %v2737 = vmul.f32 %v2706, %v2721
    %v2738 = vmul.f32 %v2708, %v2722
    %v2739 = vadd.f32 %v2735, %v2737
    %v2740 = vadd.f32 %v2736, %v2738
    %v2741 = vtanh.pop %v2739
    %v2742 = vtanh.pop %v2740
    %v2743 = vmul.f32 %v2732, %v2741
    %v2744 = vmul.f32 %v2734, %v2742
    %2745 = vst [vmem:[#allocation3 + $0x10] sm:$0xff] %v2743
    %2746 = vst [vmem:[#allocation3 + $0x18] sm:$0xff] %v2744
    %v2747 = vld [vmem:[#allocation2 + $0x80] sm:$0xff]
    %v2748 = vld [vmem:[#allocation2 + $0x88] sm:$0xff]
    %v2749 = vld [vmem:[#allocation2 + $0x90] sm:$0xff]
    %v2750 = vld [vmem:[#allocation2 + $0x98] sm:$0xff]
    %v2751 = vld [vmem:[#allocation2 + $0xa0] sm:$0xff]
    %v2752 = vld [vmem:[#allocation2 + $0xa8] sm:$0xff]
    %v2753 = vld [vmem:[#allocation2 + $0xb0] sm:$0xff]
    %v2754 = vld [vmem:[#allocation2 + $0xb8] sm:$0xff]
    %v2755 = vpack.c.bf16 %v2744, %v2743
    %v2756 = vld [vmem:[%s7] sm:$0xff]
    %v2757 = vld [vmem:[%s7 + $0x8] sm:$0xff]
    %v2758 = vld [vmem:[%s7 + $0x10] sm:$0xff]
    %v2759 = vld [vmem:[%s7 + $0x18] sm:$0xff]
    %v2760 = vld [vmem:[%s7 + $0x20] sm:$0xff]
    %v2761 = vld [vmem:[%s7 + $0x28] sm:$0xff]
    %v2762 = vld [vmem:[%s7 + $0x30] sm:$0xff]
    %v2763 = vld [vmem:[%s7 + $0x38] sm:$0xff]
    %v2764 = vld [vmem:[%s7 + $0x40] sm:$0xff]
    %v2765 = vld [vmem:[%s7 + $0x48] sm:$0xff]
    %v2766 = vld [vmem:[%s7 + $0x50] sm:$0xff]
    %v2767 = vld [vmem:[%s7 + $0x58] sm:$0xff]
    %v2768 = vld [vmem:[%s7 + $0x60] sm:$0xff]
    %v2769 = vld [vmem:[%s7 + $0x68] sm:$0xff]
    %v2770 = vld [vmem:[%s7 + $0x70] sm:$0xff]
    %v2771 = vld [vmem:[%s7 + $0x78] sm:$0xff]
    %v2772 = vld [vmem:[%s7 + $0x80] sm:$0xff]
    %v2773 = vld [vmem:[%s7 + $0x88] sm:$0xff]
    %v2774 = vld [vmem:[%s7 + $0x90] sm:$0xff]
    %v2775 = vld [vmem:[%s7 + $0x98] sm:$0xff]
    %v2776 = vld [vmem:[%s7 + $0xa0] sm:$0xff]
    %v2777 = vld [vmem:[%s7 + $0xa8] sm:$0xff]
    %v2778 = vld [vmem:[%s7 + $0xb0] sm:$0xff]
    %v2779 = vld [vmem:[%s7 + $0xb8] sm:$0xff]
    %v2780 = vld [vmem:[%s7 + $0xc0] sm:$0xff]
    %v2781 = vld [vmem:[%s7 + $0xc8] sm:$0xff]
    %v2782 = vld [vmem:[%s7 + $0xd0] sm:$0xff]
    %v2783 = vld [vmem:[%s7 + $0xd8] sm:$0xff]
    %v2784 = vld [vmem:[%s7 + $0xe0] sm:$0xff]
    %v2785 = vld [vmem:[%s7 + $0xe8] sm:$0xff]
    %v2786 = vld [vmem:[%s7 + $0xf0] sm:$0xff]
    %v2787 = vld [vmem:[%s7 + $0xf8] sm:$0xff]
    %v2820 = vunpack.c.l.b16 %v2756
    %v2821 = vunpack.c.h.b16 %v2756
    %v2822 = vunpack.c.l.b16 %v2757
    %v2823 = vunpack.c.h.b16 %v2757
    %v2824 = vunpack.c.l.b16 %v2758
    %v2825 = vunpack.c.h.b16 %v2758
    %v2826 = vunpack.c.l.b16 %v2759
    %v2827 = vunpack.c.h.b16 %v2759
    %v2828 = vunpack.c.l.b16 %v2760
    %v2829 = vunpack.c.h.b16 %v2760
    %v2830 = vunpack.c.l.b16 %v2761
    %v2831 = vunpack.c.h.b16 %v2761
    %v2832 = vunpack.c.l.b16 %v2762
    %v2833 = vunpack.c.h.b16 %v2762
    %v2834 = vunpack.c.l.b16 %v2763
    %v2835 = vunpack.c.h.b16 %v2763
    %v2836 = vunpack.c.l.b16 %v2764
    %v2837 = vunpack.c.h.b16 %v2764
    %v2838 = vunpack.c.l.b16 %v2765
    %v2839 = vunpack.c.h.b16 %v2765
    %v2840 = vunpack.c.l.b16 %v2766
    %v2841 = vunpack.c.h.b16 %v2766
    %v2842 = vunpack.c.l.b16 %v2767
    %v2843 = vunpack.c.h.b16 %v2767
    %v2844 = vunpack.c.l.b16 %v2768
    %v2845 = vunpack.c.h.b16 %v2768
    %v2846 = vunpack.c.l.b16 %v2769
    %v2847 = vunpack.c.h.b16 %v2769
    %v2848 = vunpack.c.l.b16 %v2770
    %v2849 = vunpack.c.h.b16 %v2770
    %v2850 = vunpack.c.l.b16 %v2771
    %v2851 = vunpack.c.h.b16 %v2771
    %v2852 = vunpack.c.l.b16 %v2772
    %v2853 = vunpack.c.h.b16 %v2772
    %v2854 = vunpack.c.l.b16 %v2773
    %v2855 = vunpack.c.h.b16 %v2773
    %v2856 = vunpack.c.l.b16 %v2774
    %v2857 = vunpack.c.h.b16 %v2774
    %v2858 = vunpack.c.l.b16 %v2775
    %v2859 = vunpack.c.h.b16 %v2775
    %v2860 = vunpack.c.l.b16 %v2776
    %v2861 = vunpack.c.h.b16 %v2776
    %v2862 = vunpack.c.l.b16 %v2777
    %v2863 = vunpack.c.h.b16 %v2777
    %v2864 = vunpack.c.l.b16 %v2778
    %v2865 = vunpack.c.h.b16 %v2778
    %v2866 = vunpack.c.l.b16 %v2779
    %v2867 = vunpack.c.h.b16 %v2779
    %v2868 = vunpack.c.l.b16 %v2780
    %v2869 = vunpack.c.h.b16 %v2780
    %v2870 = vunpack.c.l.b16 %v2781
    %v2871 = vunpack.c.h.b16 %v2781
    %v2872 = vunpack.c.l.b16 %v2782
    %v2873 = vunpack.c.h.b16 %v2782
    %v2874 = vunpack.c.l.b16 %v2783
    %v2875 = vunpack.c.h.b16 %v2783
    %v2876 = vunpack.c.l.b16 %v2784
    %v2877 = vunpack.c.h.b16 %v2784
    %v2878 = vunpack.c.l.b16 %v2785
    %v2879 = vunpack.c.h.b16 %v2785
    %v2880 = vunpack.c.l.b16 %v2786
    %v2881 = vunpack.c.h.b16 %v2786
    %v2882 = vunpack.c.l.b16 %v2787
    %v2883 = vunpack.c.h.b16 %v2787
    %v2884 = vpack.c.b16 %v2824, %v2820
    %v2885 = vpack.c.b16 %v2825, %v2821
    %v2886 = vpack.c.b16 %v2826, %v2822
    %v2887 = vpack.c.b16 %v2827, %v2823
    %v2888 = vpack.c.b16 %v2832, %v2828
    %v2889 = vpack.c.b16 %v2833, %v2829
    %v2890 = vpack.c.b16 %v2834, %v2830
    %v2891 = vpack.c.b16 %v2835, %v2831
    %v2892 = vpack.c.b16 %v2840, %v2836
    %v2893 = vpack.c.b16 %v2841, %v2837
    %v2894 = vpack.c.b16 %v2842, %v2838
    %v2895 = vpack.c.b16 %v2843, %v2839
    %v2896 = vpack.c.b16 %v2848, %v2844
    %v2897 = vpack.c.b16 %v2849, %v2845
    %v2898 = vpack.c.b16 %v2850, %v2846
    %v2899 = vpack.c.b16 %v2851, %v2847
    %v2900 = vpack.c.b16 %v2856, %v2852
    %v2901 = vpack.c.b16 %v2857, %v2853
    %v2902 = vpack.c.b16 %v2858, %v2854
    %v2903 = vpack.c.b16 %v2859, %v2855
    %v2904 = vpack.c.b16 %v2864, %v2860
    %v2905 = vpack.c.b16 %v2865, %v2861
    %v2906 = vpack.c.b16 %v2866, %v2862
    %v2907 = vpack.c.b16 %v2867, %v2863
    %v2908 = vpack.c.b16 %v2872, %v2868
    %v2909 = vpack.c.b16 %v2873, %v2869
    %v2910 = vpack.c.b16 %v2874, %v2870
    %v2911 = vpack.c.b16 %v2875, %v2871
    %v2912 = vpack.c.b16 %v2880, %v2876
    %v2913 = vpack.c.b16 %v2881, %v2877
    %v2914 = vpack.c.b16 %v2882, %v2878
    %v2915 = vpack.c.b16 %v2883, %v2879
    %2948 = vmatprep.subr.bf16.mxu0 %v2885
    %2949 = vmatpush1.bf16.msra.mxu0 %v2884
    %2950 = vmatprep.subr.bf16.mxu0 %v2889
    %2951 = vmatpush1.bf16.msra.mxu0 %v2888
    %2952 = vmatprep.subr.bf16.mxu0 %v2893
    %2953 = vmatpush1.bf16.msra.mxu0 %v2892
    %2954 = vmatprep.subr.bf16.mxu0 %v2897
    %2955 = vmatpush1.bf16.msra.mxu0 %v2896
    %2956 = vmatprep.subr.bf16.mxu0 %v2901
    %2957 = vmatpush1.bf16.msra.mxu0 %v2900
    %2958 = vmatprep.subr.bf16.mxu0 %v2905
    %2959 = vmatpush1.bf16.msra.mxu0 %v2904
    %2960 = vmatprep.subr.bf16.mxu0 %v2909
    %2961 = vmatpush1.bf16.msra.mxu0 %v2908
    %2962 = vmatprep.subr.bf16.mxu0 %v2913
    %2963 = vmatpush1.bf16.msra.mxu0 %v2912
    %2964 = vmatprep.subr.bf16.mxu0 0
    %2965 = vmatpush1.bf16.msra.mxu0 0
    %2966 = vmatprep.subr.bf16.mxu0 0
    %2967 = vmatpush1.bf16.msra.mxu0 0
    %2968 = vmatprep.subr.bf16.mxu0 0
    %2969 = vmatpush1.bf16.msra.mxu0 0
    %2970 = vmatprep.subr.bf16.mxu0 0
    %2971 = vmatpush1.bf16.msra.mxu0 0
    %2972 = vmatprep.subr.bf16.mxu0 0
    %2973 = vmatpush1.bf16.msra.mxu0 0
    %2974 = vmatprep.subr.bf16.mxu0 0
    %2975 = vmatpush1.bf16.msra.mxu0 0
    %2976 = vmatprep.subr.bf16.mxu0 0
    %2977 = vmatpush1.bf16.msra.mxu0 0
    %2978 = vmatprep.subr.bf16.mxu0 0
    %2979 = vmatpush1.bf16.msra.mxu0 0
    %2980 = vmatprep.mubr.bf16.mxu0 0
    %2981 = vmatmul.mubr.bf16.gmra.mrb[0].mxu0 %v2755
    %v2982 = vpop.f32.mrb[0].mxu0
    %v2983 = vadd.f32 0.0, %v2982
    %v2984 = vpop.f32.mrb[0].mxu0
    %v2985 = vadd.f32 0.0, %v2984
    %v2986 = vpop.f32.mrb[0].mxu0
    %v2987 = vadd.f32 0.0, %v2986
    %v2988 = vpop.f32.mrb[0].mxu0
    %v2989 = vadd.f32 0.0, %v2988
    %2990 = vdwg.mxu0
    %2991 = vmatprep.subr.bf16.mxu0 %v2887
    %2992 = vmatpush1.bf16.msra.mxu0 %v2886
    %2993 = vmatprep.subr.bf16.mxu0 %v2891
    %2994 = vmatpush1.bf16.msra.mxu0 %v2890
    %2995 = vmatprep.subr.bf16.mxu0 %v2895
    %2996 = vmatpush1.bf16.msra.mxu0 %v2894
    %2997 = vmatprep.subr.bf16.mxu0 %v2899
    %2998 = vmatpush1.bf16.msra.mxu0 %v2898
    %2999 = vmatprep.subr.bf16.mxu0 %v2903
    %3000 = vmatpush1.bf16.msra.mxu0 %v2902
    %3001 = vmatprep.subr.bf16.mxu0 %v2907
    %3002 = vmatpush1.bf16.msra.mxu0 %v2906
    %3003 = vmatprep.subr.bf16.mxu0 %v2911
    %3004 = vmatpush1.bf16.msra.mxu0 %v2910
    %3005 = vmatprep.subr.bf16.mxu0 %v2915
    %3006 = vmatpush1.bf16.msra.mxu0 %v2914
    %3007 = vmatprep.subr.bf16.mxu0 0
    %3008 = vmatpush1.bf16.msra.mxu0 0
    %3009 = vmatprep.subr.bf16.mxu0 0
    %3010 = vmatpush1.bf16.msra.mxu0 0
    %3011 = vmatprep.subr.bf16.mxu0 0
    %3012 = vmatpush1.bf16.msra.mxu0 0
    %3013 = vmatprep.subr.bf16.mxu0 0
    %3014 = vmatpush1.bf16.msra.mxu0 0
    %3015 = vmatprep.subr.bf16.mxu0 0
    %3016 = vmatpush1.bf16.msra.mxu0 0
    %3017 = vmatprep.subr.bf16.mxu0 0
    %3018 = vmatpush1.bf16.msra.mxu0 0
    %3019 = vmatprep.subr.bf16.mxu0 0
    %3020 = vmatpush1.bf16.msra.mxu0 0
    %3021 = vmatprep.subr.bf16.mxu0 0
    %3022 = vmatpush1.bf16.msra.mxu0 0
    %3023 = vmatprep.mubr.bf16.mxu0 0
    %3024 = vmatmul.mubr.bf16.gmra.mrb[0].mxu0 %v2755
    %v3025 = vpop.f32.mrb[0].mxu0
    %v3026 = vadd.f32 0.0, %v3025
    %v3027 = vpop.f32.mrb[0].mxu0
    %v3028 = vadd.f32 0.0, %v3027
    %v3029 = vpop.f32.mrb[0].mxu0
    %v3030 = vadd.f32 0.0, %v3029
    %v3031 = vpop.f32.mrb[0].mxu0
    %v3032 = vadd.f32 0.0, %v3031
    %3033 = vdwg.mxu0
    %v3034 = vadd.f32 %v2747, %v2983
    %v3035 = vadd.f32 %v2748, %v2985
    %v3036 = vadd.f32 %v2749, %v3026
    %v3037 = vadd.f32 %v2750, %v3028
    %v3038 = vadd.f32 %v2751, %v2987
    %v3039 = vadd.f32 %v2752, %v2989
    %v3040 = vadd.f32 %v2753, %v3030
    %v3041 = vadd.f32 %v2754, %v3032
    %v3042 = vxor.u32 %v3034, 2147483648
    %v3043 = vxor.u32 %v3038, 2147483648
    %v3044 = vmul.f32 %v3042, 1.442695
    %v3045 = vpow.pop %v3044
    %v3046 = vmul.f32 %v3043, 1.442695
    %v3047 = vpow.pop %v3046
    %v3048 = vadd.f32 %v3045, 1.0
    %v3049 = vadd.f32 %v3047, 1.0
    %v3050 = vrcp.pop %v3048
    %v3051 = vmul.f32 1.0, %v3050
    %v3052 = vrcp.pop %v3049
    %v3053 = vmul.f32 1.0, %v3052
    %v3054 = vxor.u32 %v3035, 2147483648
    %v3055 = vxor.u32 %v3039, 2147483648
    %v3056 = vmul.f32 %v3054, 1.442695
    %v3057 = vpow.pop %v3056
    %v3058 = vmul.f32 %v3055, 1.442695
    %v3059 = vpow.pop %v3058
    %v3060 = vadd.f32 %v3057, 1.0
    %v3061 = vadd.f32 %v3059, 1.0
    %v3062 = vrcp.pop %v3060
    %v3063 = vmul.f32 1.0, %v3062
    %v3064 = vrcp.pop %v3061
    %v3065 = vmul.f32 1.0, %v3064
    %v3066 = vtanh.pop %v3036
    %v3067 = vtanh.pop %v3040
    %v3068 = vxor.u32 %v3037, 2147483648
    %v3069 = vxor.u32 %v3041, 2147483648
    %v3070 = vmul.f32 %v3068, 1.442695
    %v3071 = vpow.pop %v3070
    %v3072 = vmul.f32 %v3069, 1.442695
    %v3073 = vpow.pop %v3072
    %v3074 = vadd.f32 %v3071, 1.0
    %v3075 = vadd.f32 %v3073, 1.0
    %v3076 = vrcp.pop %v3074
    %v3077 = vmul.f32 1.0, %v3076
    %v3078 = vrcp.pop %v3075
    %v3079 = vmul.f32 1.0, %v3078
    %v3080 = vmul.f32 %v3063, %v2739
    %v3081 = vmul.f32 %v3065, %v2740
    %v3082 = vmul.f32 %v3051, %v3066
    %v3083 = vmul.f32 %v3053, %v3067
    %v3084 = vadd.f32 %v3080, %v3082
    %v3085 = vadd.f32 %v3081, %v3083
    %v3086 = vtanh.pop %v3084
    %v3087 = vtanh.pop %v3085
    %v3088 = vmul.f32 %v3077, %v3086
    %v3089 = vmul.f32 %v3079, %v3087
    %3090 = vst [vmem:[#allocation3 + $0x20] sm:$0xff] %v3088
    %3091 = vst [vmem:[#allocation3 + $0x28] sm:$0xff] %v3089
    %v3092 = vld [vmem:[#allocation2 + $0xc0] sm:$0xff]
    %v3093 = vld [vmem:[#allocation2 + $0xc8] sm:$0xff]
    %v3094 = vld [vmem:[#allocation2 + $0xd0] sm:$0xff]
    %v3095 = vld [vmem:[#allocation2 + $0xd8] sm:$0xff]
    %v3096 = vld [vmem:[#allocation2 + $0xe0] sm:$0xff]
    %v3097 = vld [vmem:[#allocation2 + $0xe8] sm:$0xff]
    %v3098 = vld [vmem:[#allocation2 + $0xf0] sm:$0xff]
    %v3099 = vld [vmem:[#allocation2 + $0xf8] sm:$0xff]
    %v3100 = vpack.c.bf16 %v3089, %v3088
    %v3101 = vld [vmem:[%s7] sm:$0xff]
    %v3102 = vld [vmem:[%s7 + $0x8] sm:$0xff]
    %v3103 = vld [vmem:[%s7 + $0x10] sm:$0xff]
    %v3104 = vld [vmem:[%s7 + $0x18] sm:$0xff]
    %v3105 = vld [vmem:[%s7 + $0x20] sm:$0xff]
    %v3106 = vld [vmem:[%s7 + $0x28] sm:$0xff]
    %v3107 = vld [vmem:[%s7 + $0x30] sm:$0xff]
    %v3108 = vld [vmem:[%s7 + $0x38] sm:$0xff]
    %v3109 = vld [vmem:[%s7 + $0x40] sm:$0xff]
    %v3110 = vld [vmem:[%s7 + $0x48] sm:$0xff]
    %v3111 = vld [vmem:[%s7 + $0x50] sm:$0xff]
    %v3112 = vld [vmem:[%s7 + $0x58] sm:$0xff]
    %v3113 = vld [vmem:[%s7 + $0x60] sm:$0xff]
    %v3114 = vld [vmem:[%s7 + $0x68] sm:$0xff]
    %v3115 = vld [vmem:[%s7 + $0x70] sm:$0xff]
    %v3116 = vld [vmem:[%s7 + $0x78] sm:$0xff]
    %v3117 = vld [vmem:[%s7 + $0x80] sm:$0xff]
    %v3118 = vld [vmem:[%s7 + $0x88] sm:$0xff]
    %v3119 = vld [vmem:[%s7 + $0x90] sm:$0xff]
    %v3120 = vld [vmem:[%s7 + $0x98] sm:$0xff]
    %v3121 = vld [vmem:[%s7 + $0xa0] sm:$0xff]
    %v3122 = vld [vmem:[%s7 + $0xa8] sm:$0xff]
    %v3123 = vld [vmem:[%s7 + $0xb0] sm:$0xff]
    %v3124 = vld [vmem:[%s7 + $0xb8] sm:$0xff]
    %v3125 = vld [vmem:[%s7 + $0xc0] sm:$0xff]
    %v3126 = vld [vmem:[%s7 + $0xc8] sm:$0xff]
    %v3127 = vld [vmem:[%s7 + $0xd0] sm:$0xff]
    %v3128 = vld [vmem:[%s7 + $0xd8] sm:$0xff]
    %v3129 = vld [vmem:[%s7 + $0xe0] sm:$0xff]
    %v3130 = vld [vmem:[%s7 + $0xe8] sm:$0xff]
    %v3131 = vld [vmem:[%s7 + $0xf0] sm:$0xff]
    %v3132 = vld [vmem:[%s7 + $0xf8] sm:$0xff]
    %v3165 = vunpack.c.l.b16 %v3101
    %v3166 = vunpack.c.h.b16 %v3101
    %v3167 = vunpack.c.l.b16 %v3102
    %v3168 = vunpack.c.h.b16 %v3102
    %v3169 = vunpack.c.l.b16 %v3103
    %v3170 = vunpack.c.h.b16 %v3103
    %v3171 = vunpack.c.l.b16 %v3104
    %v3172 = vunpack.c.h.b16 %v3104
    %v3173 = vunpack.c.l.b16 %v3105
    %v3174 = vunpack.c.h.b16 %v3105
    %v3175 = vunpack.c.l.b16 %v3106
    %v3176 = vunpack.c.h.b16 %v3106
    %v3177 = vunpack.c.l.b16 %v3107
    %v3178 = vunpack.c.h.b16 %v3107
    %v3179 = vunpack.c.l.b16 %v3108
    %v3180 = vunpack.c.h.b16 %v3108
    %v3181 = vunpack.c.l.b16 %v3109
    %v3182 = vunpack.c.h.b16 %v3109
    %v3183 = vunpack.c.l.b16 %v3110
    %v3184 = vunpack.c.h.b16 %v3110
    %v3185 = vunpack.c.l.b16 %v3111
    %v3186 = vunpack.c.h.b16 %v3111
    %v3187 = vunpack.c.l.b16 %v3112
    %v3188 = vunpack.c.h.b16 %v3112
    %v3189 = vunpack.c.l.b16 %v3113
    %v3190 = vunpack.c.h.b16 %v3113
    %v3191 = vunpack.c.l.b16 %v3114
    %v3192 = vunpack.c.h.b16 %v3114
    %v3193 = vunpack.c.l.b16 %v3115
    %v3194 = vunpack.c.h.b16 %v3115
    %v3195 = vunpack.c.l.b16 %v3116
    %v3196 = vunpack.c.h.b16 %v3116
    %v3197 = vunpack.c.l.b16 %v3117
    %v3198 = vunpack.c.h.b16 %v3117
    %v3199 = vunpack.c.l.b16 %v3118
    %v3200 = vunpack.c.h.b16 %v3118
    %v3201 = vunpack.c.l.b16 %v3119
    %v3202 = vunpack.c.h.b16 %v3119
    %v3203 = vunpack.c.l.b16 %v3120
    %v3204 = vunpack.c.h.b16 %v3120
    %v3205 = vunpack.c.l.b16 %v3121
    %v3206 = vunpack.c.h.b16 %v3121
    %v3207 = vunpack.c.l.b16 %v3122
    %v3208 = vunpack.c.h.b16 %v3122
    %v3209 = vunpack.c.l.b16 %v3123
    %v3210 = vunpack.c.h.b16 %v3123
    %v3211 = vunpack.c.l.b16 %v3124
    %v3212 = vunpack.c.h.b16 %v3124
    %v3213 = vunpack.c.l.b16 %v3125
    %v3214 = vunpack.c.h.b16 %v3125
    %v3215 = vunpack.c.l.b16 %v3126
    %v3216 = vunpack.c.h.b16 %v3126
    %v3217 = vunpack.c.l.b16 %v3127
    %v3218 = vunpack.c.h.b16 %v3127
    %v3219 = vunpack.c.l.b16 %v3128
    %v3220 = vunpack.c.h.b16 %v3128
    %v3221 = vunpack.c.l.b16 %v3129
    %v3222 = vunpack.c.h.b16 %v3129
    %v3223 = vunpack.c.l.b16 %v3130
    %v3224 = vunpack.c.h.b16 %v3130
    %v3225 = vunpack.c.l.b16 %v3131
    %v3226 = vunpack.c.h.b16 %v3131
    %v3227 = vunpack.c.l.b16 %v3132
    %v3228 = vunpack.c.h.b16 %v3132
    %v3229 = vpack.c.b16 %v3169, %v3165
    %v3230 = vpack.c.b16 %v3170, %v3166
    %v3231 = vpack.c.b16 %v3171, %v3167
    %v3232 = vpack.c.b16 %v3172, %v3168
    %v3233 = vpack.c.b16 %v3177, %v3173
    %v3234 = vpack.c.b16 %v3178, %v3174
    %v3235 = vpack.c.b16 %v3179, %v3175
    %v3236 = vpack.c.b16 %v3180, %v3176
    %v3237 = vpack.c.b16 %v3185, %v3181
    %v3238 = vpack.c.b16 %v3186, %v3182
    %v3239 = vpack.c.b16 %v3187, %v3183
    %v3240 = vpack.c.b16 %v3188, %v3184
    %v3241 = vpack.c.b16 %v3193, %v3189
    %v3242 = vpack.c.b16 %v3194, %v3190
    %v3243 = vpack.c.b16 %v3195, %v3191
    %v3244 = vpack.c.b16 %v3196, %v3192
    %v3245 = vpack.c.b16 %v3201, %v3197
    %v3246 = vpack.c.b16 %v3202, %v3198
    %v3247 = vpack.c.b16 %v3203, %v3199
    %v3248 = vpack.c.b16 %v3204, %v3200
    %v3249 = vpack.c.b16 %v3209, %v3205
    %v3250 = vpack.c.b16 %v3210, %v3206
    %v3251 = vpack.c.b16 %v3211, %v3207
    %v3252 = vpack.c.b16 %v3212, %v3208
    %v3253 = vpack.c.b16 %v3217, %v3213
    %v3254 = vpack.c.b16 %v3218, %v3214
    %v3255 = vpack.c.b16 %v3219, %v3215
    %v3256 = vpack.c.b16 %v3220, %v3216
    %v3257 = vpack.c.b16 %v3225, %v3221
    %v3258 = vpack.c.b16 %v3226, %v3222
    %v3259 = vpack.c.b16 %v3227, %v3223
    %v3260 = vpack.c.b16 %v3228, %v3224
    %3293 = vmatprep.subr.bf16.mxu0 %v3230
    %3294 = vmatpush1.bf16.msra.mxu0 %v3229
    %3295 = vmatprep.subr.bf16.mxu0 %v3234
    %3296 = vmatpush1.bf16.msra.mxu0 %v3233
    %3297 = vmatprep.subr.bf16.mxu0 %v3238
    %3298 = vmatpush1.bf16.msra.mxu0 %v3237
    %3299 = vmatprep.subr.bf16.mxu0 %v3242
    %3300 = vmatpush1.bf16.msra.mxu0 %v3241
    %3301 = vmatprep.subr.bf16.mxu0 %v3246
    %3302 = vmatpush1.bf16.msra.mxu0 %v3245
    %3303 = vmatprep.subr.bf16.mxu0 %v3250
    %3304 = vmatpush1.bf16.msra.mxu0 %v3249
    %3305 = vmatprep.subr.bf16.mxu0 %v3254
    %3306 = vmatpush1.bf16.msra.mxu0 %v3253
    %3307 = vmatprep.subr.bf16.mxu0 %v3258
    %3308 = vmatpush1.bf16.msra.mxu0 %v3257
    %3309 = vmatprep.subr.bf16.mxu0 0
    %3310 = vmatpush1.bf16.msra.mxu0 0
    %3311 = vmatprep.subr.bf16.mxu0 0
    %3312 = vmatpush1.bf16.msra.mxu0 0
    %3313 = vmatprep.subr.bf16.mxu0 0
    %3314 = vmatpush1.bf16.msra.mxu0 0
    %3315 = vmatprep.subr.bf16.mxu0 0
    %3316 = vmatpush1.bf16.msra.mxu0 0
    %3317 = vmatprep.subr.bf16.mxu0 0
    %3318 = vmatpush1.bf16.msra.mxu0 0
    %3319 = vmatprep.subr.bf16.mxu0 0
    %3320 = vmatpush1.bf16.msra.mxu0 0
    %3321 = vmatprep.subr.bf16.mxu0 0
    %3322 = vmatpush1.bf16.msra.mxu0 0
    %3323 = vmatprep.subr.bf16.mxu0 0
    %3324 = vmatpush1.bf16.msra.mxu0 0
    %3325 = vmatprep.mubr.bf16.mxu0 0
    %3326 = vmatmul.mubr.bf16.gmra.mrb[0].mxu0 %v3100
    %v3327 = vpop.f32.mrb[0].mxu0
    %v3328 = vadd.f32 0.0, %v3327
    %v3329 = vpop.f32.mrb[0].mxu0
    %v3330 = vadd.f32 0.0, %v3329
    %v3331 = vpop.f32.mrb[0].mxu0
    %v3332 = vadd.f32 0.0, %v3331
    %v3333 = vpop.f32.mrb[0].mxu0
    %v3334 = vadd.f32 0.0, %v3333
    %3335 = vdwg.mxu0
    %3336 = vmatprep.subr.bf16.mxu0 %v3232
    %3337 = vmatpush1.bf16.msra.mxu0 %v3231
    %3338 = vmatprep.subr.bf16.mxu0 %v3236
    %3339 = vmatpush1.bf16.msra.mxu0 %v3235
    %3340 = vmatprep.subr.bf16.mxu0 %v3240
    %3341 = vmatpush1.bf16.msra.mxu0 %v3239
    %3342 = vmatprep.subr.bf16.mxu0 %v3244
    %3343 = vmatpush1.bf16.msra.mxu0 %v3243
    %3344 = vmatprep.subr.bf16.mxu0 %v3248
    %3345 = vmatpush1.bf16.msra.mxu0 %v3247
    %3346 = vmatprep.subr.bf16.mxu0 %v3252
    %3347 = vmatpush1.bf16.msra.mxu0 %v3251
    %3348 = vmatprep.subr.bf16.mxu0 %v3256
    %3349 = vmatpush1.bf16.msra.mxu0 %v3255
    %3350 = vmatprep.subr.bf16.mxu0 %v3260
    %3351 = vmatpush1.bf16.msra.mxu0 %v3259
    %3352 = vmatprep.subr.bf16.mxu0 0
    %3353 = vmatpush1.bf16.msra.mxu0 0
    %3354 = vmatprep.subr.bf16.mxu0 0
    %3355 = vmatpush1.bf16.msra.mxu0 0
    %3356 = vmatprep.subr.bf16.mxu0 0
    %3357 = vmatpush1.bf16.msra.mxu0 0
    %3358 = vmatprep.subr.bf16.mxu0 0
    %3359 = vmatpush1.bf16.msra.mxu0 0
    %3360 = vmatprep.subr.bf16.mxu0 0
    %3361 = vmatpush1.bf16.msra.mxu0 0
    %3362 = vmatprep.subr.bf16.mxu0 0
    %3363 = vmatpush1.bf16.msra.mxu0 0
    %3364 = vmatprep.subr.bf16.mxu0 0
    %3365 = vmatpush1.bf16.msra.mxu0 0
    %3366 = vmatprep.subr.bf16.mxu0 0
    %3367 = vmatpush1.bf16.msra.mxu0 0
    %3368 = vmatprep.mubr.bf16.mxu0 0
    %3369 = vmatmul.mubr.bf16.gmra.mrb[0].mxu0 %v3100
    %v3370 = vpop.f32.mrb[0].mxu0
    %v3371 = vadd.f32 0.0, %v3370
    %v3372 = vpop.f32.mrb[0].mxu0
    %v3373 = vadd.f32 0.0, %v3372
    %v3374 = vpop.f32.mrb[0].mxu0
    %v3375 = vadd.f32 0.0, %v3374
    %v3376 = vpop.f32.mrb[0].mxu0
    %v3377 = vadd.f32 0.0, %v3376
    %3378 = vdwg.mxu0
    %v3379 = vadd.f32 %v3092, %v3328
    %v3380 = vadd.f32 %v3093, %v3330
    %v3381 = vadd.f32 %v3094, %v3371
    %v3382 = vadd.f32 %v3095, %v3373
    %v3383 = vadd.f32 %v3096, %v3332
    %v3384 = vadd.f32 %v3097, %v3334
    %v3385 = vadd.f32 %v3098, %v3375
    %v3386 = vadd.f32 %v3099, %v3377
    %v3387 = vxor.u32 %v3379, 2147483648
    %v3388 = vxor.u32 %v3383, 2147483648
    %v3389 = vmul.f32 %v3387, 1.442695
    %v3390 = vpow.pop %v3389
    %v3391 = vmul.f32 %v3388, 1.442695
    %v3392 = vpow.pop %v3391
    %v3393 = vadd.f32 %v3390, 1.0
    %v3394 = vadd.f32 %v3392, 1.0
    %v3395 = vrcp.pop %v3393
    %v3396 = vmul.f32 1.0, %v3395
    %v3397 = vrcp.pop %v3394
    %v3398 = vmul.f32 1.0, %v3397
    %v3399 = vxor.u32 %v3380, 2147483648
    %v3400 = vxor.u32 %v3384, 2147483648
    %v3401 = vmul.f32 %v3399, 1.442695
    %v3402 = vpow.pop %v3401
    %v3403 = vmul.f32 %v3400, 1.442695
    %v3404 = vpow.pop %v3403
    %v3405 = vadd.f32 %v3402, 1.0
    %v3406 = vadd.f32 %v3404, 1.0
    %v3407 = vrcp.pop %v3405
    %v3408 = vmul.f32 1.0, %v3407
    %v3409 = vrcp.pop %v3406
    %v3410 = vmul.f32 1.0, %v3409
    %v3411 = vtanh.pop %v3381
    %v3412 = vtanh.pop %v3385
    %v3413 = vxor.u32 %v3382, 2147483648
    %v3414 = vxor.u32 %v3386, 2147483648
    %v3415 = vmul.f32 %v3413, 1.442695
    %v3416 = vpow.pop %v3415
    %v3417 = vmul.f32 %v3414, 1.442695
    %v3418 = vpow.pop %v3417
    %v3419 = vadd.f32 %v3416, 1.0
    %v3420 = vadd.f32 %v3418, 1.0
    %v3421 = vrcp.pop %v3419
    %v3422 = vmul.f32 1.0, %v3421
    %v3423 = vrcp.pop %v3420
    %v3424 = vmul.f32 1.0, %v3423
    %v3425 = vmul.f32 %v3408, %v3084
    %v3426 = vmul.f32 %v3410, %v3085
    %v3427 = vmul.f32 %v3396, %v3411
    %v3428 = vmul.f32 %v3398, %v3412
    %v3429 = vadd.f32 %v3425, %v3427
    %v3430 = vadd.f32 %v3426, %v3428
    %v3431 = vtanh.pop %v3429
    %v3432 = vtanh.pop %v3430
    %v3433 = vmul.f32 %v3422, %v3431
    %v3434 = vmul.f32 %v3424, %v3432
    %3435 = vst [vmem:[#allocation3 + $0x30] sm:$0xff] %v3433
    %3436 = vst [vmem:[#allocation3 + $0x38] sm:$0xff] %v3434
    %v3437 = vld [vmem:[#allocation2 + $0x100] sm:$0xff]
    %v3438 = vld [vmem:[#allocation2 + $0x108] sm:$0xff]
    %v3439 = vld [vmem:[#allocation2 + $0x110] sm:$0xff]
    %v3440 = vld [vmem:[#allocation2 + $0x118] sm:$0xff]
    %v3441 = vld [vmem:[#allocation2 + $0x120] sm:$0xff]
    %v3442 = vld [vmem:[#allocation2 + $0x128] sm:$0xff]
    %v3443 = vld [vmem:[#allocation2 + $0x130] sm:$0xff]
    %v3444 = vld [vmem:[#allocation2 + $0x138] sm:$0xff]
    %v3445 = vpack.c.bf16 %v3434, %v3433
    %v3446 = vld [vmem:[%s7] sm:$0xff]
    %v3447 = vld [vmem:[%s7 + $0x8] sm:$0xff]
    %v3448 = vld [vmem:[%s7 + $0x10] sm:$0xff]
    %v3449 = vld [vmem:[%s7 + $0x18] sm:$0xff]
    %v3450 = vld [vmem:[%s7 + $0x20] sm:$0xff]
    %v3451 = vld [vmem:[%s7 + $0x28] sm:$0xff]
    %v3452 = vld [vmem:[%s7 + $0x30] sm:$0xff]
    %v3453 = vld [vmem:[%s7 + $0x38] sm:$0xff]
    %v3454 = vld [vmem:[%s7 + $0x40] sm:$0xff]
    %v3455 = vld [vmem:[%s7 + $0x48] sm:$0xff]
    %v3456 = vld [vmem:[%s7 + $0x50] sm:$0xff]
    %v3457 = vld [vmem:[%s7 + $0x58] sm:$0xff]
    %v3458 = vld [vmem:[%s7 + $0x60] sm:$0xff]
    %v3459 = vld [vmem:[%s7 + $0x68] sm:$0xff]
    %v3460 = vld [vmem:[%s7 + $0x70] sm:$0xff]
    %v3461 = vld [vmem:[%s7 + $0x78] sm:$0xff]
    %v3462 = vld [vmem:[%s7 + $0x80] sm:$0xff]
    %v3463 = vld [vmem:[%s7 + $0x88] sm:$0xff]
    %v3464 = vld [vmem:[%s7 + $0x90] sm:$0xff]
    %v3465 = vld [vmem:[%s7 + $0x98] sm:$0xff]
    %v3466 = vld [vmem:[%s7 + $0xa0] sm:$0xff]
    %v3467 = vld [vmem:[%s7 + $0xa8] sm:$0xff]
    %v3468 = vld [vmem:[%s7 + $0xb0] sm:$0xff]
    %v3469 = vld [vmem:[%s7 + $0xb8] sm:$0xff]
    %v3470 = vld [vmem:[%s7 + $0xc0] sm:$0xff]
    %v3471 = vld [vmem:[%s7 + $0xc8] sm:$0xff]
    %v3472 = vld [vmem:[%s7 + $0xd0] sm:$0xff]
    %v3473 = vld [vmem:[%s7 + $0xd8] sm:$0xff]
    %v3474 = vld [vmem:[%s7 + $0xe0] sm:$0xff]
    %v3475 = vld [vmem:[%s7 + $0xe8] sm:$0xff]
    %v3476 = vld [vmem:[%s7 + $0xf0] sm:$0xff]
    %v3477 = vld [vmem:[%s7 + $0xf8] sm:$0xff]
    %v3510 = vunpack.c.l.b16 %v3446
    %v3511 = vunpack.c.h.b16 %v3446
    %v3512 = vunpack.c.l.b16 %v3447
    %v3513 = vunpack.c.h.b16 %v3447
    %v3514 = vunpack.c.l.b16 %v3448
    %v3515 = vunpack.c.h.b16 %v3448
    %v3516 = vunpack.c.l.b16 %v3449
    %v3517 = vunpack.c.h.b16 %v3449
    %v3518 = vunpack.c.l.b16 %v3450
    %v3519 = vunpack.c.h.b16 %v3450
    %v3520 = vunpack.c.l.b16 %v3451
    %v3521 = vunpack.c.h.b16 %v3451
    %v3522 = vunpack.c.l.b16 %v3452
    %v3523 = vunpack.c.h.b16 %v3452
    %v3524 = vunpack.c.l.b16 %v3453
    %v3525 = vunpack.c.h.b16 %v3453
    %v3526 = vunpack.c.l.b16 %v3454
    %v3527 = vunpack.c.h.b16 %v3454
    %v3528 = vunpack.c.l.b16 %v3455
    %v3529 = vunpack.c.h.b16 %v3455
    %v3530 = vunpack.c.l.b16 %v3456
    %v3531 = vunpack.c.h.b16 %v3456
    %v3532 = vunpack.c.l.b16 %v3457
    %v3533 = vunpack.c.h.b16 %v3457
    %v3534 = vunpack.c.l.b16 %v3458
    %v3535 = vunpack.c.h.b16 %v3458
    %v3536 = vunpack.c.l.b16 %v3459
    %v3537 = vunpack.c.h.b16 %v3459
    %v3538 = vunpack.c.l.b16 %v3460
    %v3539 = vunpack.c.h.b16 %v3460
    %v3540 = vunpack.c.l.b16 %v3461
    %v3541 = vunpack.c.h.b16 %v3461
    %v3542 = vunpack.c.l.b16 %v3462
    %v3543 = vunpack.c.h.b16 %v3462
    %v3544 = vunpack.c.l.b16 %v3463
    %v3545 = vunpack.c.h.b16 %v3463
    %v3546 = vunpack.c.l.b16 %v3464
    %v3547 = vunpack.c.h.b16 %v3464
    %v3548 = vunpack.c.l.b16 %v3465
    %v3549 = vunpack.c.h.b16 %v3465
    %v3550 = vunpack.c.l.b16 %v3466
    %v3551 = vunpack.c.h.b16 %v3466
    %v3552 = vunpack.c.l.b16 %v3467
    %v3553 = vunpack.c.h.b16 %v3467
    %v3554 = vunpack.c.l.b16 %v3468
    %v3555 = vunpack.c.h.b16 %v3468
    %v3556 = vunpack.c.l.b16 %v3469
    %v3557 = vunpack.c.h.b16 %v3469
    %v3558 = vunpack.c.l.b16 %v3470
    %v3559 = vunpack.c.h.b16 %v3470
    %v3560 = vunpack.c.l.b16 %v3471
    %v3561 = vunpack.c.h.b16 %v3471
    %v3562 = vunpack.c.l.b16 %v3472
    %v3563 = vunpack.c.h.b16 %v3472
    %v3564 = vunpack.c.l.b16 %v3473
    %v3565 = vunpack.c.h.b16 %v3473
    %v3566 = vunpack.c.l.b16 %v3474
    %v3567 = vunpack.c.h.b16 %v3474
    %v3568 = vunpack.c.l.b16 %v3475
    %v3569 = vunpack.c.h.b16 %v3475
    %v3570 = vunpack.c.l.b16 %v3476
    %v3571 = vunpack.c.h.b16 %v3476
    %v3572 = vunpack.c.l.b16 %v3477
    %v3573 = vunpack.c.h.b16 %v3477
    %v3574 = vpack.c.b16 %v3514, %v3510
    %v3575 = vpack.c.b16 %v3515, %v3511
    %v3576 = vpack.c.b16 %v3516, %v3512
    %v3577 = vpack.c.b16 %v3517, %v3513
    %v3578 = vpack.c.b16 %v3522, %v3518
    %v3579 = vpack.c.b16 %v3523, %v3519
    %v3580 = vpack.c.b16 %v3524, %v3520
    %v3581 = vpack.c.b16 %v3525, %v3521
    %v3582 = vpack.c.b16 %v3530, %v3526
    %v3583 = vpack.c.b16 %v3531, %v3527
    %v3584 = vpack.c.b16 %v3532, %v3528
    %v3585 = vpack.c.b16 %v3533, %v3529
    %v3586 = vpack.c.b16 %v3538, %v3534
    %v3587 = vpack.c.b16 %v3539, %v3535
    %v3588 = vpack.c.b16 %v3540, %v3536
    %v3589 = vpack.c.b16 %v3541, %v3537
    %v3590 = vpack.c.b16 %v3546, %v3542
    %v3591 = vpack.c.b16 %v3547, %v3543
    %v3592 = vpack.c.b16 %v3548, %v3544
    %v3593 = vpack.c.b16 %v3549, %v3545
    %v3594 = vpack.c.b16 %v3554, %v3550
    %v3595 = vpack.c.b16 %v3555, %v3551
    %v3596 = vpack.c.b16 %v3556, %v3552
    %v3597 = vpack.c.b16 %v3557, %v3553
    %v3598 = vpack.c.b16 %v3562, %v3558
    %v3599 = vpack.c.b16 %v3563, %v3559
    %v3600 = vpack.c.b16 %v3564, %v3560
    %v3601 = vpack.c.b16 %v3565, %v3561
    %v3602 = vpack.c.b16 %v3570, %v3566
    %v3603 = vpack.c.b16 %v3571, %v3567
    %v3604 = vpack.c.b16 %v3572, %v3568
    %v3605 = vpack.c.b16 %v3573, %v3569
    %3638 = vmatprep.subr.bf16.mxu0 %v3575
    %3639 = vmatpush1.bf16.msra.mxu0 %v3574
    %3640 = vmatprep.subr.bf16.mxu0 %v3579
    %3641 = vmatpush1.bf16.msra.mxu0 %v3578
    %3642 = vmatprep.subr.bf16.mxu0 %v3583
    %3643 = vmatpush1.bf16.msra.mxu0 %v3582
    %3644 = vmatprep.subr.bf16.mxu0 %v3587
    %3645 = vmatpush1.bf16.msra.mxu0 %v3586
    %3646 = vmatprep.subr.bf16.mxu0 %v3591
    %3647 = vmatpush1.bf16.msra.mxu0 %v3590
    %3648 = vmatprep.subr.bf16.mxu0 %v3595
    %3649 = vmatpush1.bf16.msra.mxu0 %v3594
    %3650 = vmatprep.subr.bf16.mxu0 %v3599
    %3651 = vmatpush1.bf16.msra.mxu0 %v3598
    %3652 = vmatprep.subr.bf16.mxu0 %v3603
    %3653 = vmatpush1.bf16.msra.mxu0 %v3602
    %3654 = vmatprep.subr.bf16.mxu0 0
    %3655 = vmatpush1.bf16.msra.mxu0 0
    %3656 = vmatprep.subr.bf16.mxu0 0
    %3657 = vmatpush1.bf16.msra.mxu0 0
    %3658 = vmatprep.subr.bf16.mxu0 0
    %3659 = vmatpush1.bf16.msra.mxu0 0
    %3660 = vmatprep.subr.bf16.mxu0 0
    %3661 = vmatpush1.bf16.msra.mxu0 0
    %3662 = vmatprep.subr.bf16.mxu0 0
    %3663 = vmatpush1.bf16.msra.mxu0 0
    %3664 = vmatprep.subr.bf16.mxu0 0
    %3665 = vmatpush1.bf16.msra.mxu0 0
    %3666 = vmatprep.subr.bf16.mxu0 0
    %3667 = vmatpush1.bf16.msra.mxu0 0
    %3668 = vmatprep.subr.bf16.mxu0 0
    %3669 = vmatpush1.bf16.msra.mxu0 0
    %3670 = vmatprep.mubr.bf16.mxu0 0
    %3671 = vmatmul.mubr.bf16.gmra.mrb[0].mxu0 %v3445
    %v3672 = vpop.f32.mrb[0].mxu0
    %v3673 = vadd.f32 0.0, %v3672
    %v3674 = vpop.f32.mrb[0].mxu0
    %v3675 = vadd.f32 0.0, %v3674
    %v3676 = vpop.f32.mrb[0].mxu0
    %v3677 = vadd.f32 0.0, %v3676
    %v3678 = vpop.f32.mrb[0].mxu0
    %v3679 = vadd.f32 0.0, %v3678
    %3680 = vdwg.mxu0
    %3681 = vmatprep.subr.bf16.mxu0 %v3577
    %3682 = vmatpush1.bf16.msra.mxu0 %v3576
    %3683 = vmatprep.subr.bf16.mxu0 %v3581
    %3684 = vmatpush1.bf16.msra.mxu0 %v3580
    %3685 = vmatprep.subr.bf16.mxu0 %v3585
    %3686 = vmatpush1.bf16.msra.mxu0 %v3584
    %3687 = vmatprep.subr.bf16.mxu0 %v3589
    %3688 = vmatpush1.bf16.msra.mxu0 %v3588
    %3689 = vmatprep.subr.bf16.mxu0 %v3593
    %3690 = vmatpush1.bf16.msra.mxu0 %v3592
    %3691 = vmatprep.subr.bf16.mxu0 %v3597
    %3692 = vmatpush1.bf16.msra.mxu0 %v3596
    %3693 = vmatprep.subr.bf16.mxu0 %v3601
    %3694 = vmatpush1.bf16.msra.mxu0 %v3600
    %3695 = vmatprep.subr.bf16.mxu0 %v3605
    %3696 = vmatpush1.bf16.msra.mxu0 %v3604
    %3697 = vmatprep.subr.bf16.mxu0 0
    %3698 = vmatpush1.bf16.msra.mxu0 0
    %3699 = vmatprep.subr.bf16.mxu0 0
    %3700 = vmatpush1.bf16.msra.mxu0 0
    %3701 = vmatprep.subr.bf16.mxu0 0
    %3702 = vmatpush1.bf16.msra.mxu0 0
    %3703 = vmatprep.subr.bf16.mxu0 0
    %3704 = vmatpush1.bf16.msra.mxu0 0
    %3705 = vmatprep.subr.bf16.mxu0 0
    %3706 = vmatpush1.bf16.msra.mxu0 0
    %3707 = vmatprep.subr.bf16.mxu0 0
    %3708 = vmatpush1.bf16.msra.mxu0 0
    %3709 = vmatprep.subr.bf16.mxu0 0
    %3710 = vmatpush1.bf16.msra.mxu0 0
    %3711 = vmatprep.subr.bf16.mxu0 0
    %3712 = vmatpush1.bf16.msra.mxu0 0
    %3713 = vmatprep.mubr.bf16.mxu0 0
    %3714 = vmatmul.mubr.bf16.gmra.mrb[0].mxu0 %v3445
    %v3715 = vpop.f32.mrb[0].mxu0
    %v3716 = vadd.f32 0.0, %v3715
    %v3717 = vpop.f32.mrb[0].mxu0
    %v3718 = vadd.f32 0.0, %v3717
    %v3719 = vpop.f32.mrb[0].mxu0
    %v3720 = vadd.f32 0.0, %v3719
    %v3721 = vpop.f32.mrb[0].mxu0
    %v3722 = vadd.f32 0.0, %v3721
    %3723 = vdwg.mxu0
    %v3724 = vadd.f32 %v3437, %v3673
    %v3725 = vadd.f32 %v3438, %v3675
    %v3726 = vadd.f32 %v3439, %v3716
    %v3727 = vadd.f32 %v3440, %v3718
    %v3728 = vadd.f32 %v3441, %v3677
    %v3729 = vadd.f32 %v3442, %v3679
    %v3730 = vadd.f32 %v3443, %v3720
    %v3731 = vadd.f32 %v3444, %v3722
    %v3732 = vxor.u32 %v3724, 2147483648
    %v3733 = vxor.u32 %v3728, 2147483648
    %v3734 = vmul.f32 %v3732, 1.442695
    %v3735 = vpow.pop %v3734
    %v3736 = vmul.f32 %v3733, 1.442695
    %v3737 = vpow.pop %v3736
    %v3738 = vadd.f32 %v3735, 1.0
    %v3739 = vadd.f32 %v3737, 1.0
    %v3740 = vrcp.pop %v3738
    %v3741 = vmul.f32 1.0, %v3740
    %v3742 = vrcp.pop %v3739
    %v3743 = vmul.f32 1.0, %v3742
    %v3744 = vxor.u32 %v3725, 2147483648
    %v3745 = vxor.u32 %v3729, 2147483648
    %v3746 = vmul.f32 %v3744, 1.442695
    %v3747 = vpow.pop %v3746
    %v3748 = vmul.f32 %v3745, 1.442695
    %v3749 = vpow.pop %v3748
    %v3750 = vadd.f32 %v3747, 1.0
    %v3751 = vadd.f32 %v3749, 1.0
    %v3752 = vrcp.pop %v3750
    %v3753 = vmul.f32 1.0, %v3752
    %v3754 = vrcp.pop %v3751
    %v3755 = vmul.f32 1.0, %v3754
    %v3756 = vtanh.pop %v3726
    %v3757 = vtanh.pop %v3730
    %v3758 = vxor.u32 %v3727, 2147483648
    %v3759 = vxor.u32 %v3731, 2147483648
    %v3760 = vmul.f32 %v3758, 1.442695
    %v3761 = vpow.pop %v3760
    %v3762 = vmul.f32 %v3759, 1.442695
    %v3763 = vpow.pop %v3762
    %v3764 = vadd.f32 %v3761, 1.0
    %v3765 = vadd.f32 %v3763, 1.0
    %v3766 = vrcp.pop %v3764
    %v3767 = vmul.f32 1.0, %v3766
    %v3768 = vrcp.pop %v3765
    %v3769 = vmul.f32 1.0, %v3768
    %v3770 = vmul.f32 %v3753, %v3429
    %v3771 = vmul.f32 %v3755, %v3430
    %v3772 = vmul.f32 %v3741, %v3756
    %v3773 = vmul.f32 %v3743, %v3757
    %v3774 = vadd.f32 %v3770, %v3772
    %v3775 = vadd.f32 %v3771, %v3773
    %v3776 = vtanh.pop %v3774
    %v3777 = vtanh.pop %v3775
    %v3778 = vmul.f32 %v3767, %v3776
    %v3779 = vmul.f32 %v3769, %v3777
    %3780 = vst [vmem:[#allocation3 + $0x40] sm:$0xff] %v3778
    %3781 = vst [vmem:[#allocation3 + $0x48] sm:$0xff] %v3779
    %v3782 = vld [vmem:[#allocation2 + $0x140] sm:$0xff]
    %v3783 = vld [vmem:[#allocation2 + $0x148] sm:$0xff]
    %v3784 = vld [vmem:[#allocation2 + $0x150] sm:$0xff]
    %v3785 = vld [vmem:[#allocation2 + $0x158] sm:$0xff]
    %v3786 = vld [vmem:[#allocation2 + $0x160] sm:$0xff]
    %v3787 = vld [vmem:[#allocation2 + $0x168] sm:$0xff]
    %v3788 = vld [vmem:[#allocation2 + $0x170] sm:$0xff]
    %v3789 = vld [vmem:[#allocation2 + $0x178] sm:$0xff]
    %v3790 = vpack.c.bf16 %v3779, %v3778
    %v3791 = vld [vmem:[%s7] sm:$0xff]
    %v3792 = vld [vmem:[%s7 + $0x8] sm:$0xff]
    %v3793 = vld [vmem:[%s7 + $0x10] sm:$0xff]
    %v3794 = vld [vmem:[%s7 + $0x18] sm:$0xff]
    %v3795 = vld [vmem:[%s7 + $0x20] sm:$0xff]
    %v3796 = vld [vmem:[%s7 + $0x28] sm:$0xff]
    %v3797 = vld [vmem:[%s7 + $0x30] sm:$0xff]
    %v3798 = vld [vmem:[%s7 + $0x38] sm:$0xff]
    %v3799 = vld [vmem:[%s7 + $0x40] sm:$0xff]
    %v3800 = vld [vmem:[%s7 + $0x48] sm:$0xff]
    %v3801 = vld [vmem:[%s7 + $0x50] sm:$0xff]
    %v3802 = vld [vmem:[%s7 + $0x58] sm:$0xff]
    %v3803 = vld [vmem:[%s7 + $0x60] sm:$0xff]
    %v3804 = vld [vmem:[%s7 + $0x68] sm:$0xff]
    %v3805 = vld [vmem:[%s7 + $0x70] sm:$0xff]
    %v3806 = vld [vmem:[%s7 + $0x78] sm:$0xff]
    %v3807 = vld [vmem:[%s7 + $0x80] sm:$0xff]
    %v3808 = vld [vmem:[%s7 + $0x88] sm:$0xff]
    %v3809 = vld [vmem:[%s7 + $0x90] sm:$0xff]
    %v3810 = vld [vmem:[%s7 + $0x98] sm:$0xff]
    %v3811 = vld [vmem:[%s7 + $0xa0] sm:$0xff]
    %v3812 = vld [vmem:[%s7 + $0xa8] sm:$0xff]
    %v3813 = vld [vmem:[%s7 + $0xb0] sm:$0xff]
    %v3814 = vld [vmem:[%s7 + $0xb8] sm:$0xff]
    %v3815 = vld [vmem:[%s7 + $0xc0] sm:$0xff]
    %v3816 = vld [vmem:[%s7 + $0xc8] sm:$0xff]
    %v3817 = vld [vmem:[%s7 + $0xd0] sm:$0xff]
    %v3818 = vld [vmem:[%s7 + $0xd8] sm:$0xff]
    %v3819 = vld [vmem:[%s7 + $0xe0] sm:$0xff]
    %v3820 = vld [vmem:[%s7 + $0xe8] sm:$0xff]
    %v3821 = vld [vmem:[%s7 + $0xf0] sm:$0xff]
    %v3822 = vld [vmem:[%s7 + $0xf8] sm:$0xff]
    %v3855 = vunpack.c.l.b16 %v3791
    %v3856 = vunpack.c.h.b16 %v3791
    %v3857 = vunpack.c.l.b16 %v3792
    %v3858 = vunpack.c.h.b16 %v3792
    %v3859 = vunpack.c.l.b16 %v3793
    %v3860 = vunpack.c.h.b16 %v3793
    %v3861 = vunpack.c.l.b16 %v3794
    %v3862 = vunpack.c.h.b16 %v3794
    %v3863 = vunpack.c.l.b16 %v3795
    %v3864 = vunpack.c.h.b16 %v3795
    %v3865 = vunpack.c.l.b16 %v3796
    %v3866 = vunpack.c.h.b16 %v3796
    %v3867 = vunpack.c.l.b16 %v3797
    %v3868 = vunpack.c.h.b16 %v3797
    %v3869 = vunpack.c.l.b16 %v3798
    %v3870 = vunpack.c.h.b16 %v3798
    %v3871 = vunpack.c.l.b16 %v3799
    %v3872 = vunpack.c.h.b16 %v3799
    %v3873 = vunpack.c.l.b16 %v3800
    %v3874 = vunpack.c.h.b16 %v3800
    %v3875 = vunpack.c.l.b16 %v3801
    %v3876 = vunpack.c.h.b16 %v3801
    %v3877 = vunpack.c.l.b16 %v3802
    %v3878 = vunpack.c.h.b16 %v3802
    %v3879 = vunpack.c.l.b16 %v3803
    %v3880 = vunpack.c.h.b16 %v3803
    %v3881 = vunpack.c.l.b16 %v3804
    %v3882 = vunpack.c.h.b16 %v3804
    %v3883 = vunpack.c.l.b16 %v3805
    %v3884 = vunpack.c.h.b16 %v3805
    %v3885 = vunpack.c.l.b16 %v3806
    %v3886 = vunpack.c.h.b16 %v3806
    %v3887 = vunpack.c.l.b16 %v3807
    %v3888 = vunpack.c.h.b16 %v3807
    %v3889 = vunpack.c.l.b16 %v3808
    %v3890 = vunpack.c.h.b16 %v3808
    %v3891 = vunpack.c.l.b16 %v3809
    %v3892 = vunpack.c.h.b16 %v3809
    %v3893 = vunpack.c.l.b16 %v3810
    %v3894 = vunpack.c.h.b16 %v3810
    %v3895 = vunpack.c.l.b16 %v3811
    %v3896 = vunpack.c.h.b16 %v3811
    %v3897 = vunpack.c.l.b16 %v3812
    %v3898 = vunpack.c.h.b16 %v3812
    %v3899 = vunpack.c.l.b16 %v3813
    %v3900 = vunpack.c.h.b16 %v3813
    %v3901 = vunpack.c.l.b16 %v3814
    %v3902 = vunpack.c.h.b16 %v3814
    %v3903 = vunpack.c.l.b16 %v3815
    %v3904 = vunpack.c.h.b16 %v3815
    %v3905 = vunpack.c.l.b16 %v3816
    %v3906 = vunpack.c.h.b16 %v3816
    %v3907 = vunpack.c.l.b16 %v3817
    %v3908 = vunpack.c.h.b16 %v3817
    %v3909 = vunpack.c.l.b16 %v3818
    %v3910 = vunpack.c.h.b16 %v3818
    %v3911 = vunpack.c.l.b16 %v3819
    %v3912 = vunpack.c.h.b16 %v3819
    %v3913 = vunpack.c.l.b16 %v3820
    %v3914 = vunpack.c.h.b16 %v3820
    %v3915 = vunpack.c.l.b16 %v3821
    %v3916 = vunpack.c.h.b16 %v3821
    %v3917 = vunpack.c.l.b16 %v3822
    %v3918 = vunpack.c.h.b16 %v3822
    %v3919 = vpack.c.b16 %v3859, %v3855
    %v3920 = vpack.c.b16 %v3860, %v3856
    %v3921 = vpack.c.b16 %v3861, %v3857
    %v3922 = vpack.c.b16 %v3862, %v3858
    %v3923 = vpack.c.b16 %v3867, %v3863
    %v3924 = vpack.c.b16 %v3868, %v3864
    %v3925 = vpack.c.b16 %v3869, %v3865
    %v3926 = vpack.c.b16 %v3870, %v3866
    %v3927 = vpack.c.b16 %v3875, %v3871
    %v3928 = vpack.c.b16 %v3876, %v3872
    %v3929 = vpack.c.b16 %v3877, %v3873
    %v3930 = vpack.c.b16 %v3878, %v3874
    %v3931 = vpack.c.b16 %v3883, %v3879
    %v3932 = vpack.c.b16 %v3884, %v3880
    %v3933 = vpack.c.b16 %v3885, %v3881
    %v3934 = vpack.c.b16 %v3886, %v3882
    %v3935 = vpack.c.b16 %v3891, %v3887
    %v3936 = vpack.c.b16 %v3892, %v3888
    %v3937 = vpack.c.b16 %v3893, %v3889
    %v3938 = vpack.c.b16 %v3894, %v3890
    %v3939 = vpack.c.b16 %v3899, %v3895
    %v3940 = vpack.c.b16 %v3900, %v3896
    %v3941 = vpack.c.b16 %v3901, %v3897
    %v3942 = vpack.c.b16 %v3902, %v3898
    %v3943 = vpack.c.b16 %v3907, %v3903
    %v3944 = vpack.c.b16 %v3908, %v3904
    %v3945 = vpack.c.b16 %v3909, %v3905
    %v3946 = vpack.c.b16 %v3910, %v3906
    %v3947 = vpack.c.b16 %v3915, %v3911
    %v3948 = vpack.c.b16 %v3916, %v3912
    %v3949 = vpack.c.b16 %v3917, %v3913
    %v3950 = vpack.c.b16 %v3918, %v3914
    %3983 = vmatprep.subr.bf16.mxu0 %v3920
    %3984 = vmatpush1.bf16.msra.mxu0 %v3919
    %3985 = vmatprep.subr.bf16.mxu0 %v3924
    %3986 = vmatpush1.bf16.msra.mxu0 %v3923
    %3987 = vmatprep.subr.bf16.mxu0 %v3928
    %3988 = vmatpush1.bf16.msra.mxu0 %v3927
    %3989 = vmatprep.subr.bf16.mxu0 %v3932
    %3990 = vmatpush1.bf16.msra.mxu0 %v3931
    %3991 = vmatprep.subr.bf16.mxu0 %v3936
    %3992 = vmatpush1.bf16.msra.mxu0 %v3935
    %3993 = vmatprep.subr.bf16.mxu0 %v3940
    %3994 = vmatpush1.bf16.msra.mxu0 %v3939
    %3995 = vmatprep.subr.bf16.mxu0 %v3944
    %3996 = vmatpush1.bf16.msra.mxu0 %v3943
    %3997 = vmatprep.subr.bf16.mxu0 %v3948
    %3998 = vmatpush1.bf16.msra.mxu0 %v3947
    %3999 = vmatprep.subr.bf16.mxu0 0
    %4000 = vmatpush1.bf16.msra.mxu0 0
    %4001 = vmatprep.subr.bf16.mxu0 0
    %4002 = vmatpush1.bf16.msra.mxu0 0
    %4003 = vmatprep.subr.bf16.mxu0 0
    %4004 = vmatpush1.bf16.msra.mxu0 0
    %4005 = vmatprep.subr.bf16.mxu0 0
    %4006 = vmatpush1.bf16.msra.mxu0 0
    %4007 = vmatprep.subr.bf16.mxu0 0
    %4008 = vmatpush1.bf16.msra.mxu0 0
    %4009 = vmatprep.subr.bf16.mxu0 0
    %4010 = vmatpush1.bf16.msra.mxu0 0
    %4011 = vmatprep.subr.bf16.mxu0 0
    %4012 = vmatpush1.bf16.msra.mxu0 0
    %4013 = vmatprep.subr.bf16.mxu0 0
    %4014 = vmatpush1.bf16.msra.mxu0 0
    %4015 = vmatprep.mubr.bf16.mxu0 0
    %4016 = vmatmul.mubr.bf16.gmra.mrb[0].mxu0 %v3790
    %v4017 = vpop.f32.mrb[0].mxu0
    %v4018 = vadd.f32 0.0, %v4017
    %v4019 = vpop.f32.mrb[0].mxu0
    %v4020 = vadd.f32 0.0, %v4019
    %v4021 = vpop.f32.mrb[0].mxu0
    %v4022 = vadd.f32 0.0, %v4021
    %v4023 = vpop.f32.mrb[0].mxu0
    %v4024 = vadd.f32 0.0, %v4023
    %4025 = vdwg.mxu0
    %4026 = vmatprep.subr.bf16.mxu0 %v3922
    %4027 = vmatpush1.bf16.msra.mxu0 %v3921
    %4028 = vmatprep.subr.bf16.mxu0 %v3926
    %4029 = vmatpush1.bf16.msra.mxu0 %v3925
    %4030 = vmatprep.subr.bf16.mxu0 %v3930
    %4031 = vmatpush1.bf16.msra.mxu0 %v3929
    %4032 = vmatprep.subr.bf16.mxu0 %v3934
    %4033 = vmatpush1.bf16.msra.mxu0 %v3933
    %4034 = vmatprep.subr.bf16.mxu0 %v3938
    %4035 = vmatpush1.bf16.msra.mxu0 %v3937
    %4036 = vmatprep.subr.bf16.mxu0 %v3942
    %4037 = vmatpush1.bf16.msra.mxu0 %v3941
    %4038 = vmatprep.subr.bf16.mxu0 %v3946
    %4039 = vmatpush1.bf16.msra.mxu0 %v3945
    %4040 = vmatprep.subr.bf16.mxu0 %v3950
    %4041 = vmatpush1.bf16.msra.mxu0 %v3949
    %4042 = vmatprep.subr.bf16.mxu0 0
    %4043 = vmatpush1.bf16.msra.mxu0 0
    %4044 = vmatprep.subr.bf16.mxu0 0
    %4045 = vmatpush1.bf16.msra.mxu0 0
    %4046 = vmatprep.subr.bf16.mxu0 0
    %4047 = vmatpush1.bf16.msra.mxu0 0
    %4048 = vmatprep.subr.bf16.mxu0 0
    %4049 = vmatpush1.bf16.msra.mxu0 0
    %4050 = vmatprep.subr.bf16.mxu0 0
    %4051 = vmatpush1.bf16.msra.mxu0 0
    %4052 = vmatprep.subr.bf16.mxu0 0
    %4053 = vmatpush1.bf16.msra.mxu0 0
    %4054 = vmatprep.subr.bf16.mxu0 0
    %4055 = vmatpush1.bf16.msra.mxu0 0
    %4056 = vmatprep.subr.bf16.mxu0 0
    %4057 = vmatpush1.bf16.msra.mxu0 0
    %4058 = vmatprep.mubr.bf16.mxu0 0
    %4059 = vmatmul.mubr.bf16.gmra.mrb[0].mxu0 %v3790
    %v4060 = vpop.f32.mrb[0].mxu0
    %v4061 = vadd.f32 0.0, %v4060
    %v4062 = vpop.f32.mrb[0].mxu0
    %v4063 = vadd.f32 0.0, %v4062
    %v4064 = vpop.f32.mrb[0].mxu0
    %v4065 = vadd.f32 0.0, %v4064
    %v4066 = vpop.f32.mrb[0].mxu0
    %v4067 = vadd.f32 0.0, %v4066
    %4068 = vdwg.mxu0
    %v4069 = vadd.f32 %v3782, %v4018
    %v4070 = vadd.f32 %v3783, %v4020
    %v4071 = vadd.f32 %v3784, %v4061
    %v4072 = vadd.f32 %v3785, %v4063
    %v4073 = vadd.f32 %v3786, %v4022
    %v4074 = vadd.f32 %v3787, %v4024
    %v4075 = vadd.f32 %v3788, %v4065
    %v4076 = vadd.f32 %v3789, %v4067
    %v4077 = vxor.u32 %v4069, 2147483648
    %v4078 = vxor.u32 %v4073, 2147483648
    %v4079 = vmul.f32 %v4077, 1.442695
    %v4080 = vpow.pop %v4079
    %v4081 = vmul.f32 %v4078, 1.442695
    %v4082 = vpow.pop %v4081
    %v4083 = vadd.f32 %v4080, 1.0
    %v4084 = vadd.f32 %v4082, 1.0
    %v4085 = vrcp.pop %v4083
    %v4086 = vmul.f32 1.0, %v4085
    %v4087 = vrcp.pop %v4084
    %v4088 = vmul.f32 1.0, %v4087
    %v4089 = vxor.u32 %v4070, 2147483648
    %v4090 = vxor.u32 %v4074, 2147483648
    %v4091 = vmul.f32 %v4089, 1.442695
    %v4092 = vpow.pop %v4091
    %v4093 = vmul.f32 %v4090, 1.442695
    %v4094 = vpow.pop %v4093
    %v4095 = vadd.f32 %v4092, 1.0
    %v4096 = vadd.f32 %v4094, 1.0
    %v4097 = vrcp.pop %v4095
    %v4098 = vmul.f32 1.0, %v4097
    %v4099 = vrcp.pop %v4096
    %v4100 = vmul.f32 1.0, %v4099
    %v4101 = vtanh.pop %v4071
    %v4102 = vtanh.pop %v4075
    %v4103 = vxor.u32 %v4072, 2147483648
    %v4104 = vxor.u32 %v4076, 2147483648
    %v4105 = vmul.f32 %v4103, 1.442695
    %v4106 = vpow.pop %v4105
    %v4107 = vmul.f32 %v4104, 1.442695
    %v4108 = vpow.pop %v4107
    %v4109 = vadd.f32 %v4106, 1.0
    %v4110 = vadd.f32 %v4108, 1.0
    %v4111 = vrcp.pop %v4109
    %v4112 = vmul.f32 1.0, %v4111
    %v4113 = vrcp.pop %v4110
    %v4114 = vmul.f32 1.0, %v4113
    %v4115 = vmul.f32 %v4098, %v3774
    %v4116 = vmul.f32 %v4100, %v3775
    %v4117 = vmul.f32 %v4086, %v4101
    %v4118 = vmul.f32 %v4088, %v4102
    %v4119 = vadd.f32 %v4115, %v4117
    %v4120 = vadd.f32 %v4116, %v4118
    %v4121 = vtanh.pop %v4119
    %v4122 = vtanh.pop %v4120
    %v4123 = vmul.f32 %v4112, %v4121
    %v4124 = vmul.f32 %v4114, %v4122
    %4125 = vst [vmem:[#allocation3 + $0x50] sm:$0xff] %v4123
    %4126 = vst [vmem:[#allocation3 + $0x58] sm:$0xff] %v4124
    %v4127 = vld [vmem:[#allocation2 + $0x180] sm:$0xff]
    %v4128 = vld [vmem:[#allocation2 + $0x188] sm:$0xff]
    %v4129 = vld [vmem:[#allocation2 + $0x190] sm:$0xff]
    %v4130 = vld [vmem:[#allocation2 + $0x198] sm:$0xff]
    %v4131 = vld [vmem:[#allocation2 + $0x1a0] sm:$0xff]
    %v4132 = vld [vmem:[#allocation2 + $0x1a8] sm:$0xff]
    %v4133 = vld [vmem:[#allocation2 + $0x1b0] sm:$0xff]
    %v4134 = vld [vmem:[#allocation2 + $0x1b8] sm:$0xff]
    %v4135 = vpack.c.bf16 %v4124, %v4123
    %v4136 = vld [vmem:[%s7] sm:$0xff]
    %v4137 = vld [vmem:[%s7 + $0x8] sm:$0xff]
    %v4138 = vld [vmem:[%s7 + $0x10] sm:$0xff]
    %v4139 = vld [vmem:[%s7 + $0x18] sm:$0xff]
    %v4140 = vld [vmem:[%s7 + $0x20] sm:$0xff]
    %v4141 = vld [vmem:[%s7 + $0x28] sm:$0xff]
    %v4142 = vld [vmem:[%s7 + $0x30] sm:$0xff]
    %v4143 = vld [vmem:[%s7 + $0x38] sm:$0xff]
    %v4144 = vld [vmem:[%s7 + $0x40] sm:$0xff]
    %v4145 = vld [vmem:[%s7 + $0x48] sm:$0xff]
    %v4146 = vld [vmem:[%s7 + $0x50] sm:$0xff]
    %v4147 = vld [vmem:[%s7 + $0x58] sm:$0xff]
    %v4148 = vld [vmem:[%s7 + $0x60] sm:$0xff]
    %v4149 = vld [vmem:[%s7 + $0x68] sm:$0xff]
    %v4150 = vld [vmem:[%s7 + $0x70] sm:$0xff]
    %v4151 = vld [vmem:[%s7 + $0x78] sm:$0xff]
    %v4152 = vld [vmem:[%s7 + $0x80] sm:$0xff]
    %v4153 = vld [vmem:[%s7 + $0x88] sm:$0xff]
    %v4154 = vld [vmem:[%s7 + $0x90] sm:$0xff]
    %v4155 = vld [vmem:[%s7 + $0x98] sm:$0xff]
    %v4156 = vld [vmem:[%s7 + $0xa0] sm:$0xff]
    %v4157 = vld [vmem:[%s7 + $0xa8] sm:$0xff]
    %v4158 = vld [vmem:[%s7 + $0xb0] sm:$0xff]
    %v4159 = vld [vmem:[%s7 + $0xb8] sm:$0xff]
    %v4160 = vld [vmem:[%s7 + $0xc0] sm:$0xff]
    %v4161 = vld [vmem:[%s7 + $0xc8] sm:$0xff]
    %v4162 = vld [vmem:[%s7 + $0xd0] sm:$0xff]
    %v4163 = vld [vmem:[%s7 + $0xd8] sm:$0xff]
    %v4164 = vld [vmem:[%s7 + $0xe0] sm:$0xff]
    %v4165 = vld [vmem:[%s7 + $0xe8] sm:$0xff]
    %v4166 = vld [vmem:[%s7 + $0xf0] sm:$0xff]
    %v4167 = vld [vmem:[%s7 + $0xf8] sm:$0xff]
    %v4200 = vunpack.c.l.b16 %v4136
    %v4201 = vunpack.c.h.b16 %v4136
    %v4202 = vunpack.c.l.b16 %v4137
    %v4203 = vunpack.c.h.b16 %v4137
    %v4204 = vunpack.c.l.b16 %v4138
    %v4205 = vunpack.c.h.b16 %v4138
    %v4206 = vunpack.c.l.b16 %v4139
    %v4207 = vunpack.c.h.b16 %v4139
    %v4208 = vunpack.c.l.b16 %v4140
    %v4209 = vunpack.c.h.b16 %v4140
    %v4210 = vunpack.c.l.b16 %v4141
    %v4211 = vunpack.c.h.b16 %v4141
    %v4212 = vunpack.c.l.b16 %v4142
    %v4213 = vunpack.c.h.b16 %v4142
    %v4214 = vunpack.c.l.b16 %v4143
    %v4215 = vunpack.c.h.b16 %v4143
    %v4216 = vunpack.c.l.b16 %v4144
    %v4217 = vunpack.c.h.b16 %v4144
    %v4218 = vunpack.c.l.b16 %v4145
    %v4219 = vunpack.c.h.b16 %v4145
    %v4220 = vunpack.c.l.b16 %v4146
    %v4221 = vunpack.c.h.b16 %v4146
    %v4222 = vunpack.c.l.b16 %v4147
    %v4223 = vunpack.c.h.b16 %v4147
    %v4224 = vunpack.c.l.b16 %v4148
    %v4225 = vunpack.c.h.b16 %v4148
    %v4226 = vunpack.c.l.b16 %v4149
    %v4227 = vunpack.c.h.b16 %v4149
    %v4228 = vunpack.c.l.b16 %v4150
    %v4229 = vunpack.c.h.b16 %v4150
    %v4230 = vunpack.c.l.b16 %v4151
    %v4231 = vunpack.c.h.b16 %v4151
    %v4232 = vunpack.c.l.b16 %v4152
    %v4233 = vunpack.c.h.b16 %v4152
    %v4234 = vunpack.c.l.b16 %v4153
    %v4235 = vunpack.c.h.b16 %v4153
    %v4236 = vunpack.c.l.b16 %v4154
    %v4237 = vunpack.c.h.b16 %v4154
    %v4238 = vunpack.c.l.b16 %v4155
    %v4239 = vunpack.c.h.b16 %v4155
    %v4240 = vunpack.c.l.b16 %v4156
    %v4241 = vunpack.c.h.b16 %v4156
    %v4242 = vunpack.c.l.b16 %v4157
    %v4243 = vunpack.c.h.b16 %v4157
    %v4244 = vunpack.c.l.b16 %v4158
    %v4245 = vunpack.c.h.b16 %v4158
    %v4246 = vunpack.c.l.b16 %v4159
    %v4247 = vunpack.c.h.b16 %v4159
    %v4248 = vunpack.c.l.b16 %v4160
    %v4249 = vunpack.c.h.b16 %v4160
    %v4250 = vunpack.c.l.b16 %v4161
    %v4251 = vunpack.c.h.b16 %v4161
    %v4252 = vunpack.c.l.b16 %v4162
    %v4253 = vunpack.c.h.b16 %v4162
    %v4254 = vunpack.c.l.b16 %v4163
    %v4255 = vunpack.c.h.b16 %v4163
    %v4256 = vunpack.c.l.b16 %v4164
    %v4257 = vunpack.c.h.b16 %v4164
    %v4258 = vunpack.c.l.b16 %v4165
    %v4259 = vunpack.c.h.b16 %v4165
    %v4260 = vunpack.c.l.b16 %v4166
    %v4261 = vunpack.c.h.b16 %v4166
    %v4262 = vunpack.c.l.b16 %v4167
    %v4263 = vunpack.c.h.b16 %v4167
    %v4264 = vpack.c.b16 %v4204, %v4200
    %v4265 = vpack.c.b16 %v4205, %v4201
    %v4266 = vpack.c.b16 %v4206, %v4202
    %v4267 = vpack.c.b16 %v4207, %v4203
    %v4268 = vpack.c.b16 %v4212, %v4208
    %v4269 = vpack.c.b16 %v4213, %v4209
    %v4270 = vpack.c.b16 %v4214, %v4210
    %v4271 = vpack.c.b16 %v4215, %v4211
    %v4272 = vpack.c.b16 %v4220, %v4216
    %v4273 = vpack.c.b16 %v4221, %v4217
    %v4274 = vpack.c.b16 %v4222, %v4218
    %v4275 = vpack.c.b16 %v4223, %v4219
    %v4276 = vpack.c.b16 %v4228, %v4224
    %v4277 = vpack.c.b16 %v4229, %v4225
    %v4278 = vpack.c.b16 %v4230, %v4226
    %v4279 = vpack.c.b16 %v4231, %v4227
    %v4280 = vpack.c.b16 %v4236, %v4232
    %v4281 = vpack.c.b16 %v4237, %v4233
    %v4282 = vpack.c.b16 %v4238, %v4234
    %v4283 = vpack.c.b16 %v4239, %v4235
    %v4284 = vpack.c.b16 %v4244, %v4240
    %v4285 = vpack.c.b16 %v4245, %v4241
    %v4286 = vpack.c.b16 %v4246, %v4242
    %v4287 = vpack.c.b16 %v4247, %v4243
    %v4288 = vpack.c.b16 %v4252, %v4248
    %v4289 = vpack.c.b16 %v4253, %v4249
    %v4290 = vpack.c.b16 %v4254, %v4250
    %v4291 = vpack.c.b16 %v4255, %v4251
    %v4292 = vpack.c.b16 %v4260, %v4256
    %v4293 = vpack.c.b16 %v4261, %v4257
    %v4294 = vpack.c.b16 %v4262, %v4258
    %v4295 = vpack.c.b16 %v4263, %v4259
    %4328 = vmatprep.subr.bf16.mxu0 %v4265
    %4329 = vmatpush1.bf16.msra.mxu0 %v4264
    %4330 = vmatprep.subr.bf16.mxu0 %v4269
    %4331 = vmatpush1.bf16.msra.mxu0 %v4268
    %4332 = vmatprep.subr.bf16.mxu0 %v4273
    %4333 = vmatpush1.bf16.msra.mxu0 %v4272
    %4334 = vmatprep.subr.bf16.mxu0 %v4277
    %4335 = vmatpush1.bf16.msra.mxu0 %v4276
    %4336 = vmatprep.subr.bf16.mxu0 %v4281
    %4337 = vmatpush1.bf16.msra.mxu0 %v4280
    %4338 = vmatprep.subr.bf16.mxu0 %v4285
    %4339 = vmatpush1.bf16.msra.mxu0 %v4284
    %4340 = vmatprep.subr.bf16.mxu0 %v4289
    %4341 = vmatpush1.bf16.msra.mxu0 %v4288
    %4342 = vmatprep.subr.bf16.mxu0 %v4293
    %4343 = vmatpush1.bf16.msra.mxu0 %v4292
    %4344 = vmatprep.subr.bf16.mxu0 0
    %4345 = vmatpush1.bf16.msra.mxu0 0
    %4346 = vmatprep.subr.bf16.mxu0 0
    %4347 = vmatpush1.bf16.msra.mxu0 0
    %4348 = vmatprep.subr.bf16.mxu0 0
    %4349 = vmatpush1.bf16.msra.mxu0 0
    %4350 = vmatprep.subr.bf16.mxu0 0
    %4351 = vmatpush1.bf16.msra.mxu0 0
    %4352 = vmatprep.subr.bf16.mxu0 0
    %4353 = vmatpush1.bf16.msra.mxu0 0
    %4354 = vmatprep.subr.bf16.mxu0 0
    %4355 = vmatpush1.bf16.msra.mxu0 0
    %4356 = vmatprep.subr.bf16.mxu0 0
    %4357 = vmatpush1.bf16.msra.mxu0 0
    %4358 = vmatprep.subr.bf16.mxu0 0
    %4359 = vmatpush1.bf16.msra.mxu0 0
    %4360 = vmatprep.mubr.bf16.mxu0 0
    %4361 = vmatmul.mubr.bf16.gmra.mrb[0].mxu0 %v4135
    %v4362 = vpop.f32.mrb[0].mxu0
    %v4363 = vadd.f32 0.0, %v4362
    %v4364 = vpop.f32.mrb[0].mxu0
    %v4365 = vadd.f32 0.0, %v4364
    %v4366 = vpop.f32.mrb[0].mxu0
    %v4367 = vadd.f32 0.0, %v4366
    %v4368 = vpop.f32.mrb[0].mxu0
    %v4369 = vadd.f32 0.0, %v4368
    %4370 = vdwg.mxu0
    %4371 = vmatprep.subr.bf16.mxu0 %v4267
    %4372 = vmatpush1.bf16.msra.mxu0 %v4266
    %4373 = vmatprep.subr.bf16.mxu0 %v4271
    %4374 = vmatpush1.bf16.msra.mxu0 %v4270
    %4375 = vmatprep.subr.bf16.mxu0 %v4275
    %4376 = vmatpush1.bf16.msra.mxu0 %v4274
    %4377 = vmatprep.subr.bf16.mxu0 %v4279
    %4378 = vmatpush1.bf16.msra.mxu0 %v4278
    %4379 = vmatprep.subr.bf16.mxu0 %v4283
    %4380 = vmatpush1.bf16.msra.mxu0 %v4282
    %4381 = vmatprep.subr.bf16.mxu0 %v4287
    %4382 = vmatpush1.bf16.msra.mxu0 %v4286
    %4383 = vmatprep.subr.bf16.mxu0 %v4291
    %4384 = vmatpush1.bf16.msra.mxu0 %v4290
    %4385 = vmatprep.subr.bf16.mxu0 %v4295
    %4386 = vmatpush1.bf16.msra.mxu0 %v4294
    %4387 = vmatprep.subr.bf16.mxu0 0
    %4388 = vmatpush1.bf16.msra.mxu0 0
    %4389 = vmatprep.subr.bf16.mxu0 0
    %4390 = vmatpush1.bf16.msra.mxu0 0
    %4391 = vmatprep.subr.bf16.mxu0 0
    %4392 = vmatpush1.bf16.msra.mxu0 0
    %4393 = vmatprep.subr.bf16.mxu0 0
    %4394 = vmatpush1.bf16.msra.mxu0 0
    %4395 = vmatprep.subr.bf16.mxu0 0
    %4396 = vmatpush1.bf16.msra.mxu0 0
    %4397 = vmatprep.subr.bf16.mxu0 0
    %4398 = vmatpush1.bf16.msra.mxu0 0
    %4399 = vmatprep.subr.bf16.mxu0 0
    %4400 = vmatpush1.bf16.msra.mxu0 0
    %4401 = vmatprep.subr.bf16.mxu0 0
    %4402 = vmatpush1.bf16.msra.mxu0 0
    %4403 = vmatprep.mubr.bf16.mxu0 0
    %4404 = vmatmul.mubr.bf16.gmra.mrb[0].mxu0 %v4135
    %v4405 = vpop.f32.mrb[0].mxu0
    %v4406 = vadd.f32 0.0, %v4405
    %v4407 = vpop.f32.mrb[0].mxu0
    %v4408 = vadd.f32 0.0, %v4407
    %v4409 = vpop.f32.mrb[0].mxu0
    %v4410 = vadd.f32 0.0, %v4409
    %v4411 = vpop.f32.mrb[0].mxu0
    %v4412 = vadd.f32 0.0, %v4411
    %4413 = vdwg.mxu0
    %v4414 = vadd.f32 %v4127, %v4363
    %v4415 = vadd.f32 %v4128, %v4365
    %v4416 = vadd.f32 %v4129, %v4406
    %v4417 = vadd.f32 %v4130, %v4408
    %v4418 = vadd.f32 %v4131, %v4367
    %v4419 = vadd.f32 %v4132, %v4369
    %v4420 = vadd.f32 %v4133, %v4410
    %v4421 = vadd.f32 %v4134, %v4412
    %v4422 = vxor.u32 %v4414, 2147483648
    %v4423 = vxor.u32 %v4418, 2147483648
    %v4424 = vmul.f32 %v4422, 1.442695
    %v4425 = vpow.pop %v4424
    %v4426 = vmul.f32 %v4423, 1.442695
    %v4427 = vpow.pop %v4426
    %v4428 = vadd.f32 %v4425, 1.0
    %v4429 = vadd.f32 %v4427, 1.0
    %v4430 = vrcp.pop %v4428
    %v4431 = vmul.f32 1.0, %v4430
    %v4432 = vrcp.pop %v4429
    %v4433 = vmul.f32 1.0, %v4432
    %v4434 = vxor.u32 %v4415, 2147483648
    %v4435 = vxor.u32 %v4419, 2147483648
    %v4436 = vmul.f32 %v4434, 1.442695
    %v4437 = vpow.pop %v4436
    %v4438 = vmul.f32 %v4435, 1.442695
    %v4439 = vpow.pop %v4438
    %v4440 = vadd.f32 %v4437, 1.0
    %v4441 = vadd.f32 %v4439, 1.0
    %v4442 = vrcp.pop %v4440
    %v4443 = vmul.f32 1.0, %v4442
    %v4444 = vrcp.pop %v4441
    %v4445 = vmul.f32 1.0, %v4444
    %v4446 = vtanh.pop %v4416
    %v4447 = vtanh.pop %v4420
    %v4448 = vxor.u32 %v4417, 2147483648
    %v4449 = vxor.u32 %v4421, 2147483648
    %v4450 = vmul.f32 %v4448, 1.442695
    %v4451 = vpow.pop %v4450
    %v4452 = vmul.f32 %v4449, 1.442695
    %v4453 = vpow.pop %v4452
    %v4454 = vadd.f32 %v4451, 1.0
    %v4455 = vadd.f32 %v4453, 1.0
    %v4456 = vrcp.pop %v4454
    %v4457 = vmul.f32 1.0, %v4456
    %v4458 = vrcp.pop %v4455
    %v4459 = vmul.f32 1.0, %v4458
    %v4460 = vmul.f32 %v4443, %v4119
    %v4461 = vmul.f32 %v4445, %v4120
    %v4462 = vmul.f32 %v4431, %v4446
    %v4463 = vmul.f32 %v4433, %v4447
    %v4464 = vadd.f32 %v4460, %v4462
    %v4465 = vadd.f32 %v4461, %v4463
    %v4466 = vtanh.pop %v4464
    %v4467 = vtanh.pop %v4465
    %v4468 = vmul.f32 %v4457, %v4466
    %v4469 = vmul.f32 %v4459, %v4467
    %4470 = vst [vmem:[#allocation3 + $0x60] sm:$0xff] %v4468
    %4471 = vst [vmem:[#allocation3 + $0x68] sm:$0xff] %v4469
    %v4472 = vld [vmem:[#allocation2 + $0x1c0] sm:$0xff]
    %v4473 = vld [vmem:[#allocation2 + $0x1c8] sm:$0xff]
    %v4474 = vld [vmem:[#allocation2 + $0x1d0] sm:$0xff]
    %v4475 = vld [vmem:[#allocation2 + $0x1d8] sm:$0xff]
    %v4476 = vld [vmem:[#allocation2 + $0x1e0] sm:$0xff]
    %v4477 = vld [vmem:[#allocation2 + $0x1e8] sm:$0xff]
    %v4478 = vld [vmem:[#allocation2 + $0x1f0] sm:$0xff]
    %v4479 = vld [vmem:[#allocation2 + $0x1f8] sm:$0xff]
    %v4480 = vpack.c.bf16 %v4469, %v4468
    %v4481 = vld [vmem:[%s7] sm:$0xff]
    %v4482 = vld [vmem:[%s7 + $0x8] sm:$0xff]
    %v4483 = vld [vmem:[%s7 + $0x10] sm:$0xff]
    %v4484 = vld [vmem:[%s7 + $0x18] sm:$0xff]
    %v4485 = vld [vmem:[%s7 + $0x20] sm:$0xff]
    %v4486 = vld [vmem:[%s7 + $0x28] sm:$0xff]
    %v4487 = vld [vmem:[%s7 + $0x30] sm:$0xff]
    %v4488 = vld [vmem:[%s7 + $0x38] sm:$0xff]
    %v4489 = vld [vmem:[%s7 + $0x40] sm:$0xff]
    %v4490 = vld [vmem:[%s7 + $0x48] sm:$0xff]
    %v4491 = vld [vmem:[%s7 + $0x50] sm:$0xff]
    %v4492 = vld [vmem:[%s7 + $0x58] sm:$0xff]
    %v4493 = vld [vmem:[%s7 + $0x60] sm:$0xff]
    %v4494 = vld [vmem:[%s7 + $0x68] sm:$0xff]
    %v4495 = vld [vmem:[%s7 + $0x70] sm:$0xff]
    %v4496 = vld [vmem:[%s7 + $0x78] sm:$0xff]
    %v4497 = vld [vmem:[%s7 + $0x80] sm:$0xff]
    %v4498 = vld [vmem:[%s7 + $0x88] sm:$0xff]
    %v4499 = vld [vmem:[%s7 + $0x90] sm:$0xff]
    %v4500 = vld [vmem:[%s7 + $0x98] sm:$0xff]
    %v4501 = vld [vmem:[%s7 + $0xa0] sm:$0xff]
    %v4502 = vld [vmem:[%s7 + $0xa8] sm:$0xff]
    %v4503 = vld [vmem:[%s7 + $0xb0] sm:$0xff]
    %v4504 = vld [vmem:[%s7 + $0xb8] sm:$0xff]
    %v4505 = vld [vmem:[%s7 + $0xc0] sm:$0xff]
    %v4506 = vld [vmem:[%s7 + $0xc8] sm:$0xff]
    %v4507 = vld [vmem:[%s7 + $0xd0] sm:$0xff]
    %v4508 = vld [vmem:[%s7 + $0xd8] sm:$0xff]
    %v4509 = vld [vmem:[%s7 + $0xe0] sm:$0xff]
    %v4510 = vld [vmem:[%s7 + $0xe8] sm:$0xff]
    %v4511 = vld [vmem:[%s7 + $0xf0] sm:$0xff]
    %v4512 = vld [vmem:[%s7 + $0xf8] sm:$0xff]
    %v4545 = vunpack.c.l.b16 %v4481
    %v4546 = vunpack.c.h.b16 %v4481
    %v4547 = vunpack.c.l.b16 %v4482
    %v4548 = vunpack.c.h.b16 %v4482
    %v4549 = vunpack.c.l.b16 %v4483
    %v4550 = vunpack.c.h.b16 %v4483
    %v4551 = vunpack.c.l.b16 %v4484
    %v4552 = vunpack.c.h.b16 %v4484
    %v4553 = vunpack.c.l.b16 %v4485
    %v4554 = vunpack.c.h.b16 %v4485
    %v4555 = vunpack.c.l.b16 %v4486
    %v4556 = vunpack.c.h.b16 %v4486
    %v4557 = vunpack.c.l.b16 %v4487
    %v4558 = vunpack.c.h.b16 %v4487
    %v4559 = vunpack.c.l.b16 %v4488
    %v4560 = vunpack.c.h.b16 %v4488
    %v4561 = vunpack.c.l.b16 %v4489
    %v4562 = vunpack.c.h.b16 %v4489
    %v4563 = vunpack.c.l.b16 %v4490
    %v4564 = vunpack.c.h.b16 %v4490
    %v4565 = vunpack.c.l.b16 %v4491
    %v4566 = vunpack.c.h.b16 %v4491
    %v4567 = vunpack.c.l.b16 %v4492
    %v4568 = vunpack.c.h.b16 %v4492
    %v4569 = vunpack.c.l.b16 %v4493
    %v4570 = vunpack.c.h.b16 %v4493
    %v4571 = vunpack.c.l.b16 %v4494
    %v4572 = vunpack.c.h.b16 %v4494
    %v4573 = vunpack.c.l.b16 %v4495
    %v4574 = vunpack.c.h.b16 %v4495
    %v4575 = vunpack.c.l.b16 %v4496
    %v4576 = vunpack.c.h.b16 %v4496
    %v4577 = vunpack.c.l.b16 %v4497
    %v4578 = vunpack.c.h.b16 %v4497
    %v4579 = vunpack.c.l.b16 %v4498
    %v4580 = vunpack.c.h.b16 %v4498
    %v4581 = vunpack.c.l.b16 %v4499
    %v4582 = vunpack.c.h.b16 %v4499
    %v4583 = vunpack.c.l.b16 %v4500
    %v4584 = vunpack.c.h.b16 %v4500
    %v4585 = vunpack.c.l.b16 %v4501
    %v4586 = vunpack.c.h.b16 %v4501
    %v4587 = vunpack.c.l.b16 %v4502
    %v4588 = vunpack.c.h.b16 %v4502
    %v4589 = vunpack.c.l.b16 %v4503
    %v4590 = vunpack.c.h.b16 %v4503
    %v4591 = vunpack.c.l.b16 %v4504
    %v4592 = vunpack.c.h.b16 %v4504
    %v4593 = vunpack.c.l.b16 %v4505
    %v4594 = vunpack.c.h.b16 %v4505
    %v4595 = vunpack.c.l.b16 %v4506
    %v4596 = vunpack.c.h.b16 %v4506
    %v4597 = vunpack.c.l.b16 %v4507
    %v4598 = vunpack.c.h.b16 %v4507
    %v4599 = vunpack.c.l.b16 %v4508
    %v4600 = vunpack.c.h.b16 %v4508
    %v4601 = vunpack.c.l.b16 %v4509
    %v4602 = vunpack.c.h.b16 %v4509
    %v4603 = vunpack.c.l.b16 %v4510
    %v4604 = vunpack.c.h.b16 %v4510
    %v4605 = vunpack.c.l.b16 %v4511
    %v4606 = vunpack.c.h.b16 %v4511
    %v4607 = vunpack.c.l.b16 %v4512
    %v4608 = vunpack.c.h.b16 %v4512
    %v4609 = vpack.c.b16 %v4549, %v4545
    %v4610 = vpack.c.b16 %v4550, %v4546
    %v4611 = vpack.c.b16 %v4551, %v4547
    %v4612 = vpack.c.b16 %v4552, %v4548
    %v4613 = vpack.c.b16 %v4557, %v4553
    %v4614 = vpack.c.b16 %v4558, %v4554
    %v4615 = vpack.c.b16 %v4559, %v4555
    %v4616 = vpack.c.b16 %v4560, %v4556
    %v4617 = vpack.c.b16 %v4565, %v4561
    %v4618 = vpack.c.b16 %v4566, %v4562
    %v4619 = vpack.c.b16 %v4567, %v4563
    %v4620 = vpack.c.b16 %v4568, %v4564
    %v4621 = vpack.c.b16 %v4573, %v4569
    %v4622 = vpack.c.b16 %v4574, %v4570
    %v4623 = vpack.c.b16 %v4575, %v4571
    %v4624 = vpack.c.b16 %v4576, %v4572
    %v4625 = vpack.c.b16 %v4581, %v4577
    %v4626 = vpack.c.b16 %v4582, %v4578
    %v4627 = vpack.c.b16 %v4583, %v4579
    %v4628 = vpack.c.b16 %v4584, %v4580
    %v4629 = vpack.c.b16 %v4589, %v4585
    %v4630 = vpack.c.b16 %v4590, %v4586
    %v4631 = vpack.c.b16 %v4591, %v4587
    %v4632 = vpack.c.b16 %v4592, %v4588
    %v4633 = vpack.c.b16 %v4597, %v4593
    %v4634 = vpack.c.b16 %v4598, %v4594
    %v4635 = vpack.c.b16 %v4599, %v4595
    %v4636 = vpack.c.b16 %v4600, %v4596
    %v4637 = vpack.c.b16 %v4605, %v4601
    %v4638 = vpack.c.b16 %v4606, %v4602
    %v4639 = vpack.c.b16 %v4607, %v4603
    %v4640 = vpack.c.b16 %v4608, %v4604
    %4673 = vmatprep.subr.bf16.mxu0 %v4610
    %4674 = vmatpush1.bf16.msra.mxu0 %v4609
    %4675 = vmatprep.subr.bf16.mxu0 %v4614
    %4676 = vmatpush1.bf16.msra.mxu0 %v4613
    %4677 = vmatprep.subr.bf16.mxu0 %v4618
    %4678 = vmatpush1.bf16.msra.mxu0 %v4617
    %4679 = vmatprep.subr.bf16.mxu0 %v4622
    %4680 = vmatpush1.bf16.msra.mxu0 %v4621
    %4681 = vmatprep.subr.bf16.mxu0 %v4626
    %4682 = vmatpush1.bf16.msra.mxu0 %v4625
    %4683 = vmatprep.subr.bf16.mxu0 %v4630
    %4684 = vmatpush1.bf16.msra.mxu0 %v4629
    %4685 = vmatprep.subr.bf16.mxu0 %v4634
    %4686 = vmatpush1.bf16.msra.mxu0 %v4633
    %4687 = vmatprep.subr.bf16.mxu0 %v4638
    %4688 = vmatpush1.bf16.msra.mxu0 %v4637
    %4689 = vmatprep.subr.bf16.mxu0 0
    %4690 = vmatpush1.bf16.msra.mxu0 0
    %4691 = vmatprep.subr.bf16.mxu0 0
    %4692 = vmatpush1.bf16.msra.mxu0 0
    %4693 = vmatprep.subr.bf16.mxu0 0
    %4694 = vmatpush1.bf16.msra.mxu0 0
    %4695 = vmatprep.subr.bf16.mxu0 0
    %4696 = vmatpush1.bf16.msra.mxu0 0
    %4697 = vmatprep.subr.bf16.mxu0 0
    %4698 = vmatpush1.bf16.msra.mxu0 0
    %4699 = vmatprep.subr.bf16.mxu0 0
    %4700 = vmatpush1.bf16.msra.mxu0 0
    %4701 = vmatprep.subr.bf16.mxu0 0
    %4702 = vmatpush1.bf16.msra.mxu0 0
    %4703 = vmatprep.subr.bf16.mxu0 0
    %4704 = vmatpush1.bf16.msra.mxu0 0
    %4705 = vmatprep.mubr.bf16.mxu0 0
    %4706 = vmatmul.mubr.bf16.gmra.mrb[0].mxu0 %v4480
    %v4707 = vpop.f32.mrb[0].mxu0
    %v4708 = vadd.f32 0.0, %v4707
    %v4709 = vpop.f32.mrb[0].mxu0
    %v4710 = vadd.f32 0.0, %v4709
    %v4711 = vpop.f32.mrb[0].mxu0
    %v4712 = vadd.f32 0.0, %v4711
    %v4713 = vpop.f32.mrb[0].mxu0
    %v4714 = vadd.f32 0.0, %v4713
    %4715 = vdwg.mxu0
    %4716 = vmatprep.subr.bf16.mxu0 %v4612
    %4717 = vmatpush1.bf16.msra.mxu0 %v4611
    %4718 = vmatprep.subr.bf16.mxu0 %v4616
    %4719 = vmatpush1.bf16.msra.mxu0 %v4615
    %4720 = vmatprep.subr.bf16.mxu0 %v4620
    %4721 = vmatpush1.bf16.msra.mxu0 %v4619
    %4722 = vmatprep.subr.bf16.mxu0 %v4624
    %4723 = vmatpush1.bf16.msra.mxu0 %v4623
    %4724 = vmatprep.subr.bf16.mxu0 %v4628
    %4725 = vmatpush1.bf16.msra.mxu0 %v4627
    %4726 = vmatprep.subr.bf16.mxu0 %v4632
    %4727 = vmatpush1.bf16.msra.mxu0 %v4631
    %4728 = vmatprep.subr.bf16.mxu0 %v4636
    %4729 = vmatpush1.bf16.msra.mxu0 %v4635
    %4730 = vmatprep.subr.bf16.mxu0 %v4640
    %4731 = vmatpush1.bf16.msra.mxu0 %v4639
    %4732 = vmatprep.subr.bf16.mxu0 0
    %4733 = vmatpush1.bf16.msra.mxu0 0
    %4734 = vmatprep.subr.bf16.mxu0 0
    %4735 = vmatpush1.bf16.msra.mxu0 0
    %4736 = vmatprep.subr.bf16.mxu0 0
    %4737 = vmatpush1.bf16.msra.mxu0 0
    %4738 = vmatprep.subr.bf16.mxu0 0
    %4739 = vmatpush1.bf16.msra.mxu0 0
    %4740 = vmatprep.subr.bf16.mxu0 0
    %4741 = vmatpush1.bf16.msra.mxu0 0
    %4742 = vmatprep.subr.bf16.mxu0 0
    %4743 = vmatpush1.bf16.msra.mxu0 0
    %4744 = vmatprep.subr.bf16.mxu0 0
    %4745 = vmatpush1.bf16.msra.mxu0 0
    %4746 = vmatprep.subr.bf16.mxu0 0
    %4747 = vmatpush1.bf16.msra.mxu0 0
    %4748 = vmatprep.mubr.bf16.mxu0 0
    %4749 = vmatmul.mubr.bf16.gmra.mrb[0].mxu0 %v4480
    %v4750 = vpop.f32.mrb[0].mxu0
    %v4751 = vadd.f32 0.0, %v4750
    %v4752 = vpop.f32.mrb[0].mxu0
    %v4753 = vadd.f32 0.0, %v4752
    %v4754 = vpop.f32.mrb[0].mxu0
    %v4755 = vadd.f32 0.0, %v4754
    %v4756 = vpop.f32.mrb[0].mxu0
    %v4757 = vadd.f32 0.0, %v4756
    %4758 = vdwg.mxu0
    %v4759 = vadd.f32 %v4472, %v4708
    %v4760 = vadd.f32 %v4473, %v4710
    %v4761 = vadd.f32 %v4474, %v4751
    %v4762 = vadd.f32 %v4475, %v4753
    %v4763 = vadd.f32 %v4476, %v4712
    %v4764 = vadd.f32 %v4477, %v4714
    %v4765 = vadd.f32 %v4478, %v4755
    %v4766 = vadd.f32 %v4479, %v4757
    %v4767 = vxor.u32 %v4759, 2147483648
    %v4768 = vxor.u32 %v4763, 2147483648
    %v4769 = vmul.f32 %v4767, 1.442695
    %v4770 = vpow.pop %v4769
    %v4771 = vmul.f32 %v4768, 1.442695
    %v4772 = vpow.pop %v4771
    %v4773 = vadd.f32 %v4770, 1.0
    %v4774 = vadd.f32 %v4772, 1.0
    %v4775 = vrcp.pop %v4773
    %v4776 = vmul.f32 1.0, %v4775
    %v4777 = vrcp.pop %v4774
    %v4778 = vmul.f32 1.0, %v4777
    %v4779 = vxor.u32 %v4760, 2147483648
    %v4780 = vxor.u32 %v4764, 2147483648
    %v4781 = vmul.f32 %v4779, 1.442695
    %v4782 = vpow.pop %v4781
    %v4783 = vmul.f32 %v4780, 1.442695
    %v4784 = vpow.pop %v4783
    %v4785 = vadd.f32 %v4782, 1.0
    %v4786 = vadd.f32 %v4784, 1.0
    %v4787 = vrcp.pop %v4785
    %v4788 = vmul.f32 1.0, %v4787
    %v4789 = vrcp.pop %v4786
    %v4790 = vmul.f32 1.0, %v4789
    %v4791 = vtanh.pop %v4761
    %v4792 = vtanh.pop %v4765
    %v4793 = vxor.u32 %v4762, 2147483648
    %v4794 = vxor.u32 %v4766, 2147483648
    %v4795 = vmul.f32 %v4793, 1.442695
    %v4796 = vpow.pop %v4795
    %v4797 = vmul.f32 %v4794, 1.442695
    %v4798 = vpow.pop %v4797
    %v4799 = vadd.f32 %v4796, 1.0
    %v4800 = vadd.f32 %v4798, 1.0
    %v4801 = vrcp.pop %v4799
    %v4802 = vmul.f32 1.0, %v4801
    %v4803 = vrcp.pop %v4800
    %v4804 = vmul.f32 1.0, %v4803
    %v4805 = vmul.f32 %v4788, %v4464
    %v4806 = vmul.f32 %v4790, %v4465
    %v4807 = vmul.f32 %v4776, %v4791
    %v4808 = vmul.f32 %v4778, %v4792
    %v4809 = vadd.f32 %v4805, %v4807
    %v4810 = vadd.f32 %v4806, %v4808
    %v4811 = vtanh.pop %v4809
    %v4812 = vtanh.pop %v4810
    %v4813 = vmul.f32 %v4802, %v4811
    %v4814 = vmul.f32 %v4804, %v4812
    %4815 = vst [vmem:[#allocation3 + $0x70] sm:$0xff] %v4813
    %4816 = vst [vmem:[#allocation3 + $0x78] sm:$0xff] %v4814
    %v4817 = vld [vmem:[#allocation3] sm:$0xff]
    %v4818 = vld [vmem:[#allocation3 + $0x8] sm:$0xff]
    %v4819 = vld [vmem:[#allocation3 + $0x10] sm:$0xff]
    %v4820 = vld [vmem:[#allocation3 + $0x18] sm:$0xff]
    %v4821 = vld [vmem:[#allocation3 + $0x20] sm:$0xff]
    %v4822 = vld [vmem:[#allocation3 + $0x28] sm:$0xff]
    %v4823 = vld [vmem:[#allocation3 + $0x30] sm:$0xff]
    %v4824 = vld [vmem:[#allocation3 + $0x38] sm:$0xff]
    %v4825 = vld [vmem:[#allocation3 + $0x40] sm:$0xff]
    %v4826 = vld [vmem:[#allocation3 + $0x48] sm:$0xff]
    %v4827 = vld [vmem:[#allocation3 + $0x50] sm:$0xff]
    %v4828 = vld [vmem:[#allocation3 + $0x58] sm:$0xff]
    %v4829 = vld [vmem:[#allocation3 + $0x60] sm:$0xff]
    %v4830 = vld [vmem:[#allocation3 + $0x68] sm:$0xff]
    %v4831 = vld [vmem:[#allocation3 + $0x70] sm:$0xff]
    %v4832 = vld [vmem:[#allocation3 + $0x78] sm:$0xff]
    %v4833 = vpack.c.bf16 %v4818, %v4817
    %v4834 = vpack.c.bf16 %v4820, %v4819
    %v4835 = vpack.c.bf16 %v4822, %v4821
    %v4836 = vpack.c.bf16 %v4824, %v4823
    %v4837 = vpack.c.bf16 %v4826, %v4825
    %v4838 = vpack.c.bf16 %v4828, %v4827
    %v4839 = vpack.c.bf16 %v4830, %v4829
    %v4840 = vpack.c.bf16 %v4832, %v4831
    %v4841 = vld [vmem:[%s8] sm:$0xf]
    %v4842 = vld [vmem:[%s8 + $0x4] sm:$0xf]
    %v4843 = vld [vmem:[%s8 + $0x8] sm:$0xf]
    %v4844 = vld [vmem:[%s8 + $0xc] sm:$0xf]
    %v4845 = vld [vmem:[%s8 + $0x10] sm:$0xf]
    %v4846 = vld [vmem:[%s8 + $0x14] sm:$0xf]
    %v4847 = vld [vmem:[%s8 + $0x18] sm:$0xf]
    %v4848 = vld [vmem:[%s8 + $0x1c] sm:$0xf]
    %v4849 = vld [vmem:[%s8 + $0x20] sm:$0xf]
    %v4850 = vld [vmem:[%s8 + $0x24] sm:$0xf]
    %v4851 = vld [vmem:[%s8 + $0x28] sm:$0xf]
    %v4852 = vld [vmem:[%s8 + $0x2c] sm:$0xf]
    %v4853 = vld [vmem:[%s8 + $0x30] sm:$0xf]
    %v4854 = vld [vmem:[%s8 + $0x34] sm:$0xf]
    %v4855 = vld [vmem:[%s8 + $0x38] sm:$0xf]
    %v4856 = vld [vmem:[%s8 + $0x3c] sm:$0xf]
    %v4858 = vlaneseq
    %v4859 = vshrl.u32 %v4858, 7
    %v4860 = vsub.s32 0, %v4859
    %v4861 = vrot.slane %v44, %v4860
    %v4879 = vunpack.c.l.b16 %v4841
    %v4880 = vunpack.c.l.b16 %v4842
    %v4881 = vunpack.c.l.b16 %v4843
    %v4882 = vunpack.c.l.b16 %v4844
    %v4883 = vunpack.c.l.b16 %v4845
    %v4884 = vunpack.c.l.b16 %v4846
    %v4885 = vunpack.c.l.b16 %v4847
    %v4886 = vunpack.c.l.b16 %v4848
    %v4887 = vunpack.c.l.b16 %v4849
    %v4888 = vunpack.c.l.b16 %v4850
    %v4889 = vunpack.c.l.b16 %v4851
    %v4890 = vunpack.c.l.b16 %v4852
    %v4891 = vunpack.c.l.b16 %v4853
    %v4892 = vunpack.c.l.b16 %v4854
    %v4893 = vunpack.c.l.b16 %v4855
    %v4894 = vunpack.c.l.b16 %v4856
    %v4895 = vpack.c.b16 %v4880, %v4879
    %v4896 = vpack.c.b16 %v4882, %v4881
    %v4897 = vpack.c.b16 %v4884, %v4883
    %v4898 = vpack.c.b16 %v4886, %v4885
    %v4899 = vpack.c.b16 %v4888, %v4887
    %v4900 = vpack.c.b16 %v4890, %v4889
    %v4901 = vpack.c.b16 %v4892, %v4891
    %v4902 = vpack.c.b16 %v4894, %v4893
    %4911 = vmatprep.subr.bf16.mxu0 0
    %4912 = vmatpush1.bf16.msra.mxu0 %v4895
    %4913 = vmatprep.subr.bf16.mxu0 0
    %4914 = vmatpush1.bf16.msra.mxu0 %v4896
    %4915 = vmatprep.subr.bf16.mxu0 0
    %4916 = vmatpush1.bf16.msra.mxu0 %v4897
    %4917 = vmatprep.subr.bf16.mxu0 0
    %4918 = vmatpush1.bf16.msra.mxu0 %v4898
    %4919 = vmatprep.subr.bf16.mxu0 0
    %4920 = vmatpush1.bf16.msra.mxu0 %v4899
    %4921 = vmatprep.subr.bf16.mxu0 0
    %4922 = vmatpush1.bf16.msra.mxu0 %v4900
    %4923 = vmatprep.subr.bf16.mxu0 0
    %4924 = vmatpush1.bf16.msra.mxu0 %v4901
    %4925 = vmatprep.subr.bf16.mxu0 0
    %4926 = vmatpush1.bf16.msra.mxu0 %v4902
    %4927 = vmatprep.subr.bf16.mxu0 0
    %4928 = vmatpush1.bf16.msra.mxu0 0
    %4929 = vmatprep.subr.bf16.mxu0 0
    %4930 = vmatpush1.bf16.msra.mxu0 0
    %4931 = vmatprep.subr.bf16.mxu0 0
    %4932 = vmatpush1.bf16.msra.mxu0 0
    %4933 = vmatprep.subr.bf16.mxu0 0
    %4934 = vmatpush1.bf16.msra.mxu0 0
    %4935 = vmatprep.subr.bf16.mxu0 0
    %4936 = vmatpush1.bf16.msra.mxu0 0
    %4937 = vmatprep.subr.bf16.mxu0 0
    %4938 = vmatpush1.bf16.msra.mxu0 0
    %4939 = vmatprep.subr.bf16.mxu0 0
    %4940 = vmatpush1.bf16.msra.mxu0 0
    %4941 = vmatprep.subr.bf16.mxu0 0
    %4942 = vmatpush1.bf16.msra.mxu0 0
    %4943 = vmatprep.mubr.bf16.mxu0 0
    %4944 = vmatmul.mubr.bf16.gmra.mrb[0].mxu0 %v4833
    %v4945 = vpop.f32.mrb[0].mxu0
    %v4946 = vadd.f32 %v4861, %v4945
    %v4947 = vpop.f32.mrb[0].mxu0
    %v4948 = vpop.f32.mrb[0].mxu0
    %v4949 = vadd.f32 %v4861, %v4948
    %v4950 = vpop.f32.mrb[0].mxu0
    %4951 = vmatprep.mubr.bf16.mxu0 0
    %4952 = vmatmul.mubr.bf16.gmra.mrb[0].mxu0 %v4834
    %v4953 = vpop.f32.mrb[0].mxu0
    %v4954 = vadd.f32 %v4861, %v4953
    %v4955 = vpop.f32.mrb[0].mxu0
    %v4956 = vpop.f32.mrb[0].mxu0
    %v4957 = vadd.f32 %v4861, %v4956
    %v4958 = vpop.f32.mrb[0].mxu0
    %4959 = vmatprep.mubr.bf16.mxu0 0
    %4960 = vmatmul.mubr.bf16.gmra.mrb[0].mxu0 %v4835
    %v4961 = vpop.f32.mrb[0].mxu0
    %v4962 = vadd.f32 %v4861, %v4961
    %v4963 = vpop.f32.mrb[0].mxu0
    %v4964 = vpop.f32.mrb[0].mxu0
    %v4965 = vadd.f32 %v4861, %v4964
    %v4966 = vpop.f32.mrb[0].mxu0
    %4967 = vmatprep.mubr.bf16.mxu0 0
    %4968 = vmatmul.mubr.bf16.gmra.mrb[0].mxu0 %v4836
    %v4969 = vpop.f32.mrb[0].mxu0
    %v4970 = vadd.f32 %v4861, %v4969
    %v4971 = vpop.f32.mrb[0].mxu0
    %v4972 = vpop.f32.mrb[0].mxu0
    %v4973 = vadd.f32 %v4861, %v4972
    %v4974 = vpop.f32.mrb[0].mxu0
    %4975 = vmatprep.mubr.bf16.mxu0 0
    %4976 = vmatmul.mubr.bf16.gmra.mrb[0].mxu0 %v4837
    %v4977 = vpop.f32.mrb[0].mxu0
    %v4978 = vadd.f32 %v4861, %v4977
    %v4979 = vpop.f32.mrb[0].mxu0
    %v4980 = vpop.f32.mrb[0].mxu0
    %v4981 = vadd.f32 %v4861, %v4980
    %v4982 = vpop.f32.mrb[0].mxu0
    %4983 = vmatprep.mubr.bf16.mxu0 0
    %4984 = vmatmul.mubr.bf16.gmra.mrb[0].mxu0 %v4838
    %v4985 = vpop.f32.mrb[0].mxu0
    %v4986 = vadd.f32 %v4861, %v4985
    %v4987 = vpop.f32.mrb[0].mxu0
    %v4988 = vpop.f32.mrb[0].mxu0
    %v4989 = vadd.f32 %v4861, %v4988
    %v4990 = vpop.f32.mrb[0].mxu0
    %4991 = vmatprep.mubr.bf16.mxu0 0
    %4992 = vmatmul.mubr.bf16.gmra.mrb[0].mxu0 %v4839
    %v4993 = vpop.f32.mrb[0].mxu0
    %v4994 = vadd.f32 %v4861, %v4993
    %v4995 = vpop.f32.mrb[0].mxu0
    %v4996 = vpop.f32.mrb[0].mxu0
    %v4997 = vadd.f32 %v4861, %v4996
    %v4998 = vpop.f32.mrb[0].mxu0
    %4999 = vmatprep.mubr.bf16.mxu0 0
    %5000 = vmatmul.mubr.bf16.gmra.mrb[0].mxu0 %v4840
    %v5001 = vpop.f32.mrb[0].mxu0
    %v5002 = vadd.f32 %v4861, %v5001
    %v5003 = vpop.f32.mrb[0].mxu0
    %v5004 = vpop.f32.mrb[0].mxu0
    %v5005 = vadd.f32 %v4861, %v5004
    %v5006 = vpop.f32.mrb[0].mxu0
    %5007 = vdwg.mxu0
    %5008 = vst [vmem:[%s10] sm:$0xff] %v4946
    %5009 = vst [vmem:[%s10 + $0x8] sm:$0xff] %v4949
    %5010 = vst [vmem:[%s10 + $0x10] sm:$0xff] %v4954
    %5011 = vst [vmem:[%s10 + $0x18] sm:$0xff] %v4957
    %5012 = vst [vmem:[%s10 + $0x20] sm:$0xff] %v4962
    %5013 = vst [vmem:[%s10 + $0x28] sm:$0xff] %v4965
    %5014 = vst [vmem:[%s10 + $0x30] sm:$0xff] %v4970
    %5015 = vst [vmem:[%s10 + $0x38] sm:$0xff] %v4973
    %5016 = vst [vmem:[%s10 + $0x40] sm:$0xff] %v4978
    %5017 = vst [vmem:[%s10 + $0x48] sm:$0xff] %v4981
    %5018 = vst [vmem:[%s10 + $0x50] sm:$0xff] %v4986
    %5019 = vst [vmem:[%s10 + $0x58] sm:$0xff] %v4989
    %5020 = vst [vmem:[%s10 + $0x60] sm:$0xff] %v4994
    %5021 = vst [vmem:[%s10 + $0x68] sm:$0xff] %v4997
    %5022 = vst [vmem:[%s10 + $0x70] sm:$0xff] %v5002
    %5023 = vst [vmem:[%s10 + $0x78] sm:$0xff] %v5005
    %5024 = vst [vmem:[#allocation4] sm:$0xff] %v4813
    %5025 = vst [vmem:[#allocation4 + $0x8] sm:$0xff] %v4814
    %5026 = vst [vmem:[#allocation6] sm:$0xff] %v4809
    %5027 = vst [vmem:[#allocation6 + $0x8] sm:$0xff] %v4810
    // Predicated region
    $region42: #{policy_rollout.1} parent=1 // pred_check
      _
    $region43: #{policy_rollout.1} parent=1 // pred_check_branch
      %5029 = sbr.rel (0) target = $region45
    $region44: #{policy_rollout.1} parent=1 // pred_region
      _
    $region45: #{policy_rollout.1} parent=1 // pred_fallthru
      _
    // Predicated region
    $region46: #{policy_rollout.1} parent=1 // pred_check
      _
    $region47: #{policy_rollout.1} parent=1 // pred_check_branch
      %5031 = sbr.rel (0) target = $region49
    $region48: #{policy_rollout.1} parent=1 // pred_region
      %s5033 = ssub.s32 256, 256
      %5034 = vsyncadd [#allocation5], %s5033
      %s5035 = sshll.u32 [#allocation4], 4
      %s5036 = int_to_ptr.vmem [resolvable:$true] %s5035
      %5041 = dma.vmem_to_hbm [thread:$0]  %s5036, 256, %s11, [#allocation5], 128, 128, 8
    $region49: #{policy_rollout.1} parent=1 // pred_fallthru
      _
    // Predicated region
    $region50: #{policy_rollout.1} parent=1 // pred_check
      _
    $region51: #{policy_rollout.1} parent=1 // pred_check_branch
      %5043 = sbr.rel (0) target = $region53
    $region52: #{policy_rollout.1} parent=1 // pred_region
      %s5045 = ssub.s32 256, 256
      %5046 = vsyncadd [#allocation7], %s5045
      %s5047 = sshll.u32 [#allocation6], 4
      %s5048 = int_to_ptr.vmem [resolvable:$true] %s5047
      %5053 = dma.vmem_to_hbm [thread:$0]  %s5048, 256, %s12, [#allocation7], 128, 128, 8
    $region53: #{policy_rollout.1} parent=1 // pred_fallthru
      _
    // Predicated region
    $region54: #{policy_rollout.1} parent=1 // pred_check
      _
    $region55: #{policy_rollout.1} parent=1 // pred_check_branch
      %5055 = sbr.rel (0) target = $region57
    $region56: #{policy_rollout.1} parent=1 // pred_region
      _
    $region57: #{policy_rollout.1} parent=1 // pred_fallthru
      _
    // Predicated region
    $region58: #{policy_rollout.1} parent=1 // pred_check
      _
    $region59: #{policy_rollout.1} parent=1 // pred_check_branch
      %5057 = sbr.rel (0) target = $region61
    $region60: #{policy_rollout.1} parent=1 // pred_region
      %5058 = dma.done [#allocation5], 256
    $region61: #{policy_rollout.1} parent=1 // pred_fallthru
      _
    // Predicated region
    $region62: #{policy_rollout.1} parent=1 // pred_check
      _
    $region63: #{policy_rollout.1} parent=1 // pred_check_branch
      %5060 = sbr.rel (0) target = $region65
    $region64: #{policy_rollout.1} parent=1 // pred_region
      %5061 = dma.done [#allocation7], 256
    $region65: #{policy_rollout.1} parent=1 // pred_fallthru
      _
    %5062 = vsyncpa [#allocation5], 1
    %5063 = vsyncpa [#allocation7], 1

</llo_original>
